<compile_context>
chip_gen: v5e
topology: v5e:2x2
jax: 0.10.0
libtpu: 0.0.40
codegen_flags: <defaults>
</compile_context>

<pallas_src>
import jax
import jax.numpy as jnp
from jax import lax
from jax.experimental import pallas as pl
from jax.experimental.pallas import tpu as pltpu

EPS = 1e-5


def _make_conv_bn_kernel(cin, cout, ks, od, oh, ow):
    inv_p = 1.0 / float(od * oh * ow)

    def kernel(x_ref, w_ref, g_ref, b_ref, o_ref):
        # x_ref: (Cin, D, H, W)       VMEM f32  (batch of 1, squeezed)
        # w_ref: (Cout*Cin*ks^3,)     SMEM f32  (row-major flattened conv weight)
        # g_ref: (Cout,)              SMEM f32  (BN gamma)
        # b_ref: (Cout,)              SMEM f32  (BN beta)
        # o_ref: (Cout, OD, OH, OW)   VMEM f32
        xv = x_ref[...]

        # Implicit im2col: ks^3 shifted taps, scalar(SMEM)-broadcast MAC on the
        # VPU; conv bias omitted on purpose (cancels vs. BN mean subtraction).
        accs = [jnp.zeros((od, oh, ow), jnp.float32) for _ in range(cout)]
        for kd in range(ks):
            for kh in range(ks):
                for kw in range(ks):
                    tap = xv[:, kd:kd + od, kh:kh + oh, kw:kw + ow]  # (Cin,OD,OH,OW)
                    for ci in range(cin):
                        t = tap[ci]                                  # (OD,OH,OW)
                        for co in range(cout):
                            widx = (((co * cin + ci) * ks + kd) * ks + kh) * ks + kw
                            accs[co] = accs[co] + w_ref[widx] * t

        # Training-mode BatchNorm3d: biased per-channel stats over the P=OD*OH*OW
        # positions (batch = 1). sum / sum-of-squares * (1/P), var clamped >= 0.
        for co in range(cout):
            y = accs[co]
            s = jnp.sum(y)
            ss = jnp.sum(y * y)
            mean = s * inv_p
            var = jnp.maximum(ss * inv_p - mean * mean, 0.0)
            inv = lax.rsqrt(var + EPS)
            o_ref[co] = (y - mean) * (inv * g_ref[co]) + b_ref[co]

    return kernel


@jax.jit
def conv_bn_forward(x, conv_w, conv_b, bn_gamma, bn_beta):
    # x: (1, Cin, D, H, W); conv_w: (Cout, Cin, ks, ks, ks)
    del conv_b  # mathematically cancelled by training-mode BN mean subtraction
    cout, cin, kd, kh, kw = conv_w.shape
    n, _, d, h, w = x.shape
    assert n == 1 and kd == kh == kw
    ks = kd
    od, oh, ow = d - ks + 1, h - ks + 1, w - ks + 1

    x4 = x.reshape(cin, d, h, w)   # contiguous reshape: free (bitcast)
    w_flat = conv_w.reshape(-1)    # contiguous reshape: free (bitcast)

    kernel = _make_conv_bn_kernel(cin, cout, ks, od, oh, ow)
    y = pl.pallas_call(
        kernel,
        out_shape=jax.ShapeDtypeStruct((cout, od, oh, ow), jnp.float32),
        in_specs=[
            pl.BlockSpec(memory_space=pltpu.MemorySpace.VMEM),
            pl.BlockSpec(memory_space=pltpu.MemorySpace.SMEM),
            pl.BlockSpec(memory_space=pltpu.MemorySpace.SMEM),
            pl.BlockSpec(memory_space=pltpu.MemorySpace.SMEM),
        ],
        out_specs=pl.BlockSpec(memory_space=pltpu.MemorySpace.VMEM),
    )(x4, w_flat, bn_gamma, bn_beta)

    # (Cout, OD, OH, OW) -> (1, Cout, OD, OH, OW): contiguous reshape, free.
    return y.reshape(1, cout, od, oh, ow)


def reference_forward(x, conv_w, conv_b, bn_gamma, bn_beta):
    y = lax.conv_general_dilated(
        x, conv_w, window_strides=(1, 1, 1), padding="VALID",
        dimension_numbers=("NCDHW", "OIDHW", "NCDHW"))
    y = y + conv_b.reshape(1, -1, 1, 1, 1)
    mean = jnp.mean(y, axis=(0, 2, 3, 4), keepdims=True)
    var = jnp.mean((y - mean) ** 2, axis=(0, 2, 3, 4), keepdims=True)
    y = (y - mean) * lax.rsqrt(var + EPS)
    return y * bn_gamma.reshape(1, -1, 1, 1, 1) + bn_beta.reshape(1, -1, 1, 1, 1)


if __name__ == "__main__":
    key = jax.random.PRNGKey(0)
    kx, kw, kb = jax.random.split(key, 3)

    # Input: (1, 3, 4, 4, 4), matching the PyTorch module.
    x = jax.random.normal(kx, (1, 3, 4, 4, 4), dtype=jnp.float32)

    # Conv3d(3, 3, 3) params, deterministic synthetic init.
    conv_w = jax.random.normal(kw, (3, 3, 3, 3, 3), dtype=jnp.float32) * 0.1
    conv_b = jax.random.normal(kb, (3,), dtype=jnp.float32) * 0.1

    # BatchNorm3d(3) default init: gamma=1, beta=0.
    bn_gamma = jnp.ones((3,), dtype=jnp.float32)
    bn_beta = jnp.zeros((3,), dtype=jnp.float32)

    out = conv_bn_forward(x, conv_w, conv_b, bn_gamma, bn_beta)
    out = jax.block_until_ready(out)

    ref = reference_forward(x, conv_w, conv_b, bn_gamma, bn_beta)
    assert out.shape == (1, 3, 2, 2, 2)
    assert jnp.allclose(out, ref, atol=1e-4, rtol=1e-4)

    print("KERNEL_OK")
</pallas_src>

<mosaic_0001>
module attributes {stable_mosaic.version = 11 : i64} {
  func.func @kernel(%arg0: memref<3x4x4x4xf32, #tpu.memory_space<vmem>>, %arg1: memref<243xf32, #tpu.memory_space<smem>>, %arg2: memref<3xf32, #tpu.memory_space<smem>>, %arg3: memref<3xf32, #tpu.memory_space<smem>>, %arg4: memref<3x2x2x2xf32, #tpu.memory_space<vmem>>) attributes {dimension_semantics = [], scalar_prefetch = 0 : i64, scratch_operands = 0 : i64, tpu.core_type = #tpu.core_type<tc>} {
    %c0 = arith.constant 0 : index
    %c0_0 = arith.constant 0 : index
    %c0_1 = arith.constant 0 : index
    %c0_2 = arith.constant 0 : index
    %0 = vector.load %arg0[%c0, %c0_0, %c0_1, %c0_2] : memref<3x4x4x4xf32, #tpu.memory_space<vmem>>, vector<3x4x4x4xf32>
    %cst = arith.constant 0.000000e+00 : f32
    %1 = vector.broadcast %cst : f32 to vector<2x2x2xf32>
    %cst_3 = arith.constant 0.000000e+00 : f32
    %2 = vector.broadcast %cst_3 : f32 to vector<2x2x2xf32>
    %cst_4 = arith.constant 0.000000e+00 : f32
    %3 = vector.broadcast %cst_4 : f32 to vector<2x2x2xf32>
    %4 = vector.extract_strided_slice %0 {offsets = [0, 0, 0, 0], sizes = [3, 2, 2, 2], strides = [1, 1, 1, 1]} : vector<3x4x4x4xf32> to vector<3x2x2x2xf32>
    %5 = vector.extract_strided_slice %4 {offsets = [0, 0, 0, 0], sizes = [1, 2, 2, 2], strides = [1, 1, 1, 1]} : vector<3x2x2x2xf32> to vector<1x2x2x2xf32>
    %6 = vector.shape_cast %5 : vector<1x2x2x2xf32> to vector<2x2x2xf32>
    %c0_5 = arith.constant 0 : index
    %7 = memref.load %arg1[%c0_5] : memref<243xf32, #tpu.memory_space<smem>>
    %8 = vector.broadcast %7 : f32 to vector<2x2x2xf32>
    %9 = arith.mulf %8, %6 : vector<2x2x2xf32>
    %10 = arith.addf %1, %9 : vector<2x2x2xf32>
    %c81 = arith.constant 81 : index
    %11 = memref.load %arg1[%c81] : memref<243xf32, #tpu.memory_space<smem>>
    %12 = vector.broadcast %11 : f32 to vector<2x2x2xf32>
    %13 = arith.mulf %12, %6 : vector<2x2x2xf32>
    %14 = arith.addf %2, %13 : vector<2x2x2xf32>
    %c162 = arith.constant 162 : index
    %15 = memref.load %arg1[%c162] : memref<243xf32, #tpu.memory_space<smem>>
    %16 = vector.broadcast %15 : f32 to vector<2x2x2xf32>
    %17 = arith.mulf %16, %6 : vector<2x2x2xf32>
    %18 = arith.addf %3, %17 : vector<2x2x2xf32>
    %19 = vector.extract_strided_slice %4 {offsets = [1, 0, 0, 0], sizes = [1, 2, 2, 2], strides = [1, 1, 1, 1]} : vector<3x2x2x2xf32> to vector<1x2x2x2xf32>
    %20 = vector.shape_cast %19 : vector<1x2x2x2xf32> to vector<2x2x2xf32>
    %c27 = arith.constant 27 : index
    %21 = memref.load %arg1[%c27] : memref<243xf32, #tpu.memory_space<smem>>
    %22 = vector.broadcast %21 : f32 to vector<2x2x2xf32>
    %23 = arith.mulf %22, %20 : vector<2x2x2xf32>
    %24 = arith.addf %10, %23 : vector<2x2x2xf32>
    %c108 = arith.constant 108 : index
    %25 = memref.load %arg1[%c108] : memref<243xf32, #tpu.memory_space<smem>>
    %26 = vector.broadcast %25 : f32 to vector<2x2x2xf32>
    %27 = arith.mulf %26, %20 : vector<2x2x2xf32>
    %28 = arith.addf %14, %27 : vector<2x2x2xf32>
    %c189 = arith.constant 189 : index
    %29 = memref.load %arg1[%c189] : memref<243xf32, #tpu.memory_space<smem>>
    %30 = vector.broadcast %29 : f32 to vector<2x2x2xf32>
    %31 = arith.mulf %30, %20 : vector<2x2x2xf32>
    %32 = arith.addf %18, %31 : vector<2x2x2xf32>
    %33 = vector.extract_strided_slice %4 {offsets = [2, 0, 0, 0], sizes = [1, 2, 2, 2], strides = [1, 1, 1, 1]} : vector<3x2x2x2xf32> to vector<1x2x2x2xf32>
    %34 = vector.shape_cast %33 : vector<1x2x2x2xf32> to vector<2x2x2xf32>
    %c54 = arith.constant 54 : index
    %35 = memref.load %arg1[%c54] : memref<243xf32, #tpu.memory_space<smem>>
    %36 = vector.broadcast %35 : f32 to vector<2x2x2xf32>
    %37 = arith.mulf %36, %34 : vector<2x2x2xf32>
    %38 = arith.addf %24, %37 : vector<2x2x2xf32>
    %c135 = arith.constant 135 : index
    %39 = memref.load %arg1[%c135] : memref<243xf32, #tpu.memory_space<smem>>
    %40 = vector.broadcast %39 : f32 to vector<2x2x2xf32>
    %41 = arith.mulf %40, %34 : vector<2x2x2xf32>
    %42 = arith.addf %28, %41 : vector<2x2x2xf32>
    %c216 = arith.constant 216 : index
    %43 = memref.load %arg1[%c216] : memref<243xf32, #tpu.memory_space<smem>>
    %44 = vector.broadcast %43 : f32 to vector<2x2x2xf32>
    %45 = arith.mulf %44, %34 : vector<2x2x2xf32>
    %46 = arith.addf %32, %45 : vector<2x2x2xf32>
    %47 = vector.extract_strided_slice %0 {offsets = [0, 0, 0, 1], sizes = [3, 2, 2, 2], strides = [1, 1, 1, 1]} : vector<3x4x4x4xf32> to vector<3x2x2x2xf32>
    %48 = vector.extract_strided_slice %47 {offsets = [0, 0, 0, 0], sizes = [1, 2, 2, 2], strides = [1, 1, 1, 1]} : vector<3x2x2x2xf32> to vector<1x2x2x2xf32>
    %49 = vector.shape_cast %48 : vector<1x2x2x2xf32> to vector<2x2x2xf32>
    %c1 = arith.constant 1 : index
    %50 = memref.load %arg1[%c1] : memref<243xf32, #tpu.memory_space<smem>>
    %51 = vector.broadcast %50 : f32 to vector<2x2x2xf32>
    %52 = arith.mulf %51, %49 : vector<2x2x2xf32>
    %53 = arith.addf %38, %52 : vector<2x2x2xf32>
    %c82 = arith.constant 82 : index
    %54 = memref.load %arg1[%c82] : memref<243xf32, #tpu.memory_space<smem>>
    %55 = vector.broadcast %54 : f32 to vector<2x2x2xf32>
    %56 = arith.mulf %55, %49 : vector<2x2x2xf32>
    %57 = arith.addf %42, %56 : vector<2x2x2xf32>
    %c163 = arith.constant 163 : index
    %58 = memref.load %arg1[%c163] : memref<243xf32, #tpu.memory_space<smem>>
    %59 = vector.broadcast %58 : f32 to vector<2x2x2xf32>
    %60 = arith.mulf %59, %49 : vector<2x2x2xf32>
    %61 = arith.addf %46, %60 : vector<2x2x2xf32>
    %62 = vector.extract_strided_slice %47 {offsets = [1, 0, 0, 0], sizes = [1, 2, 2, 2], strides = [1, 1, 1, 1]} : vector<3x2x2x2xf32> to vector<1x2x2x2xf32>
    %63 = vector.shape_cast %62 : vector<1x2x2x2xf32> to vector<2x2x2xf32>
    %c28 = arith.constant 28 : index
    %64 = memref.load %arg1[%c28] : memref<243xf32, #tpu.memory_space<smem>>
    %65 = vector.broadcast %64 : f32 to vector<2x2x2xf32>
    %66 = arith.mulf %65, %63 : vector<2x2x2xf32>
    %67 = arith.addf %53, %66 : vector<2x2x2xf32>
    %c109 = arith.constant 109 : index
    %68 = memref.load %arg1[%c109] : memref<243xf32, #tpu.memory_space<smem>>
    %69 = vector.broadcast %68 : f32 to vector<2x2x2xf32>
    %70 = arith.mulf %69, %63 : vector<2x2x2xf32>
    %71 = arith.addf %57, %70 : vector<2x2x2xf32>
    %c190 = arith.constant 190 : index
    %72 = memref.load %arg1[%c190] : memref<243xf32, #tpu.memory_space<smem>>
    %73 = vector.broadcast %72 : f32 to vector<2x2x2xf32>
    %74 = arith.mulf %73, %63 : vector<2x2x2xf32>
    %75 = arith.addf %61, %74 : vector<2x2x2xf32>
    %76 = vector.extract_strided_slice %47 {offsets = [2, 0, 0, 0], sizes = [1, 2, 2, 2], strides = [1, 1, 1, 1]} : vector<3x2x2x2xf32> to vector<1x2x2x2xf32>
    %77 = vector.shape_cast %76 : vector<1x2x2x2xf32> to vector<2x2x2xf32>
    %c55 = arith.constant 55 : index
    %78 = memref.load %arg1[%c55] : memref<243xf32, #tpu.memory_space<smem>>
    %79 = vector.broadcast %78 : f32 to vector<2x2x2xf32>
    %80 = arith.mulf %79, %77 : vector<2x2x2xf32>
    %81 = arith.addf %67, %80 : vector<2x2x2xf32>
    %c136 = arith.constant 136 : index
    %82 = memref.load %arg1[%c136] : memref<243xf32, #tpu.memory_space<smem>>
    %83 = vector.broadcast %82 : f32 to vector<2x2x2xf32>
    %84 = arith.mulf %83, %77 : vector<2x2x2xf32>
    %85 = arith.addf %71, %84 : vector<2x2x2xf32>
    %c217 = arith.constant 217 : index
    %86 = memref.load %arg1[%c217] : memref<243xf32, #tpu.memory_space<smem>>
    %87 = vector.broadcast %86 : f32 to vector<2x2x2xf32>
    %88 = arith.mulf %87, %77 : vector<2x2x2xf32>
    %89 = arith.addf %75, %88 : vector<2x2x2xf32>
    %90 = vector.extract_strided_slice %0 {offsets = [0, 0, 0, 2], sizes = [3, 2, 2, 2], strides = [1, 1, 1, 1]} : vector<3x4x4x4xf32> to vector<3x2x2x2xf32>
    %91 = vector.extract_strided_slice %90 {offsets = [0, 0, 0, 0], sizes = [1, 2, 2, 2], strides = [1, 1, 1, 1]} : vector<3x2x2x2xf32> to vector<1x2x2x2xf32>
    %92 = vector.shape_cast %91 : vector<1x2x2x2xf32> to vector<2x2x2xf32>
    %c2 = arith.constant 2 : index
    %93 = memref.load %arg1[%c2] : memref<243xf32, #tpu.memory_space<smem>>
    %94 = vector.broadcast %93 : f32 to vector<2x2x2xf32>
    %95 = arith.mulf %94, %92 : vector<2x2x2xf32>
    %96 = arith.addf %81, %95 : vector<2x2x2xf32>
    %c83 = arith.constant 83 : index
    %97 = memref.load %arg1[%c83] : memref<243xf32, #tpu.memory_space<smem>>
    %98 = vector.broadcast %97 : f32 to vector<2x2x2xf32>
    %99 = arith.mulf %98, %92 : vector<2x2x2xf32>
    %100 = arith.addf %85, %99 : vector<2x2x2xf32>
    %c164 = arith.constant 164 : index
    %101 = memref.load %arg1[%c164] : memref<243xf32, #tpu.memory_space<smem>>
    %102 = vector.broadcast %101 : f32 to vector<2x2x2xf32>
    %103 = arith.mulf %102, %92 : vector<2x2x2xf32>
    %104 = arith.addf %89, %103 : vector<2x2x2xf32>
    %105 = vector.extract_strided_slice %90 {offsets = [1, 0, 0, 0], sizes = [1, 2, 2, 2], strides = [1, 1, 1, 1]} : vector<3x2x2x2xf32> to vector<1x2x2x2xf32>
    %106 = vector.shape_cast %105 : vector<1x2x2x2xf32> to vector<2x2x2xf32>
    %c29 = arith.constant 29 : index
    %107 = memref.load %arg1[%c29] : memref<243xf32, #tpu.memory_space<smem>>
    %108 = vector.broadcast %107 : f32 to vector<2x2x2xf32>
    %109 = arith.mulf %108, %106 : vector<2x2x2xf32>
    %110 = arith.addf %96, %109 : vector<2x2x2xf32>
    %c110 = arith.constant 110 : index
    %111 = memref.load %arg1[%c110] : memref<243xf32, #tpu.memory_space<smem>>
    %112 = vector.broadcast %111 : f32 to vector<2x2x2xf32>
    %113 = arith.mulf %112, %106 : vector<2x2x2xf32>
    %114 = arith.addf %100, %113 : vector<2x2x2xf32>
    %c191 = arith.constant 191 : index
    %115 = memref.load %arg1[%c191] : memref<243xf32, #tpu.memory_space<smem>>
    %116 = vector.broadcast %115 : f32 to vector<2x2x2xf32>
    %117 = arith.mulf %116, %106 : vector<2x2x2xf32>
    %118 = arith.addf %104, %117 : vector<2x2x2xf32>
    %119 = vector.extract_strided_slice %90 {offsets = [2, 0, 0, 0], sizes = [1, 2, 2, 2], strides = [1, 1, 1, 1]} : vector<3x2x2x2xf32> to vector<1x2x2x2xf32>
    %120 = vector.shape_cast %119 : vector<1x2x2x2xf32> to vector<2x2x2xf32>
    %c56 = arith.constant 56 : index
    %121 = memref.load %arg1[%c56] : memref<243xf32, #tpu.memory_space<smem>>
    %122 = vector.broadcast %121 : f32 to vector<2x2x2xf32>
    %123 = arith.mulf %122, %120 : vector<2x2x2xf32>
    %124 = arith.addf %110, %123 : vector<2x2x2xf32>
    %c137 = arith.constant 137 : index
    %125 = memref.load %arg1[%c137] : memref<243xf32, #tpu.memory_space<smem>>
    %126 = vector.broadcast %125 : f32 to vector<2x2x2xf32>
    %127 = arith.mulf %126, %120 : vector<2x2x2xf32>
    %128 = arith.addf %114, %127 : vector<2x2x2xf32>
    %c218 = arith.constant 218 : index
    %129 = memref.load %arg1[%c218] : memref<243xf32, #tpu.memory_space<smem>>
    %130 = vector.broadcast %129 : f32 to vector<2x2x2xf32>
    %131 = arith.mulf %130, %120 : vector<2x2x2xf32>
    %132 = arith.addf %118, %131 : vector<2x2x2xf32>
    %133 = vector.extract_strided_slice %0 {offsets = [0, 0, 1, 0], sizes = [3, 2, 2, 2], strides = [1, 1, 1, 1]} : vector<3x4x4x4xf32> to vector<3x2x2x2xf32>
    %134 = vector.extract_strided_slice %133 {offsets = [0, 0, 0, 0], sizes = [1, 2, 2, 2], strides = [1, 1, 1, 1]} : vector<3x2x2x2xf32> to vector<1x2x2x2xf32>
    %135 = vector.shape_cast %134 : vector<1x2x2x2xf32> to vector<2x2x2xf32>
    %c3 = arith.constant 3 : index
    %136 = memref.load %arg1[%c3] : memref<243xf32, #tpu.memory_space<smem>>
    %137 = vector.broadcast %136 : f32 to vector<2x2x2xf32>
    %138 = arith.mulf %137, %135 : vector<2x2x2xf32>
    %139 = arith.addf %124, %138 : vector<2x2x2xf32>
    %c84 = arith.constant 84 : index
    %140 = memref.load %arg1[%c84] : memref<243xf32, #tpu.memory_space<smem>>
    %141 = vector.broadcast %140 : f32 to vector<2x2x2xf32>
    %142 = arith.mulf %141, %135 : vector<2x2x2xf32>
    %143 = arith.addf %128, %142 : vector<2x2x2xf32>
    %c165 = arith.constant 165 : index
    %144 = memref.load %arg1[%c165] : memref<243xf32, #tpu.memory_space<smem>>
    %145 = vector.broadcast %144 : f32 to vector<2x2x2xf32>
    %146 = arith.mulf %145, %135 : vector<2x2x2xf32>
    %147 = arith.addf %132, %146 : vector<2x2x2xf32>
    %148 = vector.extract_strided_slice %133 {offsets = [1, 0, 0, 0], sizes = [1, 2, 2, 2], strides = [1, 1, 1, 1]} : vector<3x2x2x2xf32> to vector<1x2x2x2xf32>
    %149 = vector.shape_cast %148 : vector<1x2x2x2xf32> to vector<2x2x2xf32>
    %c30 = arith.constant 30 : index
    %150 = memref.load %arg1[%c30] : memref<243xf32, #tpu.memory_space<smem>>
    %151 = vector.broadcast %150 : f32 to vector<2x2x2xf32>
    %152 = arith.mulf %151, %149 : vector<2x2x2xf32>
    %153 = arith.addf %139, %152 : vector<2x2x2xf32>
    %c111 = arith.constant 111 : index
    %154 = memref.load %arg1[%c111] : memref<243xf32, #tpu.memory_space<smem>>
    %155 = vector.broadcast %154 : f32 to vector<2x2x2xf32>
    %156 = arith.mulf %155, %149 : vector<2x2x2xf32>
    %157 = arith.addf %143, %156 : vector<2x2x2xf32>
    %c192 = arith.constant 192 : index
    %158 = memref.load %arg1[%c192] : memref<243xf32, #tpu.memory_space<smem>>
    %159 = vector.broadcast %158 : f32 to vector<2x2x2xf32>
    %160 = arith.mulf %159, %149 : vector<2x2x2xf32>
    %161 = arith.addf %147, %160 : vector<2x2x2xf32>
    %162 = vector.extract_strided_slice %133 {offsets = [2, 0, 0, 0], sizes = [1, 2, 2, 2], strides = [1, 1, 1, 1]} : vector<3x2x2x2xf32> to vector<1x2x2x2xf32>
    %163 = vector.shape_cast %162 : vector<1x2x2x2xf32> to vector<2x2x2xf32>
    %c57 = arith.constant 57 : index
    %164 = memref.load %arg1[%c57] : memref<243xf32, #tpu.memory_space<smem>>
    %165 = vector.broadcast %164 : f32 to vector<2x2x2xf32>
    %166 = arith.mulf %165, %163 : vector<2x2x2xf32>
    %167 = arith.addf %153, %166 : vector<2x2x2xf32>
    %c138 = arith.constant 138 : index
    %168 = memref.load %arg1[%c138] : memref<243xf32, #tpu.memory_space<smem>>
    %169 = vector.broadcast %168 : f32 to vector<2x2x2xf32>
    %170 = arith.mulf %169, %163 : vector<2x2x2xf32>
    %171 = arith.addf %157, %170 : vector<2x2x2xf32>
    %c219 = arith.constant 219 : index
    %172 = memref.load %arg1[%c219] : memref<243xf32, #tpu.memory_space<smem>>
    %173 = vector.broadcast %172 : f32 to vector<2x2x2xf32>
    %174 = arith.mulf %173, %163 : vector<2x2x2xf32>
    %175 = arith.addf %161, %174 : vector<2x2x2xf32>
    %176 = vector.extract_strided_slice %0 {offsets = [0, 0, 1, 1], sizes = [3, 2, 2, 2], strides = [1, 1, 1, 1]} : vector<3x4x4x4xf32> to vector<3x2x2x2xf32>
    %177 = vector.extract_strided_slice %176 {offsets = [0, 0, 0, 0], sizes = [1, 2, 2, 2], strides = [1, 1, 1, 1]} : vector<3x2x2x2xf32> to vector<1x2x2x2xf32>
    %178 = vector.shape_cast %177 : vector<1x2x2x2xf32> to vector<2x2x2xf32>
    %c4 = arith.constant 4 : index
    %179 = memref.load %arg1[%c4] : memref<243xf32, #tpu.memory_space<smem>>
    %180 = vector.broadcast %179 : f32 to vector<2x2x2xf32>
    %181 = arith.mulf %180, %178 : vector<2x2x2xf32>
    %182 = arith.addf %167, %181 : vector<2x2x2xf32>
    %c85 = arith.constant 85 : index
    %183 = memref.load %arg1[%c85] : memref<243xf32, #tpu.memory_space<smem>>
    %184 = vector.broadcast %183 : f32 to vector<2x2x2xf32>
    %185 = arith.mulf %184, %178 : vector<2x2x2xf32>
    %186 = arith.addf %171, %185 : vector<2x2x2xf32>
    %c166 = arith.constant 166 : index
    %187 = memref.load %arg1[%c166] : memref<243xf32, #tpu.memory_space<smem>>
    %188 = vector.broadcast %187 : f32 to vector<2x2x2xf32>
    %189 = arith.mulf %188, %178 : vector<2x2x2xf32>
    %190 = arith.addf %175, %189 : vector<2x2x2xf32>
    %191 = vector.extract_strided_slice %176 {offsets = [1, 0, 0, 0], sizes = [1, 2, 2, 2], strides = [1, 1, 1, 1]} : vector<3x2x2x2xf32> to vector<1x2x2x2xf32>
    %192 = vector.shape_cast %191 : vector<1x2x2x2xf32> to vector<2x2x2xf32>
    %c31 = arith.constant 31 : index
    %193 = memref.load %arg1[%c31] : memref<243xf32, #tpu.memory_space<smem>>
    %194 = vector.broadcast %193 : f32 to vector<2x2x2xf32>
    %195 = arith.mulf %194, %192 : vector<2x2x2xf32>
    %196 = arith.addf %182, %195 : vector<2x2x2xf32>
    %c112 = arith.constant 112 : index
    %197 = memref.load %arg1[%c112] : memref<243xf32, #tpu.memory_space<smem>>
    %198 = vector.broadcast %197 : f32 to vector<2x2x2xf32>
    %199 = arith.mulf %198, %192 : vector<2x2x2xf32>
    %200 = arith.addf %186, %199 : vector<2x2x2xf32>
    %c193 = arith.constant 193 : index
    %201 = memref.load %arg1[%c193] : memref<243xf32, #tpu.memory_space<smem>>
    %202 = vector.broadcast %201 : f32 to vector<2x2x2xf32>
    %203 = arith.mulf %202, %192 : vector<2x2x2xf32>
    %204 = arith.addf %190, %203 : vector<2x2x2xf32>
    %205 = vector.extract_strided_slice %176 {offsets = [2, 0, 0, 0], sizes = [1, 2, 2, 2], strides = [1, 1, 1, 1]} : vector<3x2x2x2xf32> to vector<1x2x2x2xf32>
    %206 = vector.shape_cast %205 : vector<1x2x2x2xf32> to vector<2x2x2xf32>
    %c58 = arith.constant 58 : index
    %207 = memref.load %arg1[%c58] : memref<243xf32, #tpu.memory_space<smem>>
    %208 = vector.broadcast %207 : f32 to vector<2x2x2xf32>
    %209 = arith.mulf %208, %206 : vector<2x2x2xf32>
    %210 = arith.addf %196, %209 : vector<2x2x2xf32>
    %c139 = arith.constant 139 : index
    %211 = memref.load %arg1[%c139] : memref<243xf32, #tpu.memory_space<smem>>
    %212 = vector.broadcast %211 : f32 to vector<2x2x2xf32>
    %213 = arith.mulf %212, %206 : vector<2x2x2xf32>
    %214 = arith.addf %200, %213 : vector<2x2x2xf32>
    %c220 = arith.constant 220 : index
    %215 = memref.load %arg1[%c220] : memref<243xf32, #tpu.memory_space<smem>>
    %216 = vector.broadcast %215 : f32 to vector<2x2x2xf32>
    %217 = arith.mulf %216, %206 : vector<2x2x2xf32>
    %218 = arith.addf %204, %217 : vector<2x2x2xf32>
    %219 = vector.extract_strided_slice %0 {offsets = [0, 0, 1, 2], sizes = [3, 2, 2, 2], strides = [1, 1, 1, 1]} : vector<3x4x4x4xf32> to vector<3x2x2x2xf32>
    %220 = vector.extract_strided_slice %219 {offsets = [0, 0, 0, 0], sizes = [1, 2, 2, 2], strides = [1, 1, 1, 1]} : vector<3x2x2x2xf32> to vector<1x2x2x2xf32>
    %221 = vector.shape_cast %220 : vector<1x2x2x2xf32> to vector<2x2x2xf32>
    %c5 = arith.constant 5 : index
    %222 = memref.load %arg1[%c5] : memref<243xf32, #tpu.memory_space<smem>>
    %223 = vector.broadcast %222 : f32 to vector<2x2x2xf32>
    %224 = arith.mulf %223, %221 : vector<2x2x2xf32>
    %225 = arith.addf %210, %224 : vector<2x2x2xf32>
    %c86 = arith.constant 86 : index
    %226 = memref.load %arg1[%c86] : memref<243xf32, #tpu.memory_space<smem>>
    %227 = vector.broadcast %226 : f32 to vector<2x2x2xf32>
    %228 = arith.mulf %227, %221 : vector<2x2x2xf32>
    %229 = arith.addf %214, %228 : vector<2x2x2xf32>
    %c167 = arith.constant 167 : index
    %230 = memref.load %arg1[%c167] : memref<243xf32, #tpu.memory_space<smem>>
    %231 = vector.broadcast %230 : f32 to vector<2x2x2xf32>
    %232 = arith.mulf %231, %221 : vector<2x2x2xf32>
    %233 = arith.addf %218, %232 : vector<2x2x2xf32>
    %234 = vector.extract_strided_slice %219 {offsets = [1, 0, 0, 0], sizes = [1, 2, 2, 2], strides = [1, 1, 1, 1]} : vector<3x2x2x2xf32> to vector<1x2x2x2xf32>
    %235 = vector.shape_cast %234 : vector<1x2x2x2xf32> to vector<2x2x2xf32>
    %c32 = arith.constant 32 : index
    %236 = memref.load %arg1[%c32] : memref<243xf32, #tpu.memory_space<smem>>
    %237 = vector.broadcast %236 : f32 to vector<2x2x2xf32>
    %238 = arith.mulf %237, %235 : vector<2x2x2xf32>
    %239 = arith.addf %225, %238 : vector<2x2x2xf32>
    %c113 = arith.constant 113 : index
    %240 = memref.load %arg1[%c113] : memref<243xf32, #tpu.memory_space<smem>>
    %241 = vector.broadcast %240 : f32 to vector<2x2x2xf32>
    %242 = arith.mulf %241, %235 : vector<2x2x2xf32>
    %243 = arith.addf %229, %242 : vector<2x2x2xf32>
    %c194 = arith.constant 194 : index
    %244 = memref.load %arg1[%c194] : memref<243xf32, #tpu.memory_space<smem>>
    %245 = vector.broadcast %244 : f32 to vector<2x2x2xf32>
    %246 = arith.mulf %245, %235 : vector<2x2x2xf32>
    %247 = arith.addf %233, %246 : vector<2x2x2xf32>
    %248 = vector.extract_strided_slice %219 {offsets = [2, 0, 0, 0], sizes = [1, 2, 2, 2], strides = [1, 1, 1, 1]} : vector<3x2x2x2xf32> to vector<1x2x2x2xf32>
    %249 = vector.shape_cast %248 : vector<1x2x2x2xf32> to vector<2x2x2xf32>
    %c59 = arith.constant 59 : index
    %250 = memref.load %arg1[%c59] : memref<243xf32, #tpu.memory_space<smem>>
    %251 = vector.broadcast %250 : f32 to vector<2x2x2xf32>
    %252 = arith.mulf %251, %249 : vector<2x2x2xf32>
    %253 = arith.addf %239, %252 : vector<2x2x2xf32>
    %c140 = arith.constant 140 : index
    %254 = memref.load %arg1[%c140] : memref<243xf32, #tpu.memory_space<smem>>
    %255 = vector.broadcast %254 : f32 to vector<2x2x2xf32>
    %256 = arith.mulf %255, %249 : vector<2x2x2xf32>
    %257 = arith.addf %243, %256 : vector<2x2x2xf32>
    %c221 = arith.constant 221 : index
    %258 = memref.load %arg1[%c221] : memref<243xf32, #tpu.memory_space<smem>>
    %259 = vector.broadcast %258 : f32 to vector<2x2x2xf32>
    %260 = arith.mulf %259, %249 : vector<2x2x2xf32>
    %261 = arith.addf %247, %260 : vector<2x2x2xf32>
    %262 = vector.extract_strided_slice %0 {offsets = [0, 0, 2, 0], sizes = [3, 2, 2, 2], strides = [1, 1, 1, 1]} : vector<3x4x4x4xf32> to vector<3x2x2x2xf32>
    %263 = vector.extract_strided_slice %262 {offsets = [0, 0, 0, 0], sizes = [1, 2, 2, 2], strides = [1, 1, 1, 1]} : vector<3x2x2x2xf32> to vector<1x2x2x2xf32>
    %264 = vector.shape_cast %263 : vector<1x2x2x2xf32> to vector<2x2x2xf32>
    %c6 = arith.constant 6 : index
    %265 = memref.load %arg1[%c6] : memref<243xf32, #tpu.memory_space<smem>>
    %266 = vector.broadcast %265 : f32 to vector<2x2x2xf32>
    %267 = arith.mulf %266, %264 : vector<2x2x2xf32>
    %268 = arith.addf %253, %267 : vector<2x2x2xf32>
    %c87 = arith.constant 87 : index
    %269 = memref.load %arg1[%c87] : memref<243xf32, #tpu.memory_space<smem>>
    %270 = vector.broadcast %269 : f32 to vector<2x2x2xf32>
    %271 = arith.mulf %270, %264 : vector<2x2x2xf32>
    %272 = arith.addf %257, %271 : vector<2x2x2xf32>
    %c168 = arith.constant 168 : index
    %273 = memref.load %arg1[%c168] : memref<243xf32, #tpu.memory_space<smem>>
    %274 = vector.broadcast %273 : f32 to vector<2x2x2xf32>
    %275 = arith.mulf %274, %264 : vector<2x2x2xf32>
    %276 = arith.addf %261, %275 : vector<2x2x2xf32>
    %277 = vector.extract_strided_slice %262 {offsets = [1, 0, 0, 0], sizes = [1, 2, 2, 2], strides = [1, 1, 1, 1]} : vector<3x2x2x2xf32> to vector<1x2x2x2xf32>
    %278 = vector.shape_cast %277 : vector<1x2x2x2xf32> to vector<2x2x2xf32>
    %c33 = arith.constant 33 : index
    %279 = memref.load %arg1[%c33] : memref<243xf32, #tpu.memory_space<smem>>
    %280 = vector.broadcast %279 : f32 to vector<2x2x2xf32>
    %281 = arith.mulf %280, %278 : vector<2x2x2xf32>
    %282 = arith.addf %268, %281 : vector<2x2x2xf32>
    %c114 = arith.constant 114 : index
    %283 = memref.load %arg1[%c114] : memref<243xf32, #tpu.memory_space<smem>>
    %284 = vector.broadcast %283 : f32 to vector<2x2x2xf32>
    %285 = arith.mulf %284, %278 : vector<2x2x2xf32>
    %286 = arith.addf %272, %285 : vector<2x2x2xf32>
    %c195 = arith.constant 195 : index
    %287 = memref.load %arg1[%c195] : memref<243xf32, #tpu.memory_space<smem>>
    %288 = vector.broadcast %287 : f32 to vector<2x2x2xf32>
    %289 = arith.mulf %288, %278 : vector<2x2x2xf32>
    %290 = arith.addf %276, %289 : vector<2x2x2xf32>
    %291 = vector.extract_strided_slice %262 {offsets = [2, 0, 0, 0], sizes = [1, 2, 2, 2], strides = [1, 1, 1, 1]} : vector<3x2x2x2xf32> to vector<1x2x2x2xf32>
    %292 = vector.shape_cast %291 : vector<1x2x2x2xf32> to vector<2x2x2xf32>
    %c60 = arith.constant 60 : index
    %293 = memref.load %arg1[%c60] : memref<243xf32, #tpu.memory_space<smem>>
    %294 = vector.broadcast %293 : f32 to vector<2x2x2xf32>
    %295 = arith.mulf %294, %292 : vector<2x2x2xf32>
    %296 = arith.addf %282, %295 : vector<2x2x2xf32>
    %c141 = arith.constant 141 : index
    %297 = memref.load %arg1[%c141] : memref<243xf32, #tpu.memory_space<smem>>
    %298 = vector.broadcast %297 : f32 to vector<2x2x2xf32>
    %299 = arith.mulf %298, %292 : vector<2x2x2xf32>
    %300 = arith.addf %286, %299 : vector<2x2x2xf32>
    %c222 = arith.constant 222 : index
    %301 = memref.load %arg1[%c222] : memref<243xf32, #tpu.memory_space<smem>>
    %302 = vector.broadcast %301 : f32 to vector<2x2x2xf32>
    %303 = arith.mulf %302, %292 : vector<2x2x2xf32>
    %304 = arith.addf %290, %303 : vector<2x2x2xf32>
    %305 = vector.extract_strided_slice %0 {offsets = [0, 0, 2, 1], sizes = [3, 2, 2, 2], strides = [1, 1, 1, 1]} : vector<3x4x4x4xf32> to vector<3x2x2x2xf32>
    %306 = vector.extract_strided_slice %305 {offsets = [0, 0, 0, 0], sizes = [1, 2, 2, 2], strides = [1, 1, 1, 1]} : vector<3x2x2x2xf32> to vector<1x2x2x2xf32>
    %307 = vector.shape_cast %306 : vector<1x2x2x2xf32> to vector<2x2x2xf32>
    %c7 = arith.constant 7 : index
    %308 = memref.load %arg1[%c7] : memref<243xf32, #tpu.memory_space<smem>>
    %309 = vector.broadcast %308 : f32 to vector<2x2x2xf32>
    %310 = arith.mulf %309, %307 : vector<2x2x2xf32>
    %311 = arith.addf %296, %310 : vector<2x2x2xf32>
    %c88 = arith.constant 88 : index
    %312 = memref.load %arg1[%c88] : memref<243xf32, #tpu.memory_space<smem>>
    %313 = vector.broadcast %312 : f32 to vector<2x2x2xf32>
    %314 = arith.mulf %313, %307 : vector<2x2x2xf32>
    %315 = arith.addf %300, %314 : vector<2x2x2xf32>
    %c169 = arith.constant 169 : index
    %316 = memref.load %arg1[%c169] : memref<243xf32, #tpu.memory_space<smem>>
    %317 = vector.broadcast %316 : f32 to vector<2x2x2xf32>
    %318 = arith.mulf %317, %307 : vector<2x2x2xf32>
    %319 = arith.addf %304, %318 : vector<2x2x2xf32>
    %320 = vector.extract_strided_slice %305 {offsets = [1, 0, 0, 0], sizes = [1, 2, 2, 2], strides = [1, 1, 1, 1]} : vector<3x2x2x2xf32> to vector<1x2x2x2xf32>
    %321 = vector.shape_cast %320 : vector<1x2x2x2xf32> to vector<2x2x2xf32>
    %c34 = arith.constant 34 : index
    %322 = memref.load %arg1[%c34] : memref<243xf32, #tpu.memory_space<smem>>
    %323 = vector.broadcast %322 : f32 to vector<2x2x2xf32>
    %324 = arith.mulf %323, %321 : vector<2x2x2xf32>
    %325 = arith.addf %311, %324 : vector<2x2x2xf32>
    %c115 = arith.constant 115 : index
    %326 = memref.load %arg1[%c115] : memref<243xf32, #tpu.memory_space<smem>>
    %327 = vector.broadcast %326 : f32 to vector<2x2x2xf32>
    %328 = arith.mulf %327, %321 : vector<2x2x2xf32>
    %329 = arith.addf %315, %328 : vector<2x2x2xf32>
    %c196 = arith.constant 196 : index
    %330 = memref.load %arg1[%c196] : memref<243xf32, #tpu.memory_space<smem>>
    %331 = vector.broadcast %330 : f32 to vector<2x2x2xf32>
    %332 = arith.mulf %331, %321 : vector<2x2x2xf32>
    %333 = arith.addf %319, %332 : vector<2x2x2xf32>
    %334 = vector.extract_strided_slice %305 {offsets = [2, 0, 0, 0], sizes = [1, 2, 2, 2], strides = [1, 1, 1, 1]} : vector<3x2x2x2xf32> to vector<1x2x2x2xf32>
    %335 = vector.shape_cast %334 : vector<1x2x2x2xf32> to vector<2x2x2xf32>
    %c61 = arith.constant 61 : index
    %336 = memref.load %arg1[%c61] : memref<243xf32, #tpu.memory_space<smem>>
    %337 = vector.broadcast %336 : f32 to vector<2x2x2xf32>
    %338 = arith.mulf %337, %335 : vector<2x2x2xf32>
    %339 = arith.addf %325, %338 : vector<2x2x2xf32>
    %c142 = arith.constant 142 : index
    %340 = memref.load %arg1[%c142] : memref<243xf32, #tpu.memory_space<smem>>
    %341 = vector.broadcast %340 : f32 to vector<2x2x2xf32>
    %342 = arith.mulf %341, %335 : vector<2x2x2xf32>
    %343 = arith.addf %329, %342 : vector<2x2x2xf32>
    %c223 = arith.constant 223 : index
    %344 = memref.load %arg1[%c223] : memref<243xf32, #tpu.memory_space<smem>>
    %345 = vector.broadcast %344 : f32 to vector<2x2x2xf32>
    %346 = arith.mulf %345, %335 : vector<2x2x2xf32>
    %347 = arith.addf %333, %346 : vector<2x2x2xf32>
    %348 = vector.extract_strided_slice %0 {offsets = [0, 0, 2, 2], sizes = [3, 2, 2, 2], strides = [1, 1, 1, 1]} : vector<3x4x4x4xf32> to vector<3x2x2x2xf32>
    %349 = vector.extract_strided_slice %348 {offsets = [0, 0, 0, 0], sizes = [1, 2, 2, 2], strides = [1, 1, 1, 1]} : vector<3x2x2x2xf32> to vector<1x2x2x2xf32>
    %350 = vector.shape_cast %349 : vector<1x2x2x2xf32> to vector<2x2x2xf32>
    %c8 = arith.constant 8 : index
    %351 = memref.load %arg1[%c8] : memref<243xf32, #tpu.memory_space<smem>>
    %352 = vector.broadcast %351 : f32 to vector<2x2x2xf32>
    %353 = arith.mulf %352, %350 : vector<2x2x2xf32>
    %354 = arith.addf %339, %353 : vector<2x2x2xf32>
    %c89 = arith.constant 89 : index
    %355 = memref.load %arg1[%c89] : memref<243xf32, #tpu.memory_space<smem>>
    %356 = vector.broadcast %355 : f32 to vector<2x2x2xf32>
    %357 = arith.mulf %356, %350 : vector<2x2x2xf32>
    %358 = arith.addf %343, %357 : vector<2x2x2xf32>
    %c170 = arith.constant 170 : index
    %359 = memref.load %arg1[%c170] : memref<243xf32, #tpu.memory_space<smem>>
    %360 = vector.broadcast %359 : f32 to vector<2x2x2xf32>
    %361 = arith.mulf %360, %350 : vector<2x2x2xf32>
    %362 = arith.addf %347, %361 : vector<2x2x2xf32>
    %363 = vector.extract_strided_slice %348 {offsets = [1, 0, 0, 0], sizes = [1, 2, 2, 2], strides = [1, 1, 1, 1]} : vector<3x2x2x2xf32> to vector<1x2x2x2xf32>
    %364 = vector.shape_cast %363 : vector<1x2x2x2xf32> to vector<2x2x2xf32>
    %c35 = arith.constant 35 : index
    %365 = memref.load %arg1[%c35] : memref<243xf32, #tpu.memory_space<smem>>
    %366 = vector.broadcast %365 : f32 to vector<2x2x2xf32>
    %367 = arith.mulf %366, %364 : vector<2x2x2xf32>
    %368 = arith.addf %354, %367 : vector<2x2x2xf32>
    %c116 = arith.constant 116 : index
    %369 = memref.load %arg1[%c116] : memref<243xf32, #tpu.memory_space<smem>>
    %370 = vector.broadcast %369 : f32 to vector<2x2x2xf32>
    %371 = arith.mulf %370, %364 : vector<2x2x2xf32>
    %372 = arith.addf %358, %371 : vector<2x2x2xf32>
    %c197 = arith.constant 197 : index
    %373 = memref.load %arg1[%c197] : memref<243xf32, #tpu.memory_space<smem>>
    %374 = vector.broadcast %373 : f32 to vector<2x2x2xf32>
    %375 = arith.mulf %374, %364 : vector<2x2x2xf32>
    %376 = arith.addf %362, %375 : vector<2x2x2xf32>
    %377 = vector.extract_strided_slice %348 {offsets = [2, 0, 0, 0], sizes = [1, 2, 2, 2], strides = [1, 1, 1, 1]} : vector<3x2x2x2xf32> to vector<1x2x2x2xf32>
    %378 = vector.shape_cast %377 : vector<1x2x2x2xf32> to vector<2x2x2xf32>
    %c62 = arith.constant 62 : index
    %379 = memref.load %arg1[%c62] : memref<243xf32, #tpu.memory_space<smem>>
    %380 = vector.broadcast %379 : f32 to vector<2x2x2xf32>
    %381 = arith.mulf %380, %378 : vector<2x2x2xf32>
    %382 = arith.addf %368, %381 : vector<2x2x2xf32>
    %c143 = arith.constant 143 : index
    %383 = memref.load %arg1[%c143] : memref<243xf32, #tpu.memory_space<smem>>
    %384 = vector.broadcast %383 : f32 to vector<2x2x2xf32>
    %385 = arith.mulf %384, %378 : vector<2x2x2xf32>
    %386 = arith.addf %372, %385 : vector<2x2x2xf32>
    %c224 = arith.constant 224 : index
    %387 = memref.load %arg1[%c224] : memref<243xf32, #tpu.memory_space<smem>>
    %388 = vector.broadcast %387 : f32 to vector<2x2x2xf32>
    %389 = arith.mulf %388, %378 : vector<2x2x2xf32>
    %390 = arith.addf %376, %389 : vector<2x2x2xf32>
    %391 = vector.extract_strided_slice %0 {offsets = [0, 1, 0, 0], sizes = [3, 2, 2, 2], strides = [1, 1, 1, 1]} : vector<3x4x4x4xf32> to vector<3x2x2x2xf32>
    %392 = vector.extract_strided_slice %391 {offsets = [0, 0, 0, 0], sizes = [1, 2, 2, 2], strides = [1, 1, 1, 1]} : vector<3x2x2x2xf32> to vector<1x2x2x2xf32>
    %393 = vector.shape_cast %392 : vector<1x2x2x2xf32> to vector<2x2x2xf32>
    %c9 = arith.constant 9 : index
    %394 = memref.load %arg1[%c9] : memref<243xf32, #tpu.memory_space<smem>>
    %395 = vector.broadcast %394 : f32 to vector<2x2x2xf32>
    %396 = arith.mulf %395, %393 : vector<2x2x2xf32>
    %397 = arith.addf %382, %396 : vector<2x2x2xf32>
    %c90 = arith.constant 90 : index
    %398 = memref.load %arg1[%c90] : memref<243xf32, #tpu.memory_space<smem>>
    %399 = vector.broadcast %398 : f32 to vector<2x2x2xf32>
    %400 = arith.mulf %399, %393 : vector<2x2x2xf32>
    %401 = arith.addf %386, %400 : vector<2x2x2xf32>
    %c171 = arith.constant 171 : index
    %402 = memref.load %arg1[%c171] : memref<243xf32, #tpu.memory_space<smem>>
    %403 = vector.broadcast %402 : f32 to vector<2x2x2xf32>
    %404 = arith.mulf %403, %393 : vector<2x2x2xf32>
    %405 = arith.addf %390, %404 : vector<2x2x2xf32>
    %406 = vector.extract_strided_slice %391 {offsets = [1, 0, 0, 0], sizes = [1, 2, 2, 2], strides = [1, 1, 1, 1]} : vector<3x2x2x2xf32> to vector<1x2x2x2xf32>
    %407 = vector.shape_cast %406 : vector<1x2x2x2xf32> to vector<2x2x2xf32>
    %c36 = arith.constant 36 : index
    %408 = memref.load %arg1[%c36] : memref<243xf32, #tpu.memory_space<smem>>
    %409 = vector.broadcast %408 : f32 to vector<2x2x2xf32>
    %410 = arith.mulf %409, %407 : vector<2x2x2xf32>
    %411 = arith.addf %397, %410 : vector<2x2x2xf32>
    %c117 = arith.constant 117 : index
    %412 = memref.load %arg1[%c117] : memref<243xf32, #tpu.memory_space<smem>>
    %413 = vector.broadcast %412 : f32 to vector<2x2x2xf32>
    %414 = arith.mulf %413, %407 : vector<2x2x2xf32>
    %415 = arith.addf %401, %414 : vector<2x2x2xf32>
    %c198 = arith.constant 198 : index
    %416 = memref.load %arg1[%c198] : memref<243xf32, #tpu.memory_space<smem>>
    %417 = vector.broadcast %416 : f32 to vector<2x2x2xf32>
    %418 = arith.mulf %417, %407 : vector<2x2x2xf32>
    %419 = arith.addf %405, %418 : vector<2x2x2xf32>
    %420 = vector.extract_strided_slice %391 {offsets = [2, 0, 0, 0], sizes = [1, 2, 2, 2], strides = [1, 1, 1, 1]} : vector<3x2x2x2xf32> to vector<1x2x2x2xf32>
    %421 = vector.shape_cast %420 : vector<1x2x2x2xf32> to vector<2x2x2xf32>
    %c63 = arith.constant 63 : index
    %422 = memref.load %arg1[%c63] : memref<243xf32, #tpu.memory_space<smem>>
    %423 = vector.broadcast %422 : f32 to vector<2x2x2xf32>
    %424 = arith.mulf %423, %421 : vector<2x2x2xf32>
    %425 = arith.addf %411, %424 : vector<2x2x2xf32>
    %c144 = arith.constant 144 : index
    %426 = memref.load %arg1[%c144] : memref<243xf32, #tpu.memory_space<smem>>
    %427 = vector.broadcast %426 : f32 to vector<2x2x2xf32>
    %428 = arith.mulf %427, %421 : vector<2x2x2xf32>
    %429 = arith.addf %415, %428 : vector<2x2x2xf32>
    %c225 = arith.constant 225 : index
    %430 = memref.load %arg1[%c225] : memref<243xf32, #tpu.memory_space<smem>>
    %431 = vector.broadcast %430 : f32 to vector<2x2x2xf32>
    %432 = arith.mulf %431, %421 : vector<2x2x2xf32>
    %433 = arith.addf %419, %432 : vector<2x2x2xf32>
    %434 = vector.extract_strided_slice %0 {offsets = [0, 1, 0, 1], sizes = [3, 2, 2, 2], strides = [1, 1, 1, 1]} : vector<3x4x4x4xf32> to vector<3x2x2x2xf32>
    %435 = vector.extract_strided_slice %434 {offsets = [0, 0, 0, 0], sizes = [1, 2, 2, 2], strides = [1, 1, 1, 1]} : vector<3x2x2x2xf32> to vector<1x2x2x2xf32>
    %436 = vector.shape_cast %435 : vector<1x2x2x2xf32> to vector<2x2x2xf32>
    %c10 = arith.constant 10 : index
    %437 = memref.load %arg1[%c10] : memref<243xf32, #tpu.memory_space<smem>>
    %438 = vector.broadcast %437 : f32 to vector<2x2x2xf32>
    %439 = arith.mulf %438, %436 : vector<2x2x2xf32>
    %440 = arith.addf %425, %439 : vector<2x2x2xf32>
    %c91 = arith.constant 91 : index
    %441 = memref.load %arg1[%c91] : memref<243xf32, #tpu.memory_space<smem>>
    %442 = vector.broadcast %441 : f32 to vector<2x2x2xf32>
    %443 = arith.mulf %442, %436 : vector<2x2x2xf32>
    %444 = arith.addf %429, %443 : vector<2x2x2xf32>
    %c172 = arith.constant 172 : index
    %445 = memref.load %arg1[%c172] : memref<243xf32, #tpu.memory_space<smem>>
    %446 = vector.broadcast %445 : f32 to vector<2x2x2xf32>
    %447 = arith.mulf %446, %436 : vector<2x2x2xf32>
    %448 = arith.addf %433, %447 : vector<2x2x2xf32>
    %449 = vector.extract_strided_slice %434 {offsets = [1, 0, 0, 0], sizes = [1, 2, 2, 2], strides = [1, 1, 1, 1]} : vector<3x2x2x2xf32> to vector<1x2x2x2xf32>
    %450 = vector.shape_cast %449 : vector<1x2x2x2xf32> to vector<2x2x2xf32>
    %c37 = arith.constant 37 : index
    %451 = memref.load %arg1[%c37] : memref<243xf32, #tpu.memory_space<smem>>
    %452 = vector.broadcast %451 : f32 to vector<2x2x2xf32>
    %453 = arith.mulf %452, %450 : vector<2x2x2xf32>
    %454 = arith.addf %440, %453 : vector<2x2x2xf32>
    %c118 = arith.constant 118 : index
    %455 = memref.load %arg1[%c118] : memref<243xf32, #tpu.memory_space<smem>>
    %456 = vector.broadcast %455 : f32 to vector<2x2x2xf32>
    %457 = arith.mulf %456, %450 : vector<2x2x2xf32>
    %458 = arith.addf %444, %457 : vector<2x2x2xf32>
    %c199 = arith.constant 199 : index
    %459 = memref.load %arg1[%c199] : memref<243xf32, #tpu.memory_space<smem>>
    %460 = vector.broadcast %459 : f32 to vector<2x2x2xf32>
    %461 = arith.mulf %460, %450 : vector<2x2x2xf32>
    %462 = arith.addf %448, %461 : vector<2x2x2xf32>
    %463 = vector.extract_strided_slice %434 {offsets = [2, 0, 0, 0], sizes = [1, 2, 2, 2], strides = [1, 1, 1, 1]} : vector<3x2x2x2xf32> to vector<1x2x2x2xf32>
    %464 = vector.shape_cast %463 : vector<1x2x2x2xf32> to vector<2x2x2xf32>
    %c64 = arith.constant 64 : index
    %465 = memref.load %arg1[%c64] : memref<243xf32, #tpu.memory_space<smem>>
    %466 = vector.broadcast %465 : f32 to vector<2x2x2xf32>
    %467 = arith.mulf %466, %464 : vector<2x2x2xf32>
    %468 = arith.addf %454, %467 : vector<2x2x2xf32>
    %c145 = arith.constant 145 : index
    %469 = memref.load %arg1[%c145] : memref<243xf32, #tpu.memory_space<smem>>
    %470 = vector.broadcast %469 : f32 to vector<2x2x2xf32>
    %471 = arith.mulf %470, %464 : vector<2x2x2xf32>
    %472 = arith.addf %458, %471 : vector<2x2x2xf32>
    %c226 = arith.constant 226 : index
    %473 = memref.load %arg1[%c226] : memref<243xf32, #tpu.memory_space<smem>>
    %474 = vector.broadcast %473 : f32 to vector<2x2x2xf32>
    %475 = arith.mulf %474, %464 : vector<2x2x2xf32>
    %476 = arith.addf %462, %475 : vector<2x2x2xf32>
    %477 = vector.extract_strided_slice %0 {offsets = [0, 1, 0, 2], sizes = [3, 2, 2, 2], strides = [1, 1, 1, 1]} : vector<3x4x4x4xf32> to vector<3x2x2x2xf32>
    %478 = vector.extract_strided_slice %477 {offsets = [0, 0, 0, 0], sizes = [1, 2, 2, 2], strides = [1, 1, 1, 1]} : vector<3x2x2x2xf32> to vector<1x2x2x2xf32>
    %479 = vector.shape_cast %478 : vector<1x2x2x2xf32> to vector<2x2x2xf32>
    %c11 = arith.constant 11 : index
    %480 = memref.load %arg1[%c11] : memref<243xf32, #tpu.memory_space<smem>>
    %481 = vector.broadcast %480 : f32 to vector<2x2x2xf32>
    %482 = arith.mulf %481, %479 : vector<2x2x2xf32>
    %483 = arith.addf %468, %482 : vector<2x2x2xf32>
    %c92 = arith.constant 92 : index
    %484 = memref.load %arg1[%c92] : memref<243xf32, #tpu.memory_space<smem>>
    %485 = vector.broadcast %484 : f32 to vector<2x2x2xf32>
    %486 = arith.mulf %485, %479 : vector<2x2x2xf32>
    %487 = arith.addf %472, %486 : vector<2x2x2xf32>
    %c173 = arith.constant 173 : index
    %488 = memref.load %arg1[%c173] : memref<243xf32, #tpu.memory_space<smem>>
    %489 = vector.broadcast %488 : f32 to vector<2x2x2xf32>
    %490 = arith.mulf %489, %479 : vector<2x2x2xf32>
    %491 = arith.addf %476, %490 : vector<2x2x2xf32>
    %492 = vector.extract_strided_slice %477 {offsets = [1, 0, 0, 0], sizes = [1, 2, 2, 2], strides = [1, 1, 1, 1]} : vector<3x2x2x2xf32> to vector<1x2x2x2xf32>
    %493 = vector.shape_cast %492 : vector<1x2x2x2xf32> to vector<2x2x2xf32>
    %c38 = arith.constant 38 : index
    %494 = memref.load %arg1[%c38] : memref<243xf32, #tpu.memory_space<smem>>
    %495 = vector.broadcast %494 : f32 to vector<2x2x2xf32>
    %496 = arith.mulf %495, %493 : vector<2x2x2xf32>
    %497 = arith.addf %483, %496 : vector<2x2x2xf32>
    %c119 = arith.constant 119 : index
    %498 = memref.load %arg1[%c119] : memref<243xf32, #tpu.memory_space<smem>>
    %499 = vector.broadcast %498 : f32 to vector<2x2x2xf32>
    %500 = arith.mulf %499, %493 : vector<2x2x2xf32>
    %501 = arith.addf %487, %500 : vector<2x2x2xf32>
    %c200 = arith.constant 200 : index
    %502 = memref.load %arg1[%c200] : memref<243xf32, #tpu.memory_space<smem>>
    %503 = vector.broadcast %502 : f32 to vector<2x2x2xf32>
    %504 = arith.mulf %503, %493 : vector<2x2x2xf32>
    %505 = arith.addf %491, %504 : vector<2x2x2xf32>
    %506 = vector.extract_strided_slice %477 {offsets = [2, 0, 0, 0], sizes = [1, 2, 2, 2], strides = [1, 1, 1, 1]} : vector<3x2x2x2xf32> to vector<1x2x2x2xf32>
    %507 = vector.shape_cast %506 : vector<1x2x2x2xf32> to vector<2x2x2xf32>
    %c65 = arith.constant 65 : index
    %508 = memref.load %arg1[%c65] : memref<243xf32, #tpu.memory_space<smem>>
    %509 = vector.broadcast %508 : f32 to vector<2x2x2xf32>
    %510 = arith.mulf %509, %507 : vector<2x2x2xf32>
    %511 = arith.addf %497, %510 : vector<2x2x2xf32>
    %c146 = arith.constant 146 : index
    %512 = memref.load %arg1[%c146] : memref<243xf32, #tpu.memory_space<smem>>
    %513 = vector.broadcast %512 : f32 to vector<2x2x2xf32>
    %514 = arith.mulf %513, %507 : vector<2x2x2xf32>
    %515 = arith.addf %501, %514 : vector<2x2x2xf32>
    %c227 = arith.constant 227 : index
    %516 = memref.load %arg1[%c227] : memref<243xf32, #tpu.memory_space<smem>>
    %517 = vector.broadcast %516 : f32 to vector<2x2x2xf32>
    %518 = arith.mulf %517, %507 : vector<2x2x2xf32>
    %519 = arith.addf %505, %518 : vector<2x2x2xf32>
    %520 = vector.extract_strided_slice %0 {offsets = [0, 1, 1, 0], sizes = [3, 2, 2, 2], strides = [1, 1, 1, 1]} : vector<3x4x4x4xf32> to vector<3x2x2x2xf32>
    %521 = vector.extract_strided_slice %520 {offsets = [0, 0, 0, 0], sizes = [1, 2, 2, 2], strides = [1, 1, 1, 1]} : vector<3x2x2x2xf32> to vector<1x2x2x2xf32>
    %522 = vector.shape_cast %521 : vector<1x2x2x2xf32> to vector<2x2x2xf32>
    %c12 = arith.constant 12 : index
    %523 = memref.load %arg1[%c12] : memref<243xf32, #tpu.memory_space<smem>>
    %524 = vector.broadcast %523 : f32 to vector<2x2x2xf32>
    %525 = arith.mulf %524, %522 : vector<2x2x2xf32>
    %526 = arith.addf %511, %525 : vector<2x2x2xf32>
    %c93 = arith.constant 93 : index
    %527 = memref.load %arg1[%c93] : memref<243xf32, #tpu.memory_space<smem>>
    %528 = vector.broadcast %527 : f32 to vector<2x2x2xf32>
    %529 = arith.mulf %528, %522 : vector<2x2x2xf32>
    %530 = arith.addf %515, %529 : vector<2x2x2xf32>
    %c174 = arith.constant 174 : index
    %531 = memref.load %arg1[%c174] : memref<243xf32, #tpu.memory_space<smem>>
    %532 = vector.broadcast %531 : f32 to vector<2x2x2xf32>
    %533 = arith.mulf %532, %522 : vector<2x2x2xf32>
    %534 = arith.addf %519, %533 : vector<2x2x2xf32>
    %535 = vector.extract_strided_slice %520 {offsets = [1, 0, 0, 0], sizes = [1, 2, 2, 2], strides = [1, 1, 1, 1]} : vector<3x2x2x2xf32> to vector<1x2x2x2xf32>
    %536 = vector.shape_cast %535 : vector<1x2x2x2xf32> to vector<2x2x2xf32>
    %c39 = arith.constant 39 : index
    %537 = memref.load %arg1[%c39] : memref<243xf32, #tpu.memory_space<smem>>
    %538 = vector.broadcast %537 : f32 to vector<2x2x2xf32>
    %539 = arith.mulf %538, %536 : vector<2x2x2xf32>
    %540 = arith.addf %526, %539 : vector<2x2x2xf32>
    %c120 = arith.constant 120 : index
    %541 = memref.load %arg1[%c120] : memref<243xf32, #tpu.memory_space<smem>>
    %542 = vector.broadcast %541 : f32 to vector<2x2x2xf32>
    %543 = arith.mulf %542, %536 : vector<2x2x2xf32>
    %544 = arith.addf %530, %543 : vector<2x2x2xf32>
    %c201 = arith.constant 201 : index
    %545 = memref.load %arg1[%c201] : memref<243xf32, #tpu.memory_space<smem>>
    %546 = vector.broadcast %545 : f32 to vector<2x2x2xf32>
    %547 = arith.mulf %546, %536 : vector<2x2x2xf32>
    %548 = arith.addf %534, %547 : vector<2x2x2xf32>
    %549 = vector.extract_strided_slice %520 {offsets = [2, 0, 0, 0], sizes = [1, 2, 2, 2], strides = [1, 1, 1, 1]} : vector<3x2x2x2xf32> to vector<1x2x2x2xf32>
    %550 = vector.shape_cast %549 : vector<1x2x2x2xf32> to vector<2x2x2xf32>
    %c66 = arith.constant 66 : index
    %551 = memref.load %arg1[%c66] : memref<243xf32, #tpu.memory_space<smem>>
    %552 = vector.broadcast %551 : f32 to vector<2x2x2xf32>
    %553 = arith.mulf %552, %550 : vector<2x2x2xf32>
    %554 = arith.addf %540, %553 : vector<2x2x2xf32>
    %c147 = arith.constant 147 : index
    %555 = memref.load %arg1[%c147] : memref<243xf32, #tpu.memory_space<smem>>
    %556 = vector.broadcast %555 : f32 to vector<2x2x2xf32>
    %557 = arith.mulf %556, %550 : vector<2x2x2xf32>
    %558 = arith.addf %544, %557 : vector<2x2x2xf32>
    %c228 = arith.constant 228 : index
    %559 = memref.load %arg1[%c228] : memref<243xf32, #tpu.memory_space<smem>>
    %560 = vector.broadcast %559 : f32 to vector<2x2x2xf32>
    %561 = arith.mulf %560, %550 : vector<2x2x2xf32>
    %562 = arith.addf %548, %561 : vector<2x2x2xf32>
    %563 = vector.extract_strided_slice %0 {offsets = [0, 1, 1, 1], sizes = [3, 2, 2, 2], strides = [1, 1, 1, 1]} : vector<3x4x4x4xf32> to vector<3x2x2x2xf32>
    %564 = vector.extract_strided_slice %563 {offsets = [0, 0, 0, 0], sizes = [1, 2, 2, 2], strides = [1, 1, 1, 1]} : vector<3x2x2x2xf32> to vector<1x2x2x2xf32>
    %565 = vector.shape_cast %564 : vector<1x2x2x2xf32> to vector<2x2x2xf32>
    %c13 = arith.constant 13 : index
    %566 = memref.load %arg1[%c13] : memref<243xf32, #tpu.memory_space<smem>>
    %567 = vector.broadcast %566 : f32 to vector<2x2x2xf32>
    %568 = arith.mulf %567, %565 : vector<2x2x2xf32>
    %569 = arith.addf %554, %568 : vector<2x2x2xf32>
    %c94 = arith.constant 94 : index
    %570 = memref.load %arg1[%c94] : memref<243xf32, #tpu.memory_space<smem>>
    %571 = vector.broadcast %570 : f32 to vector<2x2x2xf32>
    %572 = arith.mulf %571, %565 : vector<2x2x2xf32>
    %573 = arith.addf %558, %572 : vector<2x2x2xf32>
    %c175 = arith.constant 175 : index
    %574 = memref.load %arg1[%c175] : memref<243xf32, #tpu.memory_space<smem>>
    %575 = vector.broadcast %574 : f32 to vector<2x2x2xf32>
    %576 = arith.mulf %575, %565 : vector<2x2x2xf32>
    %577 = arith.addf %562, %576 : vector<2x2x2xf32>
    %578 = vector.extract_strided_slice %563 {offsets = [1, 0, 0, 0], sizes = [1, 2, 2, 2], strides = [1, 1, 1, 1]} : vector<3x2x2x2xf32> to vector<1x2x2x2xf32>
    %579 = vector.shape_cast %578 : vector<1x2x2x2xf32> to vector<2x2x2xf32>
    %c40 = arith.constant 40 : index
    %580 = memref.load %arg1[%c40] : memref<243xf32, #tpu.memory_space<smem>>
    %581 = vector.broadcast %580 : f32 to vector<2x2x2xf32>
    %582 = arith.mulf %581, %579 : vector<2x2x2xf32>
    %583 = arith.addf %569, %582 : vector<2x2x2xf32>
    %c121 = arith.constant 121 : index
    %584 = memref.load %arg1[%c121] : memref<243xf32, #tpu.memory_space<smem>>
    %585 = vector.broadcast %584 : f32 to vector<2x2x2xf32>
    %586 = arith.mulf %585, %579 : vector<2x2x2xf32>
    %587 = arith.addf %573, %586 : vector<2x2x2xf32>
    %c202 = arith.constant 202 : index
    %588 = memref.load %arg1[%c202] : memref<243xf32, #tpu.memory_space<smem>>
    %589 = vector.broadcast %588 : f32 to vector<2x2x2xf32>
    %590 = arith.mulf %589, %579 : vector<2x2x2xf32>
    %591 = arith.addf %577, %590 : vector<2x2x2xf32>
    %592 = vector.extract_strided_slice %563 {offsets = [2, 0, 0, 0], sizes = [1, 2, 2, 2], strides = [1, 1, 1, 1]} : vector<3x2x2x2xf32> to vector<1x2x2x2xf32>
    %593 = vector.shape_cast %592 : vector<1x2x2x2xf32> to vector<2x2x2xf32>
    %c67 = arith.constant 67 : index
    %594 = memref.load %arg1[%c67] : memref<243xf32, #tpu.memory_space<smem>>
    %595 = vector.broadcast %594 : f32 to vector<2x2x2xf32>
    %596 = arith.mulf %595, %593 : vector<2x2x2xf32>
    %597 = arith.addf %583, %596 : vector<2x2x2xf32>
    %c148 = arith.constant 148 : index
    %598 = memref.load %arg1[%c148] : memref<243xf32, #tpu.memory_space<smem>>
    %599 = vector.broadcast %598 : f32 to vector<2x2x2xf32>
    %600 = arith.mulf %599, %593 : vector<2x2x2xf32>
    %601 = arith.addf %587, %600 : vector<2x2x2xf32>
    %c229 = arith.constant 229 : index
    %602 = memref.load %arg1[%c229] : memref<243xf32, #tpu.memory_space<smem>>
    %603 = vector.broadcast %602 : f32 to vector<2x2x2xf32>
    %604 = arith.mulf %603, %593 : vector<2x2x2xf32>
    %605 = arith.addf %591, %604 : vector<2x2x2xf32>
    %606 = vector.extract_strided_slice %0 {offsets = [0, 1, 1, 2], sizes = [3, 2, 2, 2], strides = [1, 1, 1, 1]} : vector<3x4x4x4xf32> to vector<3x2x2x2xf32>
    %607 = vector.extract_strided_slice %606 {offsets = [0, 0, 0, 0], sizes = [1, 2, 2, 2], strides = [1, 1, 1, 1]} : vector<3x2x2x2xf32> to vector<1x2x2x2xf32>
    %608 = vector.shape_cast %607 : vector<1x2x2x2xf32> to vector<2x2x2xf32>
    %c14 = arith.constant 14 : index
    %609 = memref.load %arg1[%c14] : memref<243xf32, #tpu.memory_space<smem>>
    %610 = vector.broadcast %609 : f32 to vector<2x2x2xf32>
    %611 = arith.mulf %610, %608 : vector<2x2x2xf32>
    %612 = arith.addf %597, %611 : vector<2x2x2xf32>
    %c95 = arith.constant 95 : index
    %613 = memref.load %arg1[%c95] : memref<243xf32, #tpu.memory_space<smem>>
    %614 = vector.broadcast %613 : f32 to vector<2x2x2xf32>
    %615 = arith.mulf %614, %608 : vector<2x2x2xf32>
    %616 = arith.addf %601, %615 : vector<2x2x2xf32>
    %c176 = arith.constant 176 : index
    %617 = memref.load %arg1[%c176] : memref<243xf32, #tpu.memory_space<smem>>
    %618 = vector.broadcast %617 : f32 to vector<2x2x2xf32>
    %619 = arith.mulf %618, %608 : vector<2x2x2xf32>
    %620 = arith.addf %605, %619 : vector<2x2x2xf32>
    %621 = vector.extract_strided_slice %606 {offsets = [1, 0, 0, 0], sizes = [1, 2, 2, 2], strides = [1, 1, 1, 1]} : vector<3x2x2x2xf32> to vector<1x2x2x2xf32>
    %622 = vector.shape_cast %621 : vector<1x2x2x2xf32> to vector<2x2x2xf32>
    %c41 = arith.constant 41 : index
    %623 = memref.load %arg1[%c41] : memref<243xf32, #tpu.memory_space<smem>>
    %624 = vector.broadcast %623 : f32 to vector<2x2x2xf32>
    %625 = arith.mulf %624, %622 : vector<2x2x2xf32>
    %626 = arith.addf %612, %625 : vector<2x2x2xf32>
    %c122 = arith.constant 122 : index
    %627 = memref.load %arg1[%c122] : memref<243xf32, #tpu.memory_space<smem>>
    %628 = vector.broadcast %627 : f32 to vector<2x2x2xf32>
    %629 = arith.mulf %628, %622 : vector<2x2x2xf32>
    %630 = arith.addf %616, %629 : vector<2x2x2xf32>
    %c203 = arith.constant 203 : index
    %631 = memref.load %arg1[%c203] : memref<243xf32, #tpu.memory_space<smem>>
    %632 = vector.broadcast %631 : f32 to vector<2x2x2xf32>
    %633 = arith.mulf %632, %622 : vector<2x2x2xf32>
    %634 = arith.addf %620, %633 : vector<2x2x2xf32>
    %635 = vector.extract_strided_slice %606 {offsets = [2, 0, 0, 0], sizes = [1, 2, 2, 2], strides = [1, 1, 1, 1]} : vector<3x2x2x2xf32> to vector<1x2x2x2xf32>
    %636 = vector.shape_cast %635 : vector<1x2x2x2xf32> to vector<2x2x2xf32>
    %c68 = arith.constant 68 : index
    %637 = memref.load %arg1[%c68] : memref<243xf32, #tpu.memory_space<smem>>
    %638 = vector.broadcast %637 : f32 to vector<2x2x2xf32>
    %639 = arith.mulf %638, %636 : vector<2x2x2xf32>
    %640 = arith.addf %626, %639 : vector<2x2x2xf32>
    %c149 = arith.constant 149 : index
    %641 = memref.load %arg1[%c149] : memref<243xf32, #tpu.memory_space<smem>>
    %642 = vector.broadcast %641 : f32 to vector<2x2x2xf32>
    %643 = arith.mulf %642, %636 : vector<2x2x2xf32>
    %644 = arith.addf %630, %643 : vector<2x2x2xf32>
    %c230 = arith.constant 230 : index
    %645 = memref.load %arg1[%c230] : memref<243xf32, #tpu.memory_space<smem>>
    %646 = vector.broadcast %645 : f32 to vector<2x2x2xf32>
    %647 = arith.mulf %646, %636 : vector<2x2x2xf32>
    %648 = arith.addf %634, %647 : vector<2x2x2xf32>
    %649 = vector.extract_strided_slice %0 {offsets = [0, 1, 2, 0], sizes = [3, 2, 2, 2], strides = [1, 1, 1, 1]} : vector<3x4x4x4xf32> to vector<3x2x2x2xf32>
    %650 = vector.extract_strided_slice %649 {offsets = [0, 0, 0, 0], sizes = [1, 2, 2, 2], strides = [1, 1, 1, 1]} : vector<3x2x2x2xf32> to vector<1x2x2x2xf32>
    %651 = vector.shape_cast %650 : vector<1x2x2x2xf32> to vector<2x2x2xf32>
    %c15 = arith.constant 15 : index
    %652 = memref.load %arg1[%c15] : memref<243xf32, #tpu.memory_space<smem>>
    %653 = vector.broadcast %652 : f32 to vector<2x2x2xf32>
    %654 = arith.mulf %653, %651 : vector<2x2x2xf32>
    %655 = arith.addf %640, %654 : vector<2x2x2xf32>
    %c96 = arith.constant 96 : index
    %656 = memref.load %arg1[%c96] : memref<243xf32, #tpu.memory_space<smem>>
    %657 = vector.broadcast %656 : f32 to vector<2x2x2xf32>
    %658 = arith.mulf %657, %651 : vector<2x2x2xf32>
    %659 = arith.addf %644, %658 : vector<2x2x2xf32>
    %c177 = arith.constant 177 : index
    %660 = memref.load %arg1[%c177] : memref<243xf32, #tpu.memory_space<smem>>
    %661 = vector.broadcast %660 : f32 to vector<2x2x2xf32>
    %662 = arith.mulf %661, %651 : vector<2x2x2xf32>
    %663 = arith.addf %648, %662 : vector<2x2x2xf32>
    %664 = vector.extract_strided_slice %649 {offsets = [1, 0, 0, 0], sizes = [1, 2, 2, 2], strides = [1, 1, 1, 1]} : vector<3x2x2x2xf32> to vector<1x2x2x2xf32>
    %665 = vector.shape_cast %664 : vector<1x2x2x2xf32> to vector<2x2x2xf32>
    %c42 = arith.constant 42 : index
    %666 = memref.load %arg1[%c42] : memref<243xf32, #tpu.memory_space<smem>>
    %667 = vector.broadcast %666 : f32 to vector<2x2x2xf32>
    %668 = arith.mulf %667, %665 : vector<2x2x2xf32>
    %669 = arith.addf %655, %668 : vector<2x2x2xf32>
    %c123 = arith.constant 123 : index
    %670 = memref.load %arg1[%c123] : memref<243xf32, #tpu.memory_space<smem>>
    %671 = vector.broadcast %670 : f32 to vector<2x2x2xf32>
    %672 = arith.mulf %671, %665 : vector<2x2x2xf32>
    %673 = arith.addf %659, %672 : vector<2x2x2xf32>
    %c204 = arith.constant 204 : index
    %674 = memref.load %arg1[%c204] : memref<243xf32, #tpu.memory_space<smem>>
    %675 = vector.broadcast %674 : f32 to vector<2x2x2xf32>
    %676 = arith.mulf %675, %665 : vector<2x2x2xf32>
    %677 = arith.addf %663, %676 : vector<2x2x2xf32>
    %678 = vector.extract_strided_slice %649 {offsets = [2, 0, 0, 0], sizes = [1, 2, 2, 2], strides = [1, 1, 1, 1]} : vector<3x2x2x2xf32> to vector<1x2x2x2xf32>
    %679 = vector.shape_cast %678 : vector<1x2x2x2xf32> to vector<2x2x2xf32>
    %c69 = arith.constant 69 : index
    %680 = memref.load %arg1[%c69] : memref<243xf32, #tpu.memory_space<smem>>
    %681 = vector.broadcast %680 : f32 to vector<2x2x2xf32>
    %682 = arith.mulf %681, %679 : vector<2x2x2xf32>
    %683 = arith.addf %669, %682 : vector<2x2x2xf32>
    %c150 = arith.constant 150 : index
    %684 = memref.load %arg1[%c150] : memref<243xf32, #tpu.memory_space<smem>>
    %685 = vector.broadcast %684 : f32 to vector<2x2x2xf32>
    %686 = arith.mulf %685, %679 : vector<2x2x2xf32>
    %687 = arith.addf %673, %686 : vector<2x2x2xf32>
    %c231 = arith.constant 231 : index
    %688 = memref.load %arg1[%c231] : memref<243xf32, #tpu.memory_space<smem>>
    %689 = vector.broadcast %688 : f32 to vector<2x2x2xf32>
    %690 = arith.mulf %689, %679 : vector<2x2x2xf32>
    %691 = arith.addf %677, %690 : vector<2x2x2xf32>
    %692 = vector.extract_strided_slice %0 {offsets = [0, 1, 2, 1], sizes = [3, 2, 2, 2], strides = [1, 1, 1, 1]} : vector<3x4x4x4xf32> to vector<3x2x2x2xf32>
    %693 = vector.extract_strided_slice %692 {offsets = [0, 0, 0, 0], sizes = [1, 2, 2, 2], strides = [1, 1, 1, 1]} : vector<3x2x2x2xf32> to vector<1x2x2x2xf32>
    %694 = vector.shape_cast %693 : vector<1x2x2x2xf32> to vector<2x2x2xf32>
    %c16 = arith.constant 16 : index
    %695 = memref.load %arg1[%c16] : memref<243xf32, #tpu.memory_space<smem>>
    %696 = vector.broadcast %695 : f32 to vector<2x2x2xf32>
    %697 = arith.mulf %696, %694 : vector<2x2x2xf32>
    %698 = arith.addf %683, %697 : vector<2x2x2xf32>
    %c97 = arith.constant 97 : index
    %699 = memref.load %arg1[%c97] : memref<243xf32, #tpu.memory_space<smem>>
    %700 = vector.broadcast %699 : f32 to vector<2x2x2xf32>
    %701 = arith.mulf %700, %694 : vector<2x2x2xf32>
    %702 = arith.addf %687, %701 : vector<2x2x2xf32>
    %c178 = arith.constant 178 : index
    %703 = memref.load %arg1[%c178] : memref<243xf32, #tpu.memory_space<smem>>
    %704 = vector.broadcast %703 : f32 to vector<2x2x2xf32>
    %705 = arith.mulf %704, %694 : vector<2x2x2xf32>
    %706 = arith.addf %691, %705 : vector<2x2x2xf32>
    %707 = vector.extract_strided_slice %692 {offsets = [1, 0, 0, 0], sizes = [1, 2, 2, 2], strides = [1, 1, 1, 1]} : vector<3x2x2x2xf32> to vector<1x2x2x2xf32>
    %708 = vector.shape_cast %707 : vector<1x2x2x2xf32> to vector<2x2x2xf32>
    %c43 = arith.constant 43 : index
    %709 = memref.load %arg1[%c43] : memref<243xf32, #tpu.memory_space<smem>>
    %710 = vector.broadcast %709 : f32 to vector<2x2x2xf32>
    %711 = arith.mulf %710, %708 : vector<2x2x2xf32>
    %712 = arith.addf %698, %711 : vector<2x2x2xf32>
    %c124 = arith.constant 124 : index
    %713 = memref.load %arg1[%c124] : memref<243xf32, #tpu.memory_space<smem>>
    %714 = vector.broadcast %713 : f32 to vector<2x2x2xf32>
    %715 = arith.mulf %714, %708 : vector<2x2x2xf32>
    %716 = arith.addf %702, %715 : vector<2x2x2xf32>
    %c205 = arith.constant 205 : index
    %717 = memref.load %arg1[%c205] : memref<243xf32, #tpu.memory_space<smem>>
    %718 = vector.broadcast %717 : f32 to vector<2x2x2xf32>
    %719 = arith.mulf %718, %708 : vector<2x2x2xf32>
    %720 = arith.addf %706, %719 : vector<2x2x2xf32>
    %721 = vector.extract_strided_slice %692 {offsets = [2, 0, 0, 0], sizes = [1, 2, 2, 2], strides = [1, 1, 1, 1]} : vector<3x2x2x2xf32> to vector<1x2x2x2xf32>
    %722 = vector.shape_cast %721 : vector<1x2x2x2xf32> to vector<2x2x2xf32>
    %c70 = arith.constant 70 : index
    %723 = memref.load %arg1[%c70] : memref<243xf32, #tpu.memory_space<smem>>
    %724 = vector.broadcast %723 : f32 to vector<2x2x2xf32>
    %725 = arith.mulf %724, %722 : vector<2x2x2xf32>
    %726 = arith.addf %712, %725 : vector<2x2x2xf32>
    %c151 = arith.constant 151 : index
    %727 = memref.load %arg1[%c151] : memref<243xf32, #tpu.memory_space<smem>>
    %728 = vector.broadcast %727 : f32 to vector<2x2x2xf32>
    %729 = arith.mulf %728, %722 : vector<2x2x2xf32>
    %730 = arith.addf %716, %729 : vector<2x2x2xf32>
    %c232 = arith.constant 232 : index
    %731 = memref.load %arg1[%c232] : memref<243xf32, #tpu.memory_space<smem>>
    %732 = vector.broadcast %731 : f32 to vector<2x2x2xf32>
    %733 = arith.mulf %732, %722 : vector<2x2x2xf32>
    %734 = arith.addf %720, %733 : vector<2x2x2xf32>
    %735 = vector.extract_strided_slice %0 {offsets = [0, 1, 2, 2], sizes = [3, 2, 2, 2], strides = [1, 1, 1, 1]} : vector<3x4x4x4xf32> to vector<3x2x2x2xf32>
    %736 = vector.extract_strided_slice %735 {offsets = [0, 0, 0, 0], sizes = [1, 2, 2, 2], strides = [1, 1, 1, 1]} : vector<3x2x2x2xf32> to vector<1x2x2x2xf32>
    %737 = vector.shape_cast %736 : vector<1x2x2x2xf32> to vector<2x2x2xf32>
    %c17 = arith.constant 17 : index
    %738 = memref.load %arg1[%c17] : memref<243xf32, #tpu.memory_space<smem>>
    %739 = vector.broadcast %738 : f32 to vector<2x2x2xf32>
    %740 = arith.mulf %739, %737 : vector<2x2x2xf32>
    %741 = arith.addf %726, %740 : vector<2x2x2xf32>
    %c98 = arith.constant 98 : index
    %742 = memref.load %arg1[%c98] : memref<243xf32, #tpu.memory_space<smem>>
    %743 = vector.broadcast %742 : f32 to vector<2x2x2xf32>
    %744 = arith.mulf %743, %737 : vector<2x2x2xf32>
    %745 = arith.addf %730, %744 : vector<2x2x2xf32>
    %c179 = arith.constant 179 : index
    %746 = memref.load %arg1[%c179] : memref<243xf32, #tpu.memory_space<smem>>
    %747 = vector.broadcast %746 : f32 to vector<2x2x2xf32>
    %748 = arith.mulf %747, %737 : vector<2x2x2xf32>
    %749 = arith.addf %734, %748 : vector<2x2x2xf32>
    %750 = vector.extract_strided_slice %735 {offsets = [1, 0, 0, 0], sizes = [1, 2, 2, 2], strides = [1, 1, 1, 1]} : vector<3x2x2x2xf32> to vector<1x2x2x2xf32>
    %751 = vector.shape_cast %750 : vector<1x2x2x2xf32> to vector<2x2x2xf32>
    %c44 = arith.constant 44 : index
    %752 = memref.load %arg1[%c44] : memref<243xf32, #tpu.memory_space<smem>>
    %753 = vector.broadcast %752 : f32 to vector<2x2x2xf32>
    %754 = arith.mulf %753, %751 : vector<2x2x2xf32>
    %755 = arith.addf %741, %754 : vector<2x2x2xf32>
    %c125 = arith.constant 125 : index
    %756 = memref.load %arg1[%c125] : memref<243xf32, #tpu.memory_space<smem>>
    %757 = vector.broadcast %756 : f32 to vector<2x2x2xf32>
    %758 = arith.mulf %757, %751 : vector<2x2x2xf32>
    %759 = arith.addf %745, %758 : vector<2x2x2xf32>
    %c206 = arith.constant 206 : index
    %760 = memref.load %arg1[%c206] : memref<243xf32, #tpu.memory_space<smem>>
    %761 = vector.broadcast %760 : f32 to vector<2x2x2xf32>
    %762 = arith.mulf %761, %751 : vector<2x2x2xf32>
    %763 = arith.addf %749, %762 : vector<2x2x2xf32>
    %764 = vector.extract_strided_slice %735 {offsets = [2, 0, 0, 0], sizes = [1, 2, 2, 2], strides = [1, 1, 1, 1]} : vector<3x2x2x2xf32> to vector<1x2x2x2xf32>
    %765 = vector.shape_cast %764 : vector<1x2x2x2xf32> to vector<2x2x2xf32>
    %c71 = arith.constant 71 : index
    %766 = memref.load %arg1[%c71] : memref<243xf32, #tpu.memory_space<smem>>
    %767 = vector.broadcast %766 : f32 to vector<2x2x2xf32>
    %768 = arith.mulf %767, %765 : vector<2x2x2xf32>
    %769 = arith.addf %755, %768 : vector<2x2x2xf32>
    %c152 = arith.constant 152 : index
    %770 = memref.load %arg1[%c152] : memref<243xf32, #tpu.memory_space<smem>>
    %771 = vector.broadcast %770 : f32 to vector<2x2x2xf32>
    %772 = arith.mulf %771, %765 : vector<2x2x2xf32>
    %773 = arith.addf %759, %772 : vector<2x2x2xf32>
    %c233 = arith.constant 233 : index
    %774 = memref.load %arg1[%c233] : memref<243xf32, #tpu.memory_space<smem>>
    %775 = vector.broadcast %774 : f32 to vector<2x2x2xf32>
    %776 = arith.mulf %775, %765 : vector<2x2x2xf32>
    %777 = arith.addf %763, %776 : vector<2x2x2xf32>
    %778 = vector.extract_strided_slice %0 {offsets = [0, 2, 0, 0], sizes = [3, 2, 2, 2], strides = [1, 1, 1, 1]} : vector<3x4x4x4xf32> to vector<3x2x2x2xf32>
    %779 = vector.extract_strided_slice %778 {offsets = [0, 0, 0, 0], sizes = [1, 2, 2, 2], strides = [1, 1, 1, 1]} : vector<3x2x2x2xf32> to vector<1x2x2x2xf32>
    %780 = vector.shape_cast %779 : vector<1x2x2x2xf32> to vector<2x2x2xf32>
    %c18 = arith.constant 18 : index
    %781 = memref.load %arg1[%c18] : memref<243xf32, #tpu.memory_space<smem>>
    %782 = vector.broadcast %781 : f32 to vector<2x2x2xf32>
    %783 = arith.mulf %782, %780 : vector<2x2x2xf32>
    %784 = arith.addf %769, %783 : vector<2x2x2xf32>
    %c99 = arith.constant 99 : index
    %785 = memref.load %arg1[%c99] : memref<243xf32, #tpu.memory_space<smem>>
    %786 = vector.broadcast %785 : f32 to vector<2x2x2xf32>
    %787 = arith.mulf %786, %780 : vector<2x2x2xf32>
    %788 = arith.addf %773, %787 : vector<2x2x2xf32>
    %c180 = arith.constant 180 : index
    %789 = memref.load %arg1[%c180] : memref<243xf32, #tpu.memory_space<smem>>
    %790 = vector.broadcast %789 : f32 to vector<2x2x2xf32>
    %791 = arith.mulf %790, %780 : vector<2x2x2xf32>
    %792 = arith.addf %777, %791 : vector<2x2x2xf32>
    %793 = vector.extract_strided_slice %778 {offsets = [1, 0, 0, 0], sizes = [1, 2, 2, 2], strides = [1, 1, 1, 1]} : vector<3x2x2x2xf32> to vector<1x2x2x2xf32>
    %794 = vector.shape_cast %793 : vector<1x2x2x2xf32> to vector<2x2x2xf32>
    %c45 = arith.constant 45 : index
    %795 = memref.load %arg1[%c45] : memref<243xf32, #tpu.memory_space<smem>>
    %796 = vector.broadcast %795 : f32 to vector<2x2x2xf32>
    %797 = arith.mulf %796, %794 : vector<2x2x2xf32>
    %798 = arith.addf %784, %797 : vector<2x2x2xf32>
    %c126 = arith.constant 126 : index
    %799 = memref.load %arg1[%c126] : memref<243xf32, #tpu.memory_space<smem>>
    %800 = vector.broadcast %799 : f32 to vector<2x2x2xf32>
    %801 = arith.mulf %800, %794 : vector<2x2x2xf32>
    %802 = arith.addf %788, %801 : vector<2x2x2xf32>
    %c207 = arith.constant 207 : index
    %803 = memref.load %arg1[%c207] : memref<243xf32, #tpu.memory_space<smem>>
    %804 = vector.broadcast %803 : f32 to vector<2x2x2xf32>
    %805 = arith.mulf %804, %794 : vector<2x2x2xf32>
    %806 = arith.addf %792, %805 : vector<2x2x2xf32>
    %807 = vector.extract_strided_slice %778 {offsets = [2, 0, 0, 0], sizes = [1, 2, 2, 2], strides = [1, 1, 1, 1]} : vector<3x2x2x2xf32> to vector<1x2x2x2xf32>
    %808 = vector.shape_cast %807 : vector<1x2x2x2xf32> to vector<2x2x2xf32>
    %c72 = arith.constant 72 : index
    %809 = memref.load %arg1[%c72] : memref<243xf32, #tpu.memory_space<smem>>
    %810 = vector.broadcast %809 : f32 to vector<2x2x2xf32>
    %811 = arith.mulf %810, %808 : vector<2x2x2xf32>
    %812 = arith.addf %798, %811 : vector<2x2x2xf32>
    %c153 = arith.constant 153 : index
    %813 = memref.load %arg1[%c153] : memref<243xf32, #tpu.memory_space<smem>>
    %814 = vector.broadcast %813 : f32 to vector<2x2x2xf32>
    %815 = arith.mulf %814, %808 : vector<2x2x2xf32>
    %816 = arith.addf %802, %815 : vector<2x2x2xf32>
    %c234 = arith.constant 234 : index
    %817 = memref.load %arg1[%c234] : memref<243xf32, #tpu.memory_space<smem>>
    %818 = vector.broadcast %817 : f32 to vector<2x2x2xf32>
    %819 = arith.mulf %818, %808 : vector<2x2x2xf32>
    %820 = arith.addf %806, %819 : vector<2x2x2xf32>
    %821 = vector.extract_strided_slice %0 {offsets = [0, 2, 0, 1], sizes = [3, 2, 2, 2], strides = [1, 1, 1, 1]} : vector<3x4x4x4xf32> to vector<3x2x2x2xf32>
    %822 = vector.extract_strided_slice %821 {offsets = [0, 0, 0, 0], sizes = [1, 2, 2, 2], strides = [1, 1, 1, 1]} : vector<3x2x2x2xf32> to vector<1x2x2x2xf32>
    %823 = vector.shape_cast %822 : vector<1x2x2x2xf32> to vector<2x2x2xf32>
    %c19 = arith.constant 19 : index
    %824 = memref.load %arg1[%c19] : memref<243xf32, #tpu.memory_space<smem>>
    %825 = vector.broadcast %824 : f32 to vector<2x2x2xf32>
    %826 = arith.mulf %825, %823 : vector<2x2x2xf32>
    %827 = arith.addf %812, %826 : vector<2x2x2xf32>
    %c100 = arith.constant 100 : index
    %828 = memref.load %arg1[%c100] : memref<243xf32, #tpu.memory_space<smem>>
    %829 = vector.broadcast %828 : f32 to vector<2x2x2xf32>
    %830 = arith.mulf %829, %823 : vector<2x2x2xf32>
    %831 = arith.addf %816, %830 : vector<2x2x2xf32>
    %c181 = arith.constant 181 : index
    %832 = memref.load %arg1[%c181] : memref<243xf32, #tpu.memory_space<smem>>
    %833 = vector.broadcast %832 : f32 to vector<2x2x2xf32>
    %834 = arith.mulf %833, %823 : vector<2x2x2xf32>
    %835 = arith.addf %820, %834 : vector<2x2x2xf32>
    %836 = vector.extract_strided_slice %821 {offsets = [1, 0, 0, 0], sizes = [1, 2, 2, 2], strides = [1, 1, 1, 1]} : vector<3x2x2x2xf32> to vector<1x2x2x2xf32>
    %837 = vector.shape_cast %836 : vector<1x2x2x2xf32> to vector<2x2x2xf32>
    %c46 = arith.constant 46 : index
    %838 = memref.load %arg1[%c46] : memref<243xf32, #tpu.memory_space<smem>>
    %839 = vector.broadcast %838 : f32 to vector<2x2x2xf32>
    %840 = arith.mulf %839, %837 : vector<2x2x2xf32>
    %841 = arith.addf %827, %840 : vector<2x2x2xf32>
    %c127 = arith.constant 127 : index
    %842 = memref.load %arg1[%c127] : memref<243xf32, #tpu.memory_space<smem>>
    %843 = vector.broadcast %842 : f32 to vector<2x2x2xf32>
    %844 = arith.mulf %843, %837 : vector<2x2x2xf32>
    %845 = arith.addf %831, %844 : vector<2x2x2xf32>
    %c208 = arith.constant 208 : index
    %846 = memref.load %arg1[%c208] : memref<243xf32, #tpu.memory_space<smem>>
    %847 = vector.broadcast %846 : f32 to vector<2x2x2xf32>
    %848 = arith.mulf %847, %837 : vector<2x2x2xf32>
    %849 = arith.addf %835, %848 : vector<2x2x2xf32>
    %850 = vector.extract_strided_slice %821 {offsets = [2, 0, 0, 0], sizes = [1, 2, 2, 2], strides = [1, 1, 1, 1]} : vector<3x2x2x2xf32> to vector<1x2x2x2xf32>
    %851 = vector.shape_cast %850 : vector<1x2x2x2xf32> to vector<2x2x2xf32>
    %c73 = arith.constant 73 : index
    %852 = memref.load %arg1[%c73] : memref<243xf32, #tpu.memory_space<smem>>
    %853 = vector.broadcast %852 : f32 to vector<2x2x2xf32>
    %854 = arith.mulf %853, %851 : vector<2x2x2xf32>
    %855 = arith.addf %841, %854 : vector<2x2x2xf32>
    %c154 = arith.constant 154 : index
    %856 = memref.load %arg1[%c154] : memref<243xf32, #tpu.memory_space<smem>>
    %857 = vector.broadcast %856 : f32 to vector<2x2x2xf32>
    %858 = arith.mulf %857, %851 : vector<2x2x2xf32>
    %859 = arith.addf %845, %858 : vector<2x2x2xf32>
    %c235 = arith.constant 235 : index
    %860 = memref.load %arg1[%c235] : memref<243xf32, #tpu.memory_space<smem>>
    %861 = vector.broadcast %860 : f32 to vector<2x2x2xf32>
    %862 = arith.mulf %861, %851 : vector<2x2x2xf32>
    %863 = arith.addf %849, %862 : vector<2x2x2xf32>
    %864 = vector.extract_strided_slice %0 {offsets = [0, 2, 0, 2], sizes = [3, 2, 2, 2], strides = [1, 1, 1, 1]} : vector<3x4x4x4xf32> to vector<3x2x2x2xf32>
    %865 = vector.extract_strided_slice %864 {offsets = [0, 0, 0, 0], sizes = [1, 2, 2, 2], strides = [1, 1, 1, 1]} : vector<3x2x2x2xf32> to vector<1x2x2x2xf32>
    %866 = vector.shape_cast %865 : vector<1x2x2x2xf32> to vector<2x2x2xf32>
    %c20 = arith.constant 20 : index
    %867 = memref.load %arg1[%c20] : memref<243xf32, #tpu.memory_space<smem>>
    %868 = vector.broadcast %867 : f32 to vector<2x2x2xf32>
    %869 = arith.mulf %868, %866 : vector<2x2x2xf32>
    %870 = arith.addf %855, %869 : vector<2x2x2xf32>
    %c101 = arith.constant 101 : index
    %871 = memref.load %arg1[%c101] : memref<243xf32, #tpu.memory_space<smem>>
    %872 = vector.broadcast %871 : f32 to vector<2x2x2xf32>
    %873 = arith.mulf %872, %866 : vector<2x2x2xf32>
    %874 = arith.addf %859, %873 : vector<2x2x2xf32>
    %c182 = arith.constant 182 : index
    %875 = memref.load %arg1[%c182] : memref<243xf32, #tpu.memory_space<smem>>
    %876 = vector.broadcast %875 : f32 to vector<2x2x2xf32>
    %877 = arith.mulf %876, %866 : vector<2x2x2xf32>
    %878 = arith.addf %863, %877 : vector<2x2x2xf32>
    %879 = vector.extract_strided_slice %864 {offsets = [1, 0, 0, 0], sizes = [1, 2, 2, 2], strides = [1, 1, 1, 1]} : vector<3x2x2x2xf32> to vector<1x2x2x2xf32>
    %880 = vector.shape_cast %879 : vector<1x2x2x2xf32> to vector<2x2x2xf32>
    %c47 = arith.constant 47 : index
    %881 = memref.load %arg1[%c47] : memref<243xf32, #tpu.memory_space<smem>>
    %882 = vector.broadcast %881 : f32 to vector<2x2x2xf32>
    %883 = arith.mulf %882, %880 : vector<2x2x2xf32>
    %884 = arith.addf %870, %883 : vector<2x2x2xf32>
    %c128 = arith.constant 128 : index
    %885 = memref.load %arg1[%c128] : memref<243xf32, #tpu.memory_space<smem>>
    %886 = vector.broadcast %885 : f32 to vector<2x2x2xf32>
    %887 = arith.mulf %886, %880 : vector<2x2x2xf32>
    %888 = arith.addf %874, %887 : vector<2x2x2xf32>
    %c209 = arith.constant 209 : index
    %889 = memref.load %arg1[%c209] : memref<243xf32, #tpu.memory_space<smem>>
    %890 = vector.broadcast %889 : f32 to vector<2x2x2xf32>
    %891 = arith.mulf %890, %880 : vector<2x2x2xf32>
    %892 = arith.addf %878, %891 : vector<2x2x2xf32>
    %893 = vector.extract_strided_slice %864 {offsets = [2, 0, 0, 0], sizes = [1, 2, 2, 2], strides = [1, 1, 1, 1]} : vector<3x2x2x2xf32> to vector<1x2x2x2xf32>
    %894 = vector.shape_cast %893 : vector<1x2x2x2xf32> to vector<2x2x2xf32>
    %c74 = arith.constant 74 : index
    %895 = memref.load %arg1[%c74] : memref<243xf32, #tpu.memory_space<smem>>
    %896 = vector.broadcast %895 : f32 to vector<2x2x2xf32>
    %897 = arith.mulf %896, %894 : vector<2x2x2xf32>
    %898 = arith.addf %884, %897 : vector<2x2x2xf32>
    %c155 = arith.constant 155 : index
    %899 = memref.load %arg1[%c155] : memref<243xf32, #tpu.memory_space<smem>>
    %900 = vector.broadcast %899 : f32 to vector<2x2x2xf32>
    %901 = arith.mulf %900, %894 : vector<2x2x2xf32>
    %902 = arith.addf %888, %901 : vector<2x2x2xf32>
    %c236 = arith.constant 236 : index
    %903 = memref.load %arg1[%c236] : memref<243xf32, #tpu.memory_space<smem>>
    %904 = vector.broadcast %903 : f32 to vector<2x2x2xf32>
    %905 = arith.mulf %904, %894 : vector<2x2x2xf32>
    %906 = arith.addf %892, %905 : vector<2x2x2xf32>
    %907 = vector.extract_strided_slice %0 {offsets = [0, 2, 1, 0], sizes = [3, 2, 2, 2], strides = [1, 1, 1, 1]} : vector<3x4x4x4xf32> to vector<3x2x2x2xf32>
    %908 = vector.extract_strided_slice %907 {offsets = [0, 0, 0, 0], sizes = [1, 2, 2, 2], strides = [1, 1, 1, 1]} : vector<3x2x2x2xf32> to vector<1x2x2x2xf32>
    %909 = vector.shape_cast %908 : vector<1x2x2x2xf32> to vector<2x2x2xf32>
    %c21 = arith.constant 21 : index
    %910 = memref.load %arg1[%c21] : memref<243xf32, #tpu.memory_space<smem>>
    %911 = vector.broadcast %910 : f32 to vector<2x2x2xf32>
    %912 = arith.mulf %911, %909 : vector<2x2x2xf32>
    %913 = arith.addf %898, %912 : vector<2x2x2xf32>
    %c102 = arith.constant 102 : index
    %914 = memref.load %arg1[%c102] : memref<243xf32, #tpu.memory_space<smem>>
    %915 = vector.broadcast %914 : f32 to vector<2x2x2xf32>
    %916 = arith.mulf %915, %909 : vector<2x2x2xf32>
    %917 = arith.addf %902, %916 : vector<2x2x2xf32>
    %c183 = arith.constant 183 : index
    %918 = memref.load %arg1[%c183] : memref<243xf32, #tpu.memory_space<smem>>
    %919 = vector.broadcast %918 : f32 to vector<2x2x2xf32>
    %920 = arith.mulf %919, %909 : vector<2x2x2xf32>
    %921 = arith.addf %906, %920 : vector<2x2x2xf32>
    %922 = vector.extract_strided_slice %907 {offsets = [1, 0, 0, 0], sizes = [1, 2, 2, 2], strides = [1, 1, 1, 1]} : vector<3x2x2x2xf32> to vector<1x2x2x2xf32>
    %923 = vector.shape_cast %922 : vector<1x2x2x2xf32> to vector<2x2x2xf32>
    %c48 = arith.constant 48 : index
    %924 = memref.load %arg1[%c48] : memref<243xf32, #tpu.memory_space<smem>>
    %925 = vector.broadcast %924 : f32 to vector<2x2x2xf32>
    %926 = arith.mulf %925, %923 : vector<2x2x2xf32>
    %927 = arith.addf %913, %926 : vector<2x2x2xf32>
    %c129 = arith.constant 129 : index
    %928 = memref.load %arg1[%c129] : memref<243xf32, #tpu.memory_space<smem>>
    %929 = vector.broadcast %928 : f32 to vector<2x2x2xf32>
    %930 = arith.mulf %929, %923 : vector<2x2x2xf32>
    %931 = arith.addf %917, %930 : vector<2x2x2xf32>
    %c210 = arith.constant 210 : index
    %932 = memref.load %arg1[%c210] : memref<243xf32, #tpu.memory_space<smem>>
    %933 = vector.broadcast %932 : f32 to vector<2x2x2xf32>
    %934 = arith.mulf %933, %923 : vector<2x2x2xf32>
    %935 = arith.addf %921, %934 : vector<2x2x2xf32>
    %936 = vector.extract_strided_slice %907 {offsets = [2, 0, 0, 0], sizes = [1, 2, 2, 2], strides = [1, 1, 1, 1]} : vector<3x2x2x2xf32> to vector<1x2x2x2xf32>
    %937 = vector.shape_cast %936 : vector<1x2x2x2xf32> to vector<2x2x2xf32>
    %c75 = arith.constant 75 : index
    %938 = memref.load %arg1[%c75] : memref<243xf32, #tpu.memory_space<smem>>
    %939 = vector.broadcast %938 : f32 to vector<2x2x2xf32>
    %940 = arith.mulf %939, %937 : vector<2x2x2xf32>
    %941 = arith.addf %927, %940 : vector<2x2x2xf32>
    %c156 = arith.constant 156 : index
    %942 = memref.load %arg1[%c156] : memref<243xf32, #tpu.memory_space<smem>>
    %943 = vector.broadcast %942 : f32 to vector<2x2x2xf32>
    %944 = arith.mulf %943, %937 : vector<2x2x2xf32>
    %945 = arith.addf %931, %944 : vector<2x2x2xf32>
    %c237 = arith.constant 237 : index
    %946 = memref.load %arg1[%c237] : memref<243xf32, #tpu.memory_space<smem>>
    %947 = vector.broadcast %946 : f32 to vector<2x2x2xf32>
    %948 = arith.mulf %947, %937 : vector<2x2x2xf32>
    %949 = arith.addf %935, %948 : vector<2x2x2xf32>
    %950 = vector.extract_strided_slice %0 {offsets = [0, 2, 1, 1], sizes = [3, 2, 2, 2], strides = [1, 1, 1, 1]} : vector<3x4x4x4xf32> to vector<3x2x2x2xf32>
    %951 = vector.extract_strided_slice %950 {offsets = [0, 0, 0, 0], sizes = [1, 2, 2, 2], strides = [1, 1, 1, 1]} : vector<3x2x2x2xf32> to vector<1x2x2x2xf32>
    %952 = vector.shape_cast %951 : vector<1x2x2x2xf32> to vector<2x2x2xf32>
    %c22 = arith.constant 22 : index
    %953 = memref.load %arg1[%c22] : memref<243xf32, #tpu.memory_space<smem>>
    %954 = vector.broadcast %953 : f32 to vector<2x2x2xf32>
    %955 = arith.mulf %954, %952 : vector<2x2x2xf32>
    %956 = arith.addf %941, %955 : vector<2x2x2xf32>
    %c103 = arith.constant 103 : index
    %957 = memref.load %arg1[%c103] : memref<243xf32, #tpu.memory_space<smem>>
    %958 = vector.broadcast %957 : f32 to vector<2x2x2xf32>
    %959 = arith.mulf %958, %952 : vector<2x2x2xf32>
    %960 = arith.addf %945, %959 : vector<2x2x2xf32>
    %c184 = arith.constant 184 : index
    %961 = memref.load %arg1[%c184] : memref<243xf32, #tpu.memory_space<smem>>
    %962 = vector.broadcast %961 : f32 to vector<2x2x2xf32>
    %963 = arith.mulf %962, %952 : vector<2x2x2xf32>
    %964 = arith.addf %949, %963 : vector<2x2x2xf32>
    %965 = vector.extract_strided_slice %950 {offsets = [1, 0, 0, 0], sizes = [1, 2, 2, 2], strides = [1, 1, 1, 1]} : vector<3x2x2x2xf32> to vector<1x2x2x2xf32>
    %966 = vector.shape_cast %965 : vector<1x2x2x2xf32> to vector<2x2x2xf32>
    %c49 = arith.constant 49 : index
    %967 = memref.load %arg1[%c49] : memref<243xf32, #tpu.memory_space<smem>>
    %968 = vector.broadcast %967 : f32 to vector<2x2x2xf32>
    %969 = arith.mulf %968, %966 : vector<2x2x2xf32>
    %970 = arith.addf %956, %969 : vector<2x2x2xf32>
    %c130 = arith.constant 130 : index
    %971 = memref.load %arg1[%c130] : memref<243xf32, #tpu.memory_space<smem>>
    %972 = vector.broadcast %971 : f32 to vector<2x2x2xf32>
    %973 = arith.mulf %972, %966 : vector<2x2x2xf32>
    %974 = arith.addf %960, %973 : vector<2x2x2xf32>
    %c211 = arith.constant 211 : index
    %975 = memref.load %arg1[%c211] : memref<243xf32, #tpu.memory_space<smem>>
    %976 = vector.broadcast %975 : f32 to vector<2x2x2xf32>
    %977 = arith.mulf %976, %966 : vector<2x2x2xf32>
    %978 = arith.addf %964, %977 : vector<2x2x2xf32>
    %979 = vector.extract_strided_slice %950 {offsets = [2, 0, 0, 0], sizes = [1, 2, 2, 2], strides = [1, 1, 1, 1]} : vector<3x2x2x2xf32> to vector<1x2x2x2xf32>
    %980 = vector.shape_cast %979 : vector<1x2x2x2xf32> to vector<2x2x2xf32>
    %c76 = arith.constant 76 : index
    %981 = memref.load %arg1[%c76] : memref<243xf32, #tpu.memory_space<smem>>
    %982 = vector.broadcast %981 : f32 to vector<2x2x2xf32>
    %983 = arith.mulf %982, %980 : vector<2x2x2xf32>
    %984 = arith.addf %970, %983 : vector<2x2x2xf32>
    %c157 = arith.constant 157 : index
    %985 = memref.load %arg1[%c157] : memref<243xf32, #tpu.memory_space<smem>>
    %986 = vector.broadcast %985 : f32 to vector<2x2x2xf32>
    %987 = arith.mulf %986, %980 : vector<2x2x2xf32>
    %988 = arith.addf %974, %987 : vector<2x2x2xf32>
    %c238 = arith.constant 238 : index
    %989 = memref.load %arg1[%c238] : memref<243xf32, #tpu.memory_space<smem>>
    %990 = vector.broadcast %989 : f32 to vector<2x2x2xf32>
    %991 = arith.mulf %990, %980 : vector<2x2x2xf32>
    %992 = arith.addf %978, %991 : vector<2x2x2xf32>
    %993 = vector.extract_strided_slice %0 {offsets = [0, 2, 1, 2], sizes = [3, 2, 2, 2], strides = [1, 1, 1, 1]} : vector<3x4x4x4xf32> to vector<3x2x2x2xf32>
    %994 = vector.extract_strided_slice %993 {offsets = [0, 0, 0, 0], sizes = [1, 2, 2, 2], strides = [1, 1, 1, 1]} : vector<3x2x2x2xf32> to vector<1x2x2x2xf32>
    %995 = vector.shape_cast %994 : vector<1x2x2x2xf32> to vector<2x2x2xf32>
    %c23 = arith.constant 23 : index
    %996 = memref.load %arg1[%c23] : memref<243xf32, #tpu.memory_space<smem>>
    %997 = vector.broadcast %996 : f32 to vector<2x2x2xf32>
    %998 = arith.mulf %997, %995 : vector<2x2x2xf32>
    %999 = arith.addf %984, %998 : vector<2x2x2xf32>
    %c104 = arith.constant 104 : index
    %1000 = memref.load %arg1[%c104] : memref<243xf32, #tpu.memory_space<smem>>
    %1001 = vector.broadcast %1000 : f32 to vector<2x2x2xf32>
    %1002 = arith.mulf %1001, %995 : vector<2x2x2xf32>
    %1003 = arith.addf %988, %1002 : vector<2x2x2xf32>
    %c185 = arith.constant 185 : index
    %1004 = memref.load %arg1[%c185] : memref<243xf32, #tpu.memory_space<smem>>
    %1005 = vector.broadcast %1004 : f32 to vector<2x2x2xf32>
    %1006 = arith.mulf %1005, %995 : vector<2x2x2xf32>
    %1007 = arith.addf %992, %1006 : vector<2x2x2xf32>
    %1008 = vector.extract_strided_slice %993 {offsets = [1, 0, 0, 0], sizes = [1, 2, 2, 2], strides = [1, 1, 1, 1]} : vector<3x2x2x2xf32> to vector<1x2x2x2xf32>
    %1009 = vector.shape_cast %1008 : vector<1x2x2x2xf32> to vector<2x2x2xf32>
    %c50 = arith.constant 50 : index
    %1010 = memref.load %arg1[%c50] : memref<243xf32, #tpu.memory_space<smem>>
    %1011 = vector.broadcast %1010 : f32 to vector<2x2x2xf32>
    %1012 = arith.mulf %1011, %1009 : vector<2x2x2xf32>
    %1013 = arith.addf %999, %1012 : vector<2x2x2xf32>
    %c131 = arith.constant 131 : index
    %1014 = memref.load %arg1[%c131] : memref<243xf32, #tpu.memory_space<smem>>
    %1015 = vector.broadcast %1014 : f32 to vector<2x2x2xf32>
    %1016 = arith.mulf %1015, %1009 : vector<2x2x2xf32>
    %1017 = arith.addf %1003, %1016 : vector<2x2x2xf32>
    %c212 = arith.constant 212 : index
    %1018 = memref.load %arg1[%c212] : memref<243xf32, #tpu.memory_space<smem>>
    %1019 = vector.broadcast %1018 : f32 to vector<2x2x2xf32>
    %1020 = arith.mulf %1019, %1009 : vector<2x2x2xf32>
    %1021 = arith.addf %1007, %1020 : vector<2x2x2xf32>
    %1022 = vector.extract_strided_slice %993 {offsets = [2, 0, 0, 0], sizes = [1, 2, 2, 2], strides = [1, 1, 1, 1]} : vector<3x2x2x2xf32> to vector<1x2x2x2xf32>
    %1023 = vector.shape_cast %1022 : vector<1x2x2x2xf32> to vector<2x2x2xf32>
    %c77 = arith.constant 77 : index
    %1024 = memref.load %arg1[%c77] : memref<243xf32, #tpu.memory_space<smem>>
    %1025 = vector.broadcast %1024 : f32 to vector<2x2x2xf32>
    %1026 = arith.mulf %1025, %1023 : vector<2x2x2xf32>
    %1027 = arith.addf %1013, %1026 : vector<2x2x2xf32>
    %c158 = arith.constant 158 : index
    %1028 = memref.load %arg1[%c158] : memref<243xf32, #tpu.memory_space<smem>>
    %1029 = vector.broadcast %1028 : f32 to vector<2x2x2xf32>
    %1030 = arith.mulf %1029, %1023 : vector<2x2x2xf32>
    %1031 = arith.addf %1017, %1030 : vector<2x2x2xf32>
    %c239 = arith.constant 239 : index
    %1032 = memref.load %arg1[%c239] : memref<243xf32, #tpu.memory_space<smem>>
    %1033 = vector.broadcast %1032 : f32 to vector<2x2x2xf32>
    %1034 = arith.mulf %1033, %1023 : vector<2x2x2xf32>
    %1035 = arith.addf %1021, %1034 : vector<2x2x2xf32>
    %1036 = vector.extract_strided_slice %0 {offsets = [0, 2, 2, 0], sizes = [3, 2, 2, 2], strides = [1, 1, 1, 1]} : vector<3x4x4x4xf32> to vector<3x2x2x2xf32>
    %1037 = vector.extract_strided_slice %1036 {offsets = [0, 0, 0, 0], sizes = [1, 2, 2, 2], strides = [1, 1, 1, 1]} : vector<3x2x2x2xf32> to vector<1x2x2x2xf32>
    %1038 = vector.shape_cast %1037 : vector<1x2x2x2xf32> to vector<2x2x2xf32>
    %c24 = arith.constant 24 : index
    %1039 = memref.load %arg1[%c24] : memref<243xf32, #tpu.memory_space<smem>>
    %1040 = vector.broadcast %1039 : f32 to vector<2x2x2xf32>
    %1041 = arith.mulf %1040, %1038 : vector<2x2x2xf32>
    %1042 = arith.addf %1027, %1041 : vector<2x2x2xf32>
    %c105 = arith.constant 105 : index
    %1043 = memref.load %arg1[%c105] : memref<243xf32, #tpu.memory_space<smem>>
    %1044 = vector.broadcast %1043 : f32 to vector<2x2x2xf32>
    %1045 = arith.mulf %1044, %1038 : vector<2x2x2xf32>
    %1046 = arith.addf %1031, %1045 : vector<2x2x2xf32>
    %c186 = arith.constant 186 : index
    %1047 = memref.load %arg1[%c186] : memref<243xf32, #tpu.memory_space<smem>>
    %1048 = vector.broadcast %1047 : f32 to vector<2x2x2xf32>
    %1049 = arith.mulf %1048, %1038 : vector<2x2x2xf32>
    %1050 = arith.addf %1035, %1049 : vector<2x2x2xf32>
    %1051 = vector.extract_strided_slice %1036 {offsets = [1, 0, 0, 0], sizes = [1, 2, 2, 2], strides = [1, 1, 1, 1]} : vector<3x2x2x2xf32> to vector<1x2x2x2xf32>
    %1052 = vector.shape_cast %1051 : vector<1x2x2x2xf32> to vector<2x2x2xf32>
    %c51 = arith.constant 51 : index
    %1053 = memref.load %arg1[%c51] : memref<243xf32, #tpu.memory_space<smem>>
    %1054 = vector.broadcast %1053 : f32 to vector<2x2x2xf32>
    %1055 = arith.mulf %1054, %1052 : vector<2x2x2xf32>
    %1056 = arith.addf %1042, %1055 : vector<2x2x2xf32>
    %c132 = arith.constant 132 : index
    %1057 = memref.load %arg1[%c132] : memref<243xf32, #tpu.memory_space<smem>>
    %1058 = vector.broadcast %1057 : f32 to vector<2x2x2xf32>
    %1059 = arith.mulf %1058, %1052 : vector<2x2x2xf32>
    %1060 = arith.addf %1046, %1059 : vector<2x2x2xf32>
    %c213 = arith.constant 213 : index
    %1061 = memref.load %arg1[%c213] : memref<243xf32, #tpu.memory_space<smem>>
    %1062 = vector.broadcast %1061 : f32 to vector<2x2x2xf32>
    %1063 = arith.mulf %1062, %1052 : vector<2x2x2xf32>
    %1064 = arith.addf %1050, %1063 : vector<2x2x2xf32>
    %1065 = vector.extract_strided_slice %1036 {offsets = [2, 0, 0, 0], sizes = [1, 2, 2, 2], strides = [1, 1, 1, 1]} : vector<3x2x2x2xf32> to vector<1x2x2x2xf32>
    %1066 = vector.shape_cast %1065 : vector<1x2x2x2xf32> to vector<2x2x2xf32>
    %c78 = arith.constant 78 : index
    %1067 = memref.load %arg1[%c78] : memref<243xf32, #tpu.memory_space<smem>>
    %1068 = vector.broadcast %1067 : f32 to vector<2x2x2xf32>
    %1069 = arith.mulf %1068, %1066 : vector<2x2x2xf32>
    %1070 = arith.addf %1056, %1069 : vector<2x2x2xf32>
    %c159 = arith.constant 159 : index
    %1071 = memref.load %arg1[%c159] : memref<243xf32, #tpu.memory_space<smem>>
    %1072 = vector.broadcast %1071 : f32 to vector<2x2x2xf32>
    %1073 = arith.mulf %1072, %1066 : vector<2x2x2xf32>
    %1074 = arith.addf %1060, %1073 : vector<2x2x2xf32>
    %c240 = arith.constant 240 : index
    %1075 = memref.load %arg1[%c240] : memref<243xf32, #tpu.memory_space<smem>>
    %1076 = vector.broadcast %1075 : f32 to vector<2x2x2xf32>
    %1077 = arith.mulf %1076, %1066 : vector<2x2x2xf32>
    %1078 = arith.addf %1064, %1077 : vector<2x2x2xf32>
    %1079 = vector.extract_strided_slice %0 {offsets = [0, 2, 2, 1], sizes = [3, 2, 2, 2], strides = [1, 1, 1, 1]} : vector<3x4x4x4xf32> to vector<3x2x2x2xf32>
    %1080 = vector.extract_strided_slice %1079 {offsets = [0, 0, 0, 0], sizes = [1, 2, 2, 2], strides = [1, 1, 1, 1]} : vector<3x2x2x2xf32> to vector<1x2x2x2xf32>
    %1081 = vector.shape_cast %1080 : vector<1x2x2x2xf32> to vector<2x2x2xf32>
    %c25 = arith.constant 25 : index
    %1082 = memref.load %arg1[%c25] : memref<243xf32, #tpu.memory_space<smem>>
    %1083 = vector.broadcast %1082 : f32 to vector<2x2x2xf32>
    %1084 = arith.mulf %1083, %1081 : vector<2x2x2xf32>
    %1085 = arith.addf %1070, %1084 : vector<2x2x2xf32>
    %c106 = arith.constant 106 : index
    %1086 = memref.load %arg1[%c106] : memref<243xf32, #tpu.memory_space<smem>>
    %1087 = vector.broadcast %1086 : f32 to vector<2x2x2xf32>
    %1088 = arith.mulf %1087, %1081 : vector<2x2x2xf32>
    %1089 = arith.addf %1074, %1088 : vector<2x2x2xf32>
    %c187 = arith.constant 187 : index
    %1090 = memref.load %arg1[%c187] : memref<243xf32, #tpu.memory_space<smem>>
    %1091 = vector.broadcast %1090 : f32 to vector<2x2x2xf32>
    %1092 = arith.mulf %1091, %1081 : vector<2x2x2xf32>
    %1093 = arith.addf %1078, %1092 : vector<2x2x2xf32>
    %1094 = vector.extract_strided_slice %1079 {offsets = [1, 0, 0, 0], sizes = [1, 2, 2, 2], strides = [1, 1, 1, 1]} : vector<3x2x2x2xf32> to vector<1x2x2x2xf32>
    %1095 = vector.shape_cast %1094 : vector<1x2x2x2xf32> to vector<2x2x2xf32>
    %c52 = arith.constant 52 : index
    %1096 = memref.load %arg1[%c52] : memref<243xf32, #tpu.memory_space<smem>>
    %1097 = vector.broadcast %1096 : f32 to vector<2x2x2xf32>
    %1098 = arith.mulf %1097, %1095 : vector<2x2x2xf32>
    %1099 = arith.addf %1085, %1098 : vector<2x2x2xf32>
    %c133 = arith.constant 133 : index
    %1100 = memref.load %arg1[%c133] : memref<243xf32, #tpu.memory_space<smem>>
    %1101 = vector.broadcast %1100 : f32 to vector<2x2x2xf32>
    %1102 = arith.mulf %1101, %1095 : vector<2x2x2xf32>
    %1103 = arith.addf %1089, %1102 : vector<2x2x2xf32>
    %c214 = arith.constant 214 : index
    %1104 = memref.load %arg1[%c214] : memref<243xf32, #tpu.memory_space<smem>>
    %1105 = vector.broadcast %1104 : f32 to vector<2x2x2xf32>
    %1106 = arith.mulf %1105, %1095 : vector<2x2x2xf32>
    %1107 = arith.addf %1093, %1106 : vector<2x2x2xf32>
    %1108 = vector.extract_strided_slice %1079 {offsets = [2, 0, 0, 0], sizes = [1, 2, 2, 2], strides = [1, 1, 1, 1]} : vector<3x2x2x2xf32> to vector<1x2x2x2xf32>
    %1109 = vector.shape_cast %1108 : vector<1x2x2x2xf32> to vector<2x2x2xf32>
    %c79 = arith.constant 79 : index
    %1110 = memref.load %arg1[%c79] : memref<243xf32, #tpu.memory_space<smem>>
    %1111 = vector.broadcast %1110 : f32 to vector<2x2x2xf32>
    %1112 = arith.mulf %1111, %1109 : vector<2x2x2xf32>
    %1113 = arith.addf %1099, %1112 : vector<2x2x2xf32>
    %c160 = arith.constant 160 : index
    %1114 = memref.load %arg1[%c160] : memref<243xf32, #tpu.memory_space<smem>>
    %1115 = vector.broadcast %1114 : f32 to vector<2x2x2xf32>
    %1116 = arith.mulf %1115, %1109 : vector<2x2x2xf32>
    %1117 = arith.addf %1103, %1116 : vector<2x2x2xf32>
    %c241 = arith.constant 241 : index
    %1118 = memref.load %arg1[%c241] : memref<243xf32, #tpu.memory_space<smem>>
    %1119 = vector.broadcast %1118 : f32 to vector<2x2x2xf32>
    %1120 = arith.mulf %1119, %1109 : vector<2x2x2xf32>
    %1121 = arith.addf %1107, %1120 : vector<2x2x2xf32>
    %1122 = vector.extract_strided_slice %0 {offsets = [0, 2, 2, 2], sizes = [3, 2, 2, 2], strides = [1, 1, 1, 1]} : vector<3x4x4x4xf32> to vector<3x2x2x2xf32>
    %1123 = vector.extract_strided_slice %1122 {offsets = [0, 0, 0, 0], sizes = [1, 2, 2, 2], strides = [1, 1, 1, 1]} : vector<3x2x2x2xf32> to vector<1x2x2x2xf32>
    %1124 = vector.shape_cast %1123 : vector<1x2x2x2xf32> to vector<2x2x2xf32>
    %c26 = arith.constant 26 : index
    %1125 = memref.load %arg1[%c26] : memref<243xf32, #tpu.memory_space<smem>>
    %1126 = vector.broadcast %1125 : f32 to vector<2x2x2xf32>
    %1127 = arith.mulf %1126, %1124 : vector<2x2x2xf32>
    %1128 = arith.addf %1113, %1127 : vector<2x2x2xf32>
    %c107 = arith.constant 107 : index
    %1129 = memref.load %arg1[%c107] : memref<243xf32, #tpu.memory_space<smem>>
    %1130 = vector.broadcast %1129 : f32 to vector<2x2x2xf32>
    %1131 = arith.mulf %1130, %1124 : vector<2x2x2xf32>
    %1132 = arith.addf %1117, %1131 : vector<2x2x2xf32>
    %c188 = arith.constant 188 : index
    %1133 = memref.load %arg1[%c188] : memref<243xf32, #tpu.memory_space<smem>>
    %1134 = vector.broadcast %1133 : f32 to vector<2x2x2xf32>
    %1135 = arith.mulf %1134, %1124 : vector<2x2x2xf32>
    %1136 = arith.addf %1121, %1135 : vector<2x2x2xf32>
    %1137 = vector.extract_strided_slice %1122 {offsets = [1, 0, 0, 0], sizes = [1, 2, 2, 2], strides = [1, 1, 1, 1]} : vector<3x2x2x2xf32> to vector<1x2x2x2xf32>
    %1138 = vector.shape_cast %1137 : vector<1x2x2x2xf32> to vector<2x2x2xf32>
    %c53 = arith.constant 53 : index
    %1139 = memref.load %arg1[%c53] : memref<243xf32, #tpu.memory_space<smem>>
    %1140 = vector.broadcast %1139 : f32 to vector<2x2x2xf32>
    %1141 = arith.mulf %1140, %1138 : vector<2x2x2xf32>
    %1142 = arith.addf %1128, %1141 : vector<2x2x2xf32>
    %c134 = arith.constant 134 : index
    %1143 = memref.load %arg1[%c134] : memref<243xf32, #tpu.memory_space<smem>>
    %1144 = vector.broadcast %1143 : f32 to vector<2x2x2xf32>
    %1145 = arith.mulf %1144, %1138 : vector<2x2x2xf32>
    %1146 = arith.addf %1132, %1145 : vector<2x2x2xf32>
    %c215 = arith.constant 215 : index
    %1147 = memref.load %arg1[%c215] : memref<243xf32, #tpu.memory_space<smem>>
    %1148 = vector.broadcast %1147 : f32 to vector<2x2x2xf32>
    %1149 = arith.mulf %1148, %1138 : vector<2x2x2xf32>
    %1150 = arith.addf %1136, %1149 : vector<2x2x2xf32>
    %1151 = vector.extract_strided_slice %1122 {offsets = [2, 0, 0, 0], sizes = [1, 2, 2, 2], strides = [1, 1, 1, 1]} : vector<3x2x2x2xf32> to vector<1x2x2x2xf32>
    %1152 = vector.shape_cast %1151 : vector<1x2x2x2xf32> to vector<2x2x2xf32>
    %c80 = arith.constant 80 : index
    %1153 = memref.load %arg1[%c80] : memref<243xf32, #tpu.memory_space<smem>>
    %1154 = vector.broadcast %1153 : f32 to vector<2x2x2xf32>
    %1155 = arith.mulf %1154, %1152 : vector<2x2x2xf32>
    %1156 = arith.addf %1142, %1155 : vector<2x2x2xf32>
    %c161 = arith.constant 161 : index
    %1157 = memref.load %arg1[%c161] : memref<243xf32, #tpu.memory_space<smem>>
    %1158 = vector.broadcast %1157 : f32 to vector<2x2x2xf32>
    %1159 = arith.mulf %1158, %1152 : vector<2x2x2xf32>
    %1160 = arith.addf %1146, %1159 : vector<2x2x2xf32>
    %c242 = arith.constant 242 : index
    %1161 = memref.load %arg1[%c242] : memref<243xf32, #tpu.memory_space<smem>>
    %1162 = vector.broadcast %1161 : f32 to vector<2x2x2xf32>
    %1163 = arith.mulf %1162, %1152 : vector<2x2x2xf32>
    %1164 = arith.addf %1150, %1163 : vector<2x2x2xf32>
    %1165 = vector.shape_cast %1156 : vector<2x2x2xf32> to vector<1x2x2x2xf32>
    %cst_6 = arith.constant dense<0.000000e+00> : vector<1xf32>
    %1166 = vector.multi_reduction <add>, %1165, %cst_6 [1, 2, 3] : vector<1x2x2x2xf32> to vector<1xf32>
    %1167 = vector.shape_cast %1166 : vector<1xf32> to vector<1x1x1x1xf32>
    %1168 = vector.extract %1167[0, 0, 0, 0] : f32 from vector<1x1x1x1xf32>
    %1169 = arith.mulf %1156, %1156 : vector<2x2x2xf32>
    %1170 = vector.shape_cast %1169 : vector<2x2x2xf32> to vector<1x2x2x2xf32>
    %cst_7 = arith.constant dense<0.000000e+00> : vector<1xf32>
    %1171 = vector.multi_reduction <add>, %1170, %cst_7 [1, 2, 3] : vector<1x2x2x2xf32> to vector<1xf32>
    %1172 = vector.shape_cast %1171 : vector<1xf32> to vector<1x1x1x1xf32>
    %1173 = vector.extract %1172[0, 0, 0, 0] : f32 from vector<1x1x1x1xf32>
    %cst_8 = arith.constant 1.250000e-01 : f32
    %1174 = arith.mulf %1168, %cst_8 : f32
    %cst_9 = arith.constant 1.250000e-01 : f32
    %1175 = arith.mulf %1173, %cst_9 : f32
    %1176 = arith.mulf %1174, %1174 : f32
    %1177 = arith.subf %1175, %1176 : f32
    %cst_10 = arith.constant 0.000000e+00 : f32
    %1178 = arith.maximumf %1177, %cst_10 : f32
    %cst_11 = arith.constant 9.99999974E-6 : f32
    %1179 = arith.addf %1178, %cst_11 : f32
    %1180 = math.rsqrt %1179 : f32
    %1181 = vector.broadcast %1174 : f32 to vector<2x2x2xf32>
    %1182 = arith.subf %1156, %1181 : vector<2x2x2xf32>
    %c0_12 = arith.constant 0 : index
    %1183 = memref.load %arg2[%c0_12] : memref<3xf32, #tpu.memory_space<smem>>
    %1184 = arith.mulf %1180, %1183 : f32
    %1185 = vector.broadcast %1184 : f32 to vector<2x2x2xf32>
    %1186 = arith.mulf %1182, %1185 : vector<2x2x2xf32>
    %c0_13 = arith.constant 0 : index
    %1187 = memref.load %arg3[%c0_13] : memref<3xf32, #tpu.memory_space<smem>>
    %1188 = vector.broadcast %1187 : f32 to vector<2x2x2xf32>
    %1189 = arith.addf %1186, %1188 : vector<2x2x2xf32>
    %c0_14 = arith.constant 0 : index
    %c0_15 = arith.constant 0 : index
    %c0_16 = arith.constant 0 : index
    %c0_17 = arith.constant 0 : index
    %1190 = vector.load %arg4[%c0_14, %c0_15, %c0_16, %c0_17] : memref<3x2x2x2xf32, #tpu.memory_space<vmem>>, vector<1x2x2x2xf32>
    %1191 = vector.shape_cast %1190 : vector<1x2x2x2xf32> to vector<2x2x2xf32>
    %1192 = vector.shape_cast %1189 : vector<2x2x2xf32> to vector<1x2x2x2xf32>
    tpu.vector_store %arg4[%c0_14, %c0_15, %c0_16, %c0_17], %1192 {strides = array<i32>} : memref<3x2x2x2xf32, #tpu.memory_space<vmem>>, vector<1x2x2x2xf32>,
    %1193 = vector.shape_cast %1160 : vector<2x2x2xf32> to vector<1x2x2x2xf32>
    %cst_18 = arith.constant dense<0.000000e+00> : vector<1xf32>
    %1194 = vector.multi_reduction <add>, %1193, %cst_18 [1, 2, 3] : vector<1x2x2x2xf32> to vector<1xf32>
    %1195 = vector.shape_cast %1194 : vector<1xf32> to vector<1x1x1x1xf32>
    %1196 = vector.extract %1195[0, 0, 0, 0] : f32 from vector<1x1x1x1xf32>
    %1197 = arith.mulf %1160, %1160 : vector<2x2x2xf32>
    %1198 = vector.shape_cast %1197 : vector<2x2x2xf32> to vector<1x2x2x2xf32>
    %cst_19 = arith.constant dense<0.000000e+00> : vector<1xf32>
    %1199 = vector.multi_reduction <add>, %1198, %cst_19 [1, 2, 3] : vector<1x2x2x2xf32> to vector<1xf32>
    %1200 = vector.shape_cast %1199 : vector<1xf32> to vector<1x1x1x1xf32>
    %1201 = vector.extract %1200[0, 0, 0, 0] : f32 from vector<1x1x1x1xf32>
    %cst_20 = arith.constant 1.250000e-01 : f32
    %1202 = arith.mulf %1196, %cst_20 : f32
    %cst_21 = arith.constant 1.250000e-01 : f32
    %1203 = arith.mulf %1201, %cst_21 : f32
    %1204 = arith.mulf %1202, %1202 : f32
    %1205 = arith.subf %1203, %1204 : f32
    %cst_22 = arith.constant 0.000000e+00 : f32
    %1206 = arith.maximumf %1205, %cst_22 : f32
    %cst_23 = arith.constant 9.99999974E-6 : f32
    %1207 = arith.addf %1206, %cst_23 : f32
    %1208 = math.rsqrt %1207 : f32
    %1209 = vector.broadcast %1202 : f32 to vector<2x2x2xf32>
    %1210 = arith.subf %1160, %1209 : vector<2x2x2xf32>
    %c1_24 = arith.constant 1 : index
    %1211 = memref.load %arg2[%c1_24] : memref<3xf32, #tpu.memory_space<smem>>
    %1212 = arith.mulf %1208, %1211 : f32
    %1213 = vector.broadcast %1212 : f32 to vector<2x2x2xf32>
    %1214 = arith.mulf %1210, %1213 : vector<2x2x2xf32>
    %c1_25 = arith.constant 1 : index
    %1215 = memref.load %arg3[%c1_25] : memref<3xf32, #tpu.memory_space<smem>>
    %1216 = vector.broadcast %1215 : f32 to vector<2x2x2xf32>
    %1217 = arith.addf %1214, %1216 : vector<2x2x2xf32>
    %c1_26 = arith.constant 1 : index
    %c0_27 = arith.constant 0 : index
    %c0_28 = arith.constant 0 : index
    %c0_29 = arith.constant 0 : index
    %1218 = vector.load %arg4[%c1_26, %c0_27, %c0_28, %c0_29] : memref<3x2x2x2xf32, #tpu.memory_space<vmem>>, vector<1x2x2x2xf32>
    %1219 = vector.shape_cast %1218 : vector<1x2x2x2xf32> to vector<2x2x2xf32>
    %1220 = vector.shape_cast %1217 : vector<2x2x2xf32> to vector<1x2x2x2xf32>
    tpu.vector_store %arg4[%c1_26, %c0_27, %c0_28, %c0_29], %1220 {strides = array<i32>} : memref<3x2x2x2xf32, #tpu.memory_space<vmem>>, vector<1x2x2x2xf32>,
    %1221 = vector.shape_cast %1164 : vector<2x2x2xf32> to vector<1x2x2x2xf32>
    %cst_30 = arith.constant dense<0.000000e+00> : vector<1xf32>
    %1222 = vector.multi_reduction <add>, %1221, %cst_30 [1, 2, 3] : vector<1x2x2x2xf32> to vector<1xf32>
    %1223 = vector.shape_cast %1222 : vector<1xf32> to vector<1x1x1x1xf32>
    %1224 = vector.extract %1223[0, 0, 0, 0] : f32 from vector<1x1x1x1xf32>
    %1225 = arith.mulf %1164, %1164 : vector<2x2x2xf32>
    %1226 = vector.shape_cast %1225 : vector<2x2x2xf32> to vector<1x2x2x2xf32>
    %cst_31 = arith.constant dense<0.000000e+00> : vector<1xf32>
    %1227 = vector.multi_reduction <add>, %1226, %cst_31 [1, 2, 3] : vector<1x2x2x2xf32> to vector<1xf32>
    %1228 = vector.shape_cast %1227 : vector<1xf32> to vector<1x1x1x1xf32>
    %1229 = vector.extract %1228[0, 0, 0, 0] : f32 from vector<1x1x1x1xf32>
    %cst_32 = arith.constant 1.250000e-01 : f32
    %1230 = arith.mulf %1224, %cst_32 : f32
    %cst_33 = arith.constant 1.250000e-01 : f32
    %1231 = arith.mulf %1229, %cst_33 : f32
    %1232 = arith.mulf %1230, %1230 : f32
    %1233 = arith.subf %1231, %1232 : f32
    %cst_34 = arith.constant 0.000000e+00 : f32
    %1234 = arith.maximumf %1233, %cst_34 : f32
    %cst_35 = arith.constant 9.99999974E-6 : f32
    %1235 = arith.addf %1234, %cst_35 : f32
    %1236 = math.rsqrt %1235 : f32
    %1237 = vector.broadcast %1230 : f32 to vector<2x2x2xf32>
    %1238 = arith.subf %1164, %1237 : vector<2x2x2xf32>
    %c2_36 = arith.constant 2 : index
    %1239 = memref.load %arg2[%c2_36] : memref<3xf32, #tpu.memory_space<smem>>
    %1240 = arith.mulf %1236, %1239 : f32
    %1241 = vector.broadcast %1240 : f32 to vector<2x2x2xf32>
    %1242 = arith.mulf %1238, %1241 : vector<2x2x2xf32>
    %c2_37 = arith.constant 2 : index
    %1243 = memref.load %arg3[%c2_37] : memref<3xf32, #tpu.memory_space<smem>>
    %1244 = vector.broadcast %1243 : f32 to vector<2x2x2xf32>
    %1245 = arith.addf %1242, %1244 : vector<2x2x2xf32>
    %c2_38 = arith.constant 2 : index
    %c0_39 = arith.constant 0 : index
    %c0_40 = arith.constant 0 : index
    %c0_41 = arith.constant 0 : index
    %1246 = vector.load %arg4[%c2_38, %c0_39, %c0_40, %c0_41] : memref<3x2x2x2xf32, #tpu.memory_space<vmem>>, vector<1x2x2x2xf32>
    %1247 = vector.shape_cast %1246 : vector<1x2x2x2xf32> to vector<2x2x2xf32>
    %1248 = vector.shape_cast %1245 : vector<2x2x2xf32> to vector<1x2x2x2xf32>
    tpu.vector_store %arg4[%c2_38, %c0_39, %c0_40, %c0_41], %1248 {strides = array<i32>} : memref<3x2x2x2xf32, #tpu.memory_space<vmem>>, vector<1x2x2x2xf32>,
    return
  }
}

</mosaic_0001>

<llo_original>
// kernel: conv_bn_forward.1
$region0: #{conv_bn_forward.1}
  #allocation0 [shape = 'u32[]', space=smem, size = 0x4, offset = 0x4, fixed_abs, tag = 'smem constant byte address 0x4 - core index']
  #allocation1 [shape = 'u32[72,128]{1,0:T(1,128)}', space=vmem, size = 0x9000, scoped, tag = 'internal scratch']
  %s0 = inlined_call_operand.vmem [shape: f32[3,4,4,4], index: 0, kind: input, shape index: {}]
  %s1 = inlined_call_operand.vmem [shape: f32[243], index: 1, kind: input, shape index: {}]
  %s2 = inlined_call_operand.vmem [shape: f32[3], index: 2, kind: input, shape index: {}]
  %s3 = inlined_call_operand.vmem [shape: f32[3], index: 3, kind: input, shape index: {}]
  %s4 = inlined_call_operand.vmem [shape: f32[3,2,2,2], index: 4, kind: output, shape index: {}]
  %s5 = sld [smem:[#allocation0]]
  $region38: #{conv_bn_forward.1} parent=0
    _
  %s7 = ssub.s32 1, %s5
  %s8 = scalar_select 0, %s7, %s5
  $region1: #{conv_bn_forward.1} parent=0
    #allocation2 [shape = 'u8[1024]{0}', space=smem, size = 0x400, scoped, tag = 'input window, operand 1, single buffered']
    #allocation3 [shape = 's32[1]{0}', space=sflag, size = 0x4, scoped, tag = 'scoped memory for conv_bn_forward.1']
    #allocation4 [shape = 'u8[512]{0}', space=smem, size = 0x200, scoped, tag = 'input window, operand 2, single buffered']
    #allocation5 [shape = 's32[1]{0}', space=sflag, size = 0x4, scoped, tag = 'scoped memory for conv_bn_forward.1']
    #allocation6 [shape = 'u8[512]{0}', space=smem, size = 0x200, scoped, tag = 'input window, operand 3, single buffered']
    %9 = vsyncpa [#allocation3], 0
    %10 = vsyncpa [#allocation5], 0
    // Predicated region
    $region2: #{conv_bn_forward.1} parent=1 // pred_check
      _
    $region3: #{conv_bn_forward.1} parent=1 // pred_check_branch
      %12 = sbr.rel (0) target = $region5
    $region4: #{conv_bn_forward.1} parent=1 // pred_region
      _
    $region5: #{conv_bn_forward.1} parent=1 // pred_fallthru
      _
    // Predicated region
    $region6: #{conv_bn_forward.1} parent=1 // pred_check
      _
    $region7: #{conv_bn_forward.1} parent=1 // pred_check_branch
      %14 = sbr.rel (0) target = $region9
    $region8: #{conv_bn_forward.1} parent=1 // pred_region
      %16 = vsyncadd [#allocation3], 0
      %s18 = sshll.u32 %s1, 4
      %s19 = int_to_ptr.vmem [resolvable:$true] %s18
      %21 = dma.vmem_to_smem %s19, 32, [#allocation2], [#allocation3]
    $region9: #{conv_bn_forward.1} parent=1 // pred_fallthru
      _
    // Predicated region
    $region10: #{conv_bn_forward.1} parent=1 // pred_check
      _
    $region11: #{conv_bn_forward.1} parent=1 // pred_check_branch
      %23 = sbr.rel (0) target = $region13
    $region12: #{conv_bn_forward.1} parent=1 // pred_region
      %25 = vsyncadd [#allocation5], 0
      %s27 = sshll.u32 %s2, 4
      %s28 = int_to_ptr.vmem [resolvable:$true] %s27
      %30 = dma.vmem_to_smem %s28, 16, [#allocation4], [#allocation5]
    $region13: #{conv_bn_forward.1} parent=1 // pred_fallthru
      _
    // Predicated region
    $region14: #{conv_bn_forward.1} parent=1 // pred_check
      _
    $region15: #{conv_bn_forward.1} parent=1 // pred_check_branch
      %32 = sbr.rel (0) target = $region17
    $region16: #{conv_bn_forward.1} parent=1 // pred_region
      %34 = vsyncadd [#allocation5], 0
      %s36 = sshll.u32 %s3, 4
      %s37 = int_to_ptr.vmem [resolvable:$true] %s36
      %39 = dma.vmem_to_smem %s37, 16, [#allocation6], [#allocation5]
    $region17: #{conv_bn_forward.1} parent=1 // pred_fallthru
      _
    // Predicated region
    $region18: #{conv_bn_forward.1} parent=1 // pred_check
      _
    $region19: #{conv_bn_forward.1} parent=1 // pred_check_branch
      %41 = sbr.rel (0) target = $region21
    $region20: #{conv_bn_forward.1} parent=1 // pred_region
      %43 = dma.done [#allocation3], 32
    $region21: #{conv_bn_forward.1} parent=1 // pred_fallthru
      _
    // Predicated region
    $region22: #{conv_bn_forward.1} parent=1 // pred_check
      _
    $region23: #{conv_bn_forward.1} parent=1 // pred_check_branch
      %45 = sbr.rel (0) target = $region25
    $region24: #{conv_bn_forward.1} parent=1 // pred_region
      %47 = dma.done [#allocation5], 16
    $region25: #{conv_bn_forward.1} parent=1 // pred_fallthru
      _
    // Predicated region
    $region26: #{conv_bn_forward.1} parent=1 // pred_check
      _
    $region27: #{conv_bn_forward.1} parent=1 // pred_check_branch
      %49 = sbr.rel (0) target = $region29
    $region28: #{conv_bn_forward.1} parent=1 // pred_region
      %51 = dma.done [#allocation5], 16
    $region29: #{conv_bn_forward.1} parent=1 // pred_fallthru
      _
    %52 = sfence
    %v53 = vld [vmem:[%s0] sm:$0xf]
    %v54 = vld [vmem:[%s0 + $0x4] sm:$0xf]
    %v55 = vld [vmem:[%s0 + $0x8] sm:$0xf]
    %v56 = vld [vmem:[%s0 + $0xc] sm:$0xf]
    %v57 = vld [vmem:[%s0 + $0x10] sm:$0xf]
    %v58 = vld [vmem:[%s0 + $0x14] sm:$0xf]
    %v59 = vld [vmem:[%s0 + $0x18] sm:$0xf]
    %v60 = vld [vmem:[%s0 + $0x1c] sm:$0xf]
    %v61 = vld [vmem:[%s0 + $0x20] sm:$0xf]
    %v62 = vld [vmem:[%s0 + $0x24] sm:$0xf]
    %v63 = vld [vmem:[%s0 + $0x28] sm:$0xf]
    %v64 = vld [vmem:[%s0 + $0x2c] sm:$0xf]
    %s65 = sld [smem:[#allocation2]]
    %v66 = vstv %s65
    %v67 = vmul.f32 %v66, %v53
    %v68 = vmul.f32 %v66, %v54
    %v69 = vadd.f32 %v67, 0.0
    %v70 = vadd.f32 %v68, 0.0
    %s71 = sld [smem:[#allocation2 + $0x51]]
    %v72 = vstv %s71
    %v73 = vmul.f32 %v72, %v53
    %v74 = vmul.f32 %v72, %v54
    %v75 = vadd.f32 %v73, 0.0
    %v76 = vadd.f32 %v74, 0.0
    %s77 = sld [smem:[#allocation2 + $0xa2]]
    %v78 = vstv %s77
    %v79 = vmul.f32 %v78, %v53
    %v80 = vmul.f32 %v78, %v54
    %v81 = vadd.f32 %v79, 0.0
    %v82 = vadd.f32 %v80, 0.0
    %s83 = sld [smem:[#allocation2 + $0x1b]]
    %v84 = vstv %s83
    %v85 = vmul.f32 %v84, %v57
    %v86 = vmul.f32 %v84, %v58
    %v87 = vadd.f32 %v69, %v85
    %v88 = vadd.f32 %v70, %v86
    %s89 = sld [smem:[#allocation2 + $0x6c]]
    %v90 = vstv %s89
    %v91 = vmul.f32 %v90, %v57
    %v92 = vmul.f32 %v90, %v58
    %v93 = vadd.f32 %v75, %v91
    %v94 = vadd.f32 %v76, %v92
    %s95 = sld [smem:[#allocation2 + $0xbd]]
    %v96 = vstv %s95
    %v97 = vmul.f32 %v96, %v57
    %v98 = vmul.f32 %v96, %v58
    %v99 = vadd.f32 %v81, %v97
    %v100 = vadd.f32 %v82, %v98
    %s101 = sld [smem:[#allocation2 + $0x36]]
    %v102 = vstv %s101
    %v103 = vmul.f32 %v102, %v61
    %v104 = vmul.f32 %v102, %v62
    %v105 = vadd.f32 %v87, %v103
    %v106 = vadd.f32 %v88, %v104
    %s107 = sld [smem:[#allocation2 + $0x87]]
    %v108 = vstv %s107
    %v109 = vmul.f32 %v108, %v61
    %v110 = vmul.f32 %v108, %v62
    %v111 = vadd.f32 %v93, %v109
    %v112 = vadd.f32 %v94, %v110
    %s113 = sld [smem:[#allocation2 + $0xd8]]
    %v114 = vstv %s113
    %v115 = vmul.f32 %v114, %v61
    %v116 = vmul.f32 %v114, %v62
    %v117 = vadd.f32 %v99, %v115
    %v118 = vadd.f32 %v100, %v116
    %s119 = sld [smem:[#allocation2 + $0x1]]
    %v120 = vstv %s119
    %v121 = vmul.f32 %v120, %v53
    %v122 = vmul.f32 %v120, %v54
    %125 = vrot.lane.b32.xlu0 %v121, 127
    %v126 = vpop.permute.xlu0 %125
    %127 = vrot.lane.b32.xlu0 %v122, 127
    %v128 = vpop.permute.xlu0 %127
    %v131 = vadd.f32 %v105, %v126
    %v132 = vadd.f32 %v106, %v128
    %s133 = sld [smem:[#allocation2 + $0x52]]
    %v134 = vstv %s133
    %v135 = vmul.f32 %v134, %v53
    %v136 = vmul.f32 %v134, %v54
    %139 = vrot.lane.b32.xlu0 %v135, 127
    %v140 = vpop.permute.xlu0 %139
    %141 = vrot.lane.b32.xlu0 %v136, 127
    %v142 = vpop.permute.xlu0 %141
    %v145 = vadd.f32 %v111, %v140
    %v146 = vadd.f32 %v112, %v142
    %s147 = sld [smem:[#allocation2 + $0xa3]]
    %v148 = vstv %s147
    %v149 = vmul.f32 %v148, %v53
    %v150 = vmul.f32 %v148, %v54
    %153 = vrot.lane.b32.xlu0 %v149, 127
    %v154 = vpop.permute.xlu0 %153
    %155 = vrot.lane.b32.xlu0 %v150, 127
    %v156 = vpop.permute.xlu0 %155
    %v159 = vadd.f32 %v117, %v154
    %v160 = vadd.f32 %v118, %v156
    %s161 = sld [smem:[#allocation2 + $0x1c]]
    %v162 = vstv %s161
    %v163 = vmul.f32 %v162, %v57
    %v164 = vmul.f32 %v162, %v58
    %167 = vrot.lane.b32.xlu0 %v163, 127
    %v168 = vpop.permute.xlu0 %167
    %169 = vrot.lane.b32.xlu0 %v164, 127
    %v170 = vpop.permute.xlu0 %169
    %v173 = vadd.f32 %v131, %v168
    %v174 = vadd.f32 %v132, %v170
    %s175 = sld [smem:[#allocation2 + $0x6d]]
    %v176 = vstv %s175
    %v177 = vmul.f32 %v176, %v57
    %v178 = vmul.f32 %v176, %v58
    %181 = vrot.lane.b32.xlu0 %v177, 127
    %v182 = vpop.permute.xlu0 %181
    %183 = vrot.lane.b32.xlu0 %v178, 127
    %v184 = vpop.permute.xlu0 %183
    %v187 = vadd.f32 %v145, %v182
    %v188 = vadd.f32 %v146, %v184
    %s189 = sld [smem:[#allocation2 + $0xbe]]
    %v190 = vstv %s189
    %v191 = vmul.f32 %v190, %v57
    %v192 = vmul.f32 %v190, %v58
    %195 = vrot.lane.b32.xlu0 %v191, 127
    %v196 = vpop.permute.xlu0 %195
    %197 = vrot.lane.b32.xlu0 %v192, 127
    %v198 = vpop.permute.xlu0 %197
    %v201 = vadd.f32 %v159, %v196
    %v202 = vadd.f32 %v160, %v198
    %s203 = sld [smem:[#allocation2 + $0x37]]
    %v204 = vstv %s203
    %v205 = vmul.f32 %v204, %v61
    %v206 = vmul.f32 %v204, %v62
    %209 = vrot.lane.b32.xlu0 %v205, 127
    %v210 = vpop.permute.xlu0 %209
    %211 = vrot.lane.b32.xlu0 %v206, 127
    %v212 = vpop.permute.xlu0 %211
    %v215 = vadd.f32 %v173, %v210
    %v216 = vadd.f32 %v174, %v212
    %s217 = sld [smem:[#allocation2 + $0x88]]
    %v218 = vstv %s217
    %v219 = vmul.f32 %v218, %v61
    %v220 = vmul.f32 %v218, %v62
    %223 = vrot.lane.b32.xlu0 %v219, 127
    %v224 = vpop.permute.xlu0 %223
    %225 = vrot.lane.b32.xlu0 %v220, 127
    %v226 = vpop.permute.xlu0 %225
    %v229 = vadd.f32 %v187, %v224
    %v230 = vadd.f32 %v188, %v226
    %s231 = sld [smem:[#allocation2 + $0xd9]]
    %v232 = vstv %s231
    %v233 = vmul.f32 %v232, %v61
    %v234 = vmul.f32 %v232, %v62
    %237 = vrot.lane.b32.xlu0 %v233, 127
    %v238 = vpop.permute.xlu0 %237
    %239 = vrot.lane.b32.xlu0 %v234, 127
    %v240 = vpop.permute.xlu0 %239
    %v243 = vadd.f32 %v201, %v238
    %v244 = vadd.f32 %v202, %v240
    %s245 = sld [smem:[#allocation2 + $0x2]]
    %v246 = vstv %s245
    %v247 = vmul.f32 %v246, %v53
    %v248 = vmul.f32 %v246, %v54
    %251 = vrot.lane.b32.xlu0 %v247, 126
    %v252 = vpop.permute.xlu0 %251
    %253 = vrot.lane.b32.xlu0 %v248, 126
    %v254 = vpop.permute.xlu0 %253
    %v257 = vadd.f32 %v215, %v252
    %v258 = vadd.f32 %v216, %v254
    %s259 = sld [smem:[#allocation2 + $0x53]]
    %v260 = vstv %s259
    %v261 = vmul.f32 %v260, %v53
    %v262 = vmul.f32 %v260, %v54
    %265 = vrot.lane.b32.xlu0 %v261, 126
    %v266 = vpop.permute.xlu0 %265
    %267 = vrot.lane.b32.xlu0 %v262, 126
    %v268 = vpop.permute.xlu0 %267
    %v271 = vadd.f32 %v229, %v266
    %v272 = vadd.f32 %v230, %v268
    %s273 = sld [smem:[#allocation2 + $0xa4]]
    %v274 = vstv %s273
    %v275 = vmul.f32 %v274, %v53
    %v276 = vmul.f32 %v274, %v54
    %279 = vrot.lane.b32.xlu0 %v275, 126
    %v280 = vpop.permute.xlu0 %279
    %281 = vrot.lane.b32.xlu0 %v276, 126
    %v282 = vpop.permute.xlu0 %281
    %v285 = vadd.f32 %v243, %v280
    %v286 = vadd.f32 %v244, %v282
    %s287 = sld [smem:[#allocation2 + $0x1d]]
    %v288 = vstv %s287
    %v289 = vmul.f32 %v288, %v57
    %v290 = vmul.f32 %v288, %v58
    %293 = vrot.lane.b32.xlu0 %v289, 126
    %v294 = vpop.permute.xlu0 %293
    %295 = vrot.lane.b32.xlu0 %v290, 126
    %v296 = vpop.permute.xlu0 %295
    %v299 = vadd.f32 %v257, %v294
    %v300 = vadd.f32 %v258, %v296
    %s301 = sld [smem:[#allocation2 + $0x6e]]
    %v302 = vstv %s301
    %v303 = vmul.f32 %v302, %v57
    %v304 = vmul.f32 %v302, %v58
    %307 = vrot.lane.b32.xlu0 %v303, 126
    %v308 = vpop.permute.xlu0 %307
    %309 = vrot.lane.b32.xlu0 %v304, 126
    %v310 = vpop.permute.xlu0 %309
    %v313 = vadd.f32 %v271, %v308
    %v314 = vadd.f32 %v272, %v310
    %s315 = sld [smem:[#allocation2 + $0xbf]]
    %v316 = vstv %s315
    %v317 = vmul.f32 %v316, %v57
    %v318 = vmul.f32 %v316, %v58
    %321 = vrot.lane.b32.xlu0 %v317, 126
    %v322 = vpop.permute.xlu0 %321
    %323 = vrot.lane.b32.xlu0 %v318, 126
    %v324 = vpop.permute.xlu0 %323
    %v327 = vadd.f32 %v285, %v322
    %v328 = vadd.f32 %v286, %v324
    %s329 = sld [smem:[#allocation2 + $0x38]]
    %v330 = vstv %s329
    %v331 = vmul.f32 %v330, %v61
    %v332 = vmul.f32 %v330, %v62
    %335 = vrot.lane.b32.xlu0 %v331, 126
    %v336 = vpop.permute.xlu0 %335
    %337 = vrot.lane.b32.xlu0 %v332, 126
    %v338 = vpop.permute.xlu0 %337
    %v341 = vadd.f32 %v299, %v336
    %v342 = vadd.f32 %v300, %v338
    %s343 = sld [smem:[#allocation2 + $0x89]]
    %v344 = vstv %s343
    %v345 = vmul.f32 %v344, %v61
    %v346 = vmul.f32 %v344, %v62
    %349 = vrot.lane.b32.xlu0 %v345, 126
    %v350 = vpop.permute.xlu0 %349
    %351 = vrot.lane.b32.xlu0 %v346, 126
    %v352 = vpop.permute.xlu0 %351
    %v355 = vadd.f32 %v313, %v350
    %v356 = vadd.f32 %v314, %v352
    %s357 = sld [smem:[#allocation2 + $0xda]]
    %v358 = vstv %s357
    %v359 = vmul.f32 %v358, %v61
    %v360 = vmul.f32 %v358, %v62
    %363 = vrot.lane.b32.xlu0 %v359, 126
    %v364 = vpop.permute.xlu0 %363
    %365 = vrot.lane.b32.xlu0 %v360, 126
    %v366 = vpop.permute.xlu0 %365
    %v369 = vadd.f32 %v327, %v364
    %v370 = vadd.f32 %v328, %v366
    %s371 = sld [smem:[#allocation2 + $0x3]]
    %v372 = vstv %s371
    %v373 = vmul.f32 %v372, %v53
    %v374 = vmul.f32 %v372, %v54
    %v377 = vrot.slane %v373, 1
    %v378 = vrot.slane %v374, 1
    %v381 = vadd.f32 %v341, %v377
    %v382 = vadd.f32 %v342, %v378
    %s383 = sld [smem:[#allocation2 + $0x54]]
    %v384 = vstv %s383
    %v385 = vmul.f32 %v384, %v53
    %v386 = vmul.f32 %v384, %v54
    %v389 = vrot.slane %v385, 1
    %v390 = vrot.slane %v386, 1
    %v393 = vadd.f32 %v355, %v389
    %v394 = vadd.f32 %v356, %v390
    %s395 = sld [smem:[#allocation2 + $0xa5]]
    %v396 = vstv %s395
    %v397 = vmul.f32 %v396, %v53
    %v398 = vmul.f32 %v396, %v54
    %v401 = vrot.slane %v397, 1
    %v402 = vrot.slane %v398, 1
    %v405 = vadd.f32 %v369, %v401
    %v406 = vadd.f32 %v370, %v402
    %s407 = sld [smem:[#allocation2 + $0x1e]]
    %v408 = vstv %s407
    %v409 = vmul.f32 %v408, %v57
    %v410 = vmul.f32 %v408, %v58
    %v413 = vrot.slane %v409, 1
    %v414 = vrot.slane %v410, 1
    %v417 = vadd.f32 %v381, %v413
    %v418 = vadd.f32 %v382, %v414
    %s419 = sld [smem:[#allocation2 + $0x6f]]
    %v420 = vstv %s419
    %v421 = vmul.f32 %v420, %v57
    %v422 = vmul.f32 %v420, %v58
    %v425 = vrot.slane %v421, 1
    %v426 = vrot.slane %v422, 1
    %v429 = vadd.f32 %v393, %v425
    %v430 = vadd.f32 %v394, %v426
    %s431 = sld [smem:[#allocation2 + $0xc0]]
    %v432 = vstv %s431
    %v433 = vmul.f32 %v432, %v57
    %v434 = vmul.f32 %v432, %v58
    %v437 = vrot.slane %v433, 1
    %v438 = vrot.slane %v434, 1
    %v441 = vadd.f32 %v405, %v437
    %v442 = vadd.f32 %v406, %v438
    %s443 = sld [smem:[#allocation2 + $0x39]]
    %v444 = vstv %s443
    %v445 = vmul.f32 %v444, %v61
    %v446 = vmul.f32 %v444, %v62
    %v449 = vrot.slane %v445, 1
    %v450 = vrot.slane %v446, 1
    %v453 = vadd.f32 %v417, %v449
    %v454 = vadd.f32 %v418, %v450
    %s455 = sld [smem:[#allocation2 + $0x8a]]
    %v456 = vstv %s455
    %v457 = vmul.f32 %v456, %v61
    %v458 = vmul.f32 %v456, %v62
    %v461 = vrot.slane %v457, 1
    %v462 = vrot.slane %v458, 1
    %v465 = vadd.f32 %v429, %v461
    %v466 = vadd.f32 %v430, %v462
    %s467 = sld [smem:[#allocation2 + $0xdb]]
    %v468 = vstv %s467
    %v469 = vmul.f32 %v468, %v61
    %v470 = vmul.f32 %v468, %v62
    %v473 = vrot.slane %v469, 1
    %v474 = vrot.slane %v470, 1
    %v477 = vadd.f32 %v441, %v473
    %v478 = vadd.f32 %v442, %v474
    %s479 = sld [smem:[#allocation2 + $0x4]]
    %v480 = vstv %s479
    %v481 = vmul.f32 %v480, %v53
    %v482 = vmul.f32 %v480, %v54
    %v485 = vrot.slane %v481, 1
    %v486 = vrot.slane %v482, 1
    %487 = vrot.lane.b32.xlu0 %v485, 127
    %v488 = vpop.permute.xlu0 %487
    %489 = vrot.lane.b32.xlu0 %v486, 127
    %v490 = vpop.permute.xlu0 %489
    %v493 = vadd.f32 %v453, %v488
    %v494 = vadd.f32 %v454, %v490
    %s495 = sld [smem:[#allocation2 + $0x55]]
    %v496 = vstv %s495
    %v497 = vmul.f32 %v496, %v53
    %v498 = vmul.f32 %v496, %v54
    %v501 = vrot.slane %v497, 1
    %v502 = vrot.slane %v498, 1
    %503 = vrot.lane.b32.xlu0 %v501, 127
    %v504 = vpop.permute.xlu0 %503
    %505 = vrot.lane.b32.xlu0 %v502, 127
    %v506 = vpop.permute.xlu0 %505
    %v509 = vadd.f32 %v465, %v504
    %v510 = vadd.f32 %v466, %v506
    %s511 = sld [smem:[#allocation2 + $0xa6]]
    %v512 = vstv %s511
    %v513 = vmul.f32 %v512, %v53
    %v514 = vmul.f32 %v512, %v54
    %v517 = vrot.slane %v513, 1
    %v518 = vrot.slane %v514, 1
    %519 = vrot.lane.b32.xlu0 %v517, 127
    %v520 = vpop.permute.xlu0 %519
    %521 = vrot.lane.b32.xlu0 %v518, 127
    %v522 = vpop.permute.xlu0 %521
    %v525 = vadd.f32 %v477, %v520
    %v526 = vadd.f32 %v478, %v522
    %s527 = sld [smem:[#allocation2 + $0x1f]]
    %v528 = vstv %s527
    %v529 = vmul.f32 %v528, %v57
    %v530 = vmul.f32 %v528, %v58
    %v533 = vrot.slane %v529, 1
    %v534 = vrot.slane %v530, 1
    %535 = vrot.lane.b32.xlu0 %v533, 127
    %v536 = vpop.permute.xlu0 %535
    %537 = vrot.lane.b32.xlu0 %v534, 127
    %v538 = vpop.permute.xlu0 %537
    %v541 = vadd.f32 %v493, %v536
    %v542 = vadd.f32 %v494, %v538
    %s543 = sld [smem:[#allocation2 + $0x70]]
    %v544 = vstv %s543
    %v545 = vmul.f32 %v544, %v57
    %v546 = vmul.f32 %v544, %v58
    %v549 = vrot.slane %v545, 1
    %v550 = vrot.slane %v546, 1
    %551 = vrot.lane.b32.xlu0 %v549, 127
    %v552 = vpop.permute.xlu0 %551
    %553 = vrot.lane.b32.xlu0 %v550, 127
    %v554 = vpop.permute.xlu0 %553
    %v557 = vadd.f32 %v509, %v552
    %v558 = vadd.f32 %v510, %v554
    %s559 = sld [smem:[#allocation2 + $0xc1]]
    %v560 = vstv %s559
    %v561 = vmul.f32 %v560, %v57
    %v562 = vmul.f32 %v560, %v58
    %v565 = vrot.slane %v561, 1
    %v566 = vrot.slane %v562, 1
    %567 = vrot.lane.b32.xlu0 %v565, 127
    %v568 = vpop.permute.xlu0 %567
    %569 = vrot.lane.b32.xlu0 %v566, 127
    %v570 = vpop.permute.xlu0 %569
    %v573 = vadd.f32 %v525, %v568
    %v574 = vadd.f32 %v526, %v570
    %s575 = sld [smem:[#allocation2 + $0x3a]]
    %v576 = vstv %s575
    %v577 = vmul.f32 %v576, %v61
    %v578 = vmul.f32 %v576, %v62
    %v581 = vrot.slane %v577, 1
    %v582 = vrot.slane %v578, 1
    %583 = vrot.lane.b32.xlu0 %v581, 127
    %v584 = vpop.permute.xlu0 %583
    %585 = vrot.lane.b32.xlu0 %v582, 127
    %v586 = vpop.permute.xlu0 %585
    %v589 = vadd.f32 %v541, %v584
    %v590 = vadd.f32 %v542, %v586
    %s591 = sld [smem:[#allocation2 + $0x8b]]
    %v592 = vstv %s591
    %v593 = vmul.f32 %v592, %v61
    %v594 = vmul.f32 %v592, %v62
    %v597 = vrot.slane %v593, 1
    %v598 = vrot.slane %v594, 1
    %599 = vrot.lane.b32.xlu0 %v597, 127
    %v600 = vpop.permute.xlu0 %599
    %601 = vrot.lane.b32.xlu0 %v598, 127
    %v602 = vpop.permute.xlu0 %601
    %v605 = vadd.f32 %v557, %v600
    %v606 = vadd.f32 %v558, %v602
    %s607 = sld [smem:[#allocation2 + $0xdc]]
    %v608 = vstv %s607
    %v609 = vmul.f32 %v608, %v61
    %v610 = vmul.f32 %v608, %v62
    %v613 = vrot.slane %v609, 1
    %v614 = vrot.slane %v610, 1
    %615 = vrot.lane.b32.xlu0 %v613, 127
    %v616 = vpop.permute.xlu0 %615
    %617 = vrot.lane.b32.xlu0 %v614, 127
    %v618 = vpop.permute.xlu0 %617
    %v621 = vadd.f32 %v573, %v616
    %v622 = vadd.f32 %v574, %v618
    %s623 = sld [smem:[#allocation2 + $0x5]]
    %v624 = vstv %s623
    %v625 = vmul.f32 %v624, %v53
    %v626 = vmul.f32 %v624, %v54
    %v629 = vrot.slane %v625, 1
    %v630 = vrot.slane %v626, 1
    %631 = vrot.lane.b32.xlu0 %v629, 126
    %v632 = vpop.permute.xlu0 %631
    %633 = vrot.lane.b32.xlu0 %v630, 126
    %v634 = vpop.permute.xlu0 %633
    %v637 = vadd.f32 %v589, %v632
    %v638 = vadd.f32 %v590, %v634
    %s639 = sld [smem:[#allocation2 + $0x56]]
    %v640 = vstv %s639
    %v641 = vmul.f32 %v640, %v53
    %v642 = vmul.f32 %v640, %v54
    %v645 = vrot.slane %v641, 1
    %v646 = vrot.slane %v642, 1
    %647 = vrot.lane.b32.xlu0 %v645, 126
    %v648 = vpop.permute.xlu0 %647
    %649 = vrot.lane.b32.xlu0 %v646, 126
    %v650 = vpop.permute.xlu0 %649
    %v653 = vadd.f32 %v605, %v648
    %v654 = vadd.f32 %v606, %v650
    %s655 = sld [smem:[#allocation2 + $0xa7]]
    %v656 = vstv %s655
    %v657 = vmul.f32 %v656, %v53
    %v658 = vmul.f32 %v656, %v54
    %v661 = vrot.slane %v657, 1
    %v662 = vrot.slane %v658, 1
    %663 = vrot.lane.b32.xlu0 %v661, 126
    %v664 = vpop.permute.xlu0 %663
    %665 = vrot.lane.b32.xlu0 %v662, 126
    %v666 = vpop.permute.xlu0 %665
    %v669 = vadd.f32 %v621, %v664
    %v670 = vadd.f32 %v622, %v666
    %s671 = sld [smem:[#allocation2 + $0x20]]
    %v672 = vstv %s671
    %v673 = vmul.f32 %v672, %v57
    %v674 = vmul.f32 %v672, %v58
    %v677 = vrot.slane %v673, 1
    %v678 = vrot.slane %v674, 1
    %679 = vrot.lane.b32.xlu0 %v677, 126
    %v680 = vpop.permute.xlu0 %679
    %681 = vrot.lane.b32.xlu0 %v678, 126
    %v682 = vpop.permute.xlu0 %681
    %v685 = vadd.f32 %v637, %v680
    %v686 = vadd.f32 %v638, %v682
    %s687 = sld [smem:[#allocation2 + $0x71]]
    %v688 = vstv %s687
    %v689 = vmul.f32 %v688, %v57
    %v690 = vmul.f32 %v688, %v58
    %v693 = vrot.slane %v689, 1
    %v694 = vrot.slane %v690, 1
    %695 = vrot.lane.b32.xlu0 %v693, 126
    %v696 = vpop.permute.xlu0 %695
    %697 = vrot.lane.b32.xlu0 %v694, 126
    %v698 = vpop.permute.xlu0 %697
    %v701 = vadd.f32 %v653, %v696
    %v702 = vadd.f32 %v654, %v698
    %s703 = sld [smem:[#allocation2 + $0xc2]]
    %v704 = vstv %s703
    %v705 = vmul.f32 %v704, %v57
    %v706 = vmul.f32 %v704, %v58
    %v709 = vrot.slane %v705, 1
    %v710 = vrot.slane %v706, 1
    %711 = vrot.lane.b32.xlu0 %v709, 126
    %v712 = vpop.permute.xlu0 %711
    %713 = vrot.lane.b32.xlu0 %v710, 126
    %v714 = vpop.permute.xlu0 %713
    %v717 = vadd.f32 %v669, %v712
    %v718 = vadd.f32 %v670, %v714
    %s719 = sld [smem:[#allocation2 + $0x3b]]
    %v720 = vstv %s719
    %v721 = vmul.f32 %v720, %v61
    %v722 = vmul.f32 %v720, %v62
    %v725 = vrot.slane %v721, 1
    %v726 = vrot.slane %v722, 1
    %727 = vrot.lane.b32.xlu0 %v725, 126
    %v728 = vpop.permute.xlu0 %727
    %729 = vrot.lane.b32.xlu0 %v726, 126
    %v730 = vpop.permute.xlu0 %729
    %v733 = vadd.f32 %v685, %v728
    %v734 = vadd.f32 %v686, %v730
    %s735 = sld [smem:[#allocation2 + $0x8c]]
    %v736 = vstv %s735
    %v737 = vmul.f32 %v736, %v61
    %v738 = vmul.f32 %v736, %v62
    %v741 = vrot.slane %v737, 1
    %v742 = vrot.slane %v738, 1
    %743 = vrot.lane.b32.xlu0 %v741, 126
    %v744 = vpop.permute.xlu0 %743
    %745 = vrot.lane.b32.xlu0 %v742, 126
    %v746 = vpop.permute.xlu0 %745
    %v749 = vadd.f32 %v701, %v744
    %v750 = vadd.f32 %v702, %v746
    %s751 = sld [smem:[#allocation2 + $0xdd]]
    %v752 = vstv %s751
    %v753 = vmul.f32 %v752, %v61
    %v754 = vmul.f32 %v752, %v62
    %v757 = vrot.slane %v753, 1
    %v758 = vrot.slane %v754, 1
    %759 = vrot.lane.b32.xlu0 %v757, 126
    %v760 = vpop.permute.xlu0 %759
    %761 = vrot.lane.b32.xlu0 %v758, 126
    %v762 = vpop.permute.xlu0 %761
    %v765 = vadd.f32 %v717, %v760
    %v766 = vadd.f32 %v718, %v762
    %s767 = sld [smem:[#allocation2 + $0x6]]
    %v768 = vstv %s767
    %v769 = vmul.f32 %v768, %v53
    %v770 = vmul.f32 %v768, %v54
    %v773 = vrot.slane %v769, 2
    %v774 = vrot.slane %v770, 2
    %v777 = vadd.f32 %v733, %v773
    %v778 = vadd.f32 %v734, %v774
    %s779 = sld [smem:[#allocation2 + $0x57]]
    %v780 = vstv %s779
    %v781 = vmul.f32 %v780, %v53
    %v782 = vmul.f32 %v780, %v54
    %v785 = vrot.slane %v781, 2
    %v786 = vrot.slane %v782, 2
    %v789 = vadd.f32 %v749, %v785
    %v790 = vadd.f32 %v750, %v786
    %s791 = sld [smem:[#allocation2 + $0xa8]]
    %v792 = vstv %s791
    %v793 = vmul.f32 %v792, %v53
    %v794 = vmul.f32 %v792, %v54
    %v797 = vrot.slane %v793, 2
    %v798 = vrot.slane %v794, 2
    %v801 = vadd.f32 %v765, %v797
    %v802 = vadd.f32 %v766, %v798
    %s803 = sld [smem:[#allocation2 + $0x21]]
    %v804 = vstv %s803
    %v805 = vmul.f32 %v804, %v57
    %v806 = vmul.f32 %v804, %v58
    %v809 = vrot.slane %v805, 2
    %v810 = vrot.slane %v806, 2
    %v813 = vadd.f32 %v777, %v809
    %v814 = vadd.f32 %v778, %v810
    %s815 = sld [smem:[#allocation2 + $0x72]]
    %v816 = vstv %s815
    %v817 = vmul.f32 %v816, %v57
    %v818 = vmul.f32 %v816, %v58
    %v821 = vrot.slane %v817, 2
    %v822 = vrot.slane %v818, 2
    %v825 = vadd.f32 %v789, %v821
    %v826 = vadd.f32 %v790, %v822
    %s827 = sld [smem:[#allocation2 + $0xc3]]
    %v828 = vstv %s827
    %v829 = vmul.f32 %v828, %v57
    %v830 = vmul.f32 %v828, %v58
    %v833 = vrot.slane %v829, 2
    %v834 = vrot.slane %v830, 2
    %v837 = vadd.f32 %v801, %v833
    %v838 = vadd.f32 %v802, %v834
    %s839 = sld [smem:[#allocation2 + $0x3c]]
    %v840 = vstv %s839
    %v841 = vmul.f32 %v840, %v61
    %v842 = vmul.f32 %v840, %v62
    %v845 = vrot.slane %v841, 2
    %v846 = vrot.slane %v842, 2
    %v849 = vadd.f32 %v813, %v845
    %v850 = vadd.f32 %v814, %v846
    %s851 = sld [smem:[#allocation2 + $0x8d]]
    %v852 = vstv %s851
    %v853 = vmul.f32 %v852, %v61
    %v854 = vmul.f32 %v852, %v62
    %v857 = vrot.slane %v853, 2
    %v858 = vrot.slane %v854, 2
    %v861 = vadd.f32 %v825, %v857
    %v862 = vadd.f32 %v826, %v858
    %s863 = sld [smem:[#allocation2 + $0xde]]
    %v864 = vstv %s863
    %v865 = vmul.f32 %v864, %v61
    %v866 = vmul.f32 %v864, %v62
    %v869 = vrot.slane %v865, 2
    %v870 = vrot.slane %v866, 2
    %v873 = vadd.f32 %v837, %v869
    %v874 = vadd.f32 %v838, %v870
    %s875 = sld [smem:[#allocation2 + $0x7]]
    %v876 = vstv %s875
    %v877 = vmul.f32 %v876, %v53
    %v878 = vmul.f32 %v876, %v54
    %v881 = vrot.slane %v877, 2
    %v882 = vrot.slane %v878, 2
    %883 = vrot.lane.b32.xlu0 %v881, 127
    %v884 = vpop.permute.xlu0 %883
    %885 = vrot.lane.b32.xlu0 %v882, 127
    %v886 = vpop.permute.xlu0 %885
    %v889 = vadd.f32 %v849, %v884
    %v890 = vadd.f32 %v850, %v886
    %s891 = sld [smem:[#allocation2 + $0x58]]
    %v892 = vstv %s891
    %v893 = vmul.f32 %v892, %v53
    %v894 = vmul.f32 %v892, %v54
    %v897 = vrot.slane %v893, 2
    %v898 = vrot.slane %v894, 2
    %899 = vrot.lane.b32.xlu0 %v897, 127
    %v900 = vpop.permute.xlu0 %899
    %901 = vrot.lane.b32.xlu0 %v898, 127
    %v902 = vpop.permute.xlu0 %901
    %v905 = vadd.f32 %v861, %v900
    %v906 = vadd.f32 %v862, %v902
    %s907 = sld [smem:[#allocation2 + $0xa9]]
    %v908 = vstv %s907
    %v909 = vmul.f32 %v908, %v53
    %v910 = vmul.f32 %v908, %v54
    %v913 = vrot.slane %v909, 2
    %v914 = vrot.slane %v910, 2
    %915 = vrot.lane.b32.xlu0 %v913, 127
    %v916 = vpop.permute.xlu0 %915
    %917 = vrot.lane.b32.xlu0 %v914, 127
    %v918 = vpop.permute.xlu0 %917
    %v921 = vadd.f32 %v873, %v916
    %v922 = vadd.f32 %v874, %v918
    %s923 = sld [smem:[#allocation2 + $0x22]]
    %v924 = vstv %s923
    %v925 = vmul.f32 %v924, %v57
    %v926 = vmul.f32 %v924, %v58
    %v929 = vrot.slane %v925, 2
    %v930 = vrot.slane %v926, 2
    %931 = vrot.lane.b32.xlu0 %v929, 127
    %v932 = vpop.permute.xlu0 %931
    %933 = vrot.lane.b32.xlu0 %v930, 127
    %v934 = vpop.permute.xlu0 %933
    %v937 = vadd.f32 %v889, %v932
    %v938 = vadd.f32 %v890, %v934
    %s939 = sld [smem:[#allocation2 + $0x73]]
    %v940 = vstv %s939
    %v941 = vmul.f32 %v940, %v57
    %v942 = vmul.f32 %v940, %v58
    %v945 = vrot.slane %v941, 2
    %v946 = vrot.slane %v942, 2
    %947 = vrot.lane.b32.xlu0 %v945, 127
    %v948 = vpop.permute.xlu0 %947
    %949 = vrot.lane.b32.xlu0 %v946, 127
    %v950 = vpop.permute.xlu0 %949
    %v953 = vadd.f32 %v905, %v948
    %v954 = vadd.f32 %v906, %v950
    %s955 = sld [smem:[#allocation2 + $0xc4]]
    %v956 = vstv %s955
    %v957 = vmul.f32 %v956, %v57
    %v958 = vmul.f32 %v956, %v58
    %v961 = vrot.slane %v957, 2
    %v962 = vrot.slane %v958, 2
    %963 = vrot.lane.b32.xlu0 %v961, 127
    %v964 = vpop.permute.xlu0 %963
    %965 = vrot.lane.b32.xlu0 %v962, 127
    %v966 = vpop.permute.xlu0 %965
    %v969 = vadd.f32 %v921, %v964
    %v970 = vadd.f32 %v922, %v966
    %s971 = sld [smem:[#allocation2 + $0x3d]]
    %v972 = vstv %s971
    %v973 = vmul.f32 %v972, %v61
    %v974 = vmul.f32 %v972, %v62
    %v977 = vrot.slane %v973, 2
    %v978 = vrot.slane %v974, 2
    %979 = vrot.lane.b32.xlu0 %v977, 127
    %v980 = vpop.permute.xlu0 %979
    %981 = vrot.lane.b32.xlu0 %v978, 127
    %v982 = vpop.permute.xlu0 %981
    %v985 = vadd.f32 %v937, %v980
    %v986 = vadd.f32 %v938, %v982
    %s987 = sld [smem:[#allocation2 + $0x8e]]
    %v988 = vstv %s987
    %v989 = vmul.f32 %v988, %v61
    %v990 = vmul.f32 %v988, %v62
    %v993 = vrot.slane %v989, 2
    %v994 = vrot.slane %v990, 2
    %995 = vrot.lane.b32.xlu0 %v993, 127
    %v996 = vpop.permute.xlu0 %995
    %997 = vrot.lane.b32.xlu0 %v994, 127
    %v998 = vpop.permute.xlu0 %997
    %v1001 = vadd.f32 %v953, %v996
    %v1002 = vadd.f32 %v954, %v998
    %s1003 = sld [smem:[#allocation2 + $0xdf]]
    %v1004 = vstv %s1003
    %v1005 = vmul.f32 %v1004, %v61
    %v1006 = vmul.f32 %v1004, %v62
    %v1009 = vrot.slane %v1005, 2
    %v1010 = vrot.slane %v1006, 2
    %1011 = vrot.lane.b32.xlu0 %v1009, 127
    %v1012 = vpop.permute.xlu0 %1011
    %1013 = vrot.lane.b32.xlu0 %v1010, 127
    %v1014 = vpop.permute.xlu0 %1013
    %v1017 = vadd.f32 %v969, %v1012
    %v1018 = vadd.f32 %v970, %v1014
    %s1019 = sld [smem:[#allocation2 + $0x8]]
    %v1020 = vstv %s1019
    %v1021 = vmul.f32 %v1020, %v53
    %v1022 = vmul.f32 %v1020, %v54
    %v1025 = vrot.slane %v1021, 2
    %v1026 = vrot.slane %v1022, 2
    %1027 = vrot.lane.b32.xlu0 %v1025, 126
    %v1028 = vpop.permute.xlu0 %1027
    %1029 = vrot.lane.b32.xlu0 %v1026, 126
    %v1030 = vpop.permute.xlu0 %1029
    %v1033 = vadd.f32 %v985, %v1028
    %v1034 = vadd.f32 %v986, %v1030
    %s1035 = sld [smem:[#allocation2 + $0x59]]
    %v1036 = vstv %s1035
    %v1037 = vmul.f32 %v1036, %v53
    %v1038 = vmul.f32 %v1036, %v54
    %v1041 = vrot.slane %v1037, 2
    %v1042 = vrot.slane %v1038, 2
    %1043 = vrot.lane.b32.xlu0 %v1041, 126
    %v1044 = vpop.permute.xlu0 %1043
    %1045 = vrot.lane.b32.xlu0 %v1042, 126
    %v1046 = vpop.permute.xlu0 %1045
    %v1049 = vadd.f32 %v1001, %v1044
    %v1050 = vadd.f32 %v1002, %v1046
    %s1051 = sld [smem:[#allocation2 + $0xaa]]
    %v1052 = vstv %s1051
    %v1053 = vmul.f32 %v1052, %v53
    %v1054 = vmul.f32 %v1052, %v54
    %v1057 = vrot.slane %v1053, 2
    %v1058 = vrot.slane %v1054, 2
    %1059 = vrot.lane.b32.xlu0 %v1057, 126
    %v1060 = vpop.permute.xlu0 %1059
    %1061 = vrot.lane.b32.xlu0 %v1058, 126
    %v1062 = vpop.permute.xlu0 %1061
    %v1065 = vadd.f32 %v1017, %v1060
    %v1066 = vadd.f32 %v1018, %v1062
    %s1067 = sld [smem:[#allocation2 + $0x23]]
    %v1068 = vstv %s1067
    %v1069 = vmul.f32 %v1068, %v57
    %v1070 = vmul.f32 %v1068, %v58
    %v1073 = vrot.slane %v1069, 2
    %v1074 = vrot.slane %v1070, 2
    %1075 = vrot.lane.b32.xlu0 %v1073, 126
    %v1076 = vpop.permute.xlu0 %1075
    %1077 = vrot.lane.b32.xlu0 %v1074, 126
    %v1078 = vpop.permute.xlu0 %1077
    %v1081 = vadd.f32 %v1033, %v1076
    %v1082 = vadd.f32 %v1034, %v1078
    %s1083 = sld [smem:[#allocation2 + $0x74]]
    %v1084 = vstv %s1083
    %v1085 = vmul.f32 %v1084, %v57
    %v1086 = vmul.f32 %v1084, %v58
    %v1089 = vrot.slane %v1085, 2
    %v1090 = vrot.slane %v1086, 2
    %1091 = vrot.lane.b32.xlu0 %v1089, 126
    %v1092 = vpop.permute.xlu0 %1091
    %1093 = vrot.lane.b32.xlu0 %v1090, 126
    %v1094 = vpop.permute.xlu0 %1093
    %v1097 = vadd.f32 %v1049, %v1092
    %v1098 = vadd.f32 %v1050, %v1094
    %s1099 = sld [smem:[#allocation2 + $0xc5]]
    %v1100 = vstv %s1099
    %v1101 = vmul.f32 %v1100, %v57
    %v1102 = vmul.f32 %v1100, %v58
    %v1105 = vrot.slane %v1101, 2
    %v1106 = vrot.slane %v1102, 2
    %1107 = vrot.lane.b32.xlu0 %v1105, 126
    %v1108 = vpop.permute.xlu0 %1107
    %1109 = vrot.lane.b32.xlu0 %v1106, 126
    %v1110 = vpop.permute.xlu0 %1109
    %v1113 = vadd.f32 %v1065, %v1108
    %v1114 = vadd.f32 %v1066, %v1110
    %s1115 = sld [smem:[#allocation2 + $0x3e]]
    %v1116 = vstv %s1115
    %v1117 = vmul.f32 %v1116, %v61
    %v1118 = vmul.f32 %v1116, %v62
    %v1121 = vrot.slane %v1117, 2
    %v1122 = vrot.slane %v1118, 2
    %1123 = vrot.lane.b32.xlu0 %v1121, 126
    %v1124 = vpop.permute.xlu0 %1123
    %1125 = vrot.lane.b32.xlu0 %v1122, 126
    %v1126 = vpop.permute.xlu0 %1125
    %v1129 = vadd.f32 %v1081, %v1124
    %v1130 = vadd.f32 %v1082, %v1126
    %s1131 = sld [smem:[#allocation2 + $0x8f]]
    %v1132 = vstv %s1131
    %v1133 = vmul.f32 %v1132, %v61
    %v1134 = vmul.f32 %v1132, %v62
    %v1137 = vrot.slane %v1133, 2
    %v1138 = vrot.slane %v1134, 2
    %1139 = vrot.lane.b32.xlu0 %v1137, 126
    %v1140 = vpop.permute.xlu0 %1139
    %1141 = vrot.lane.b32.xlu0 %v1138, 126
    %v1142 = vpop.permute.xlu0 %1141
    %v1145 = vadd.f32 %v1097, %v1140
    %v1146 = vadd.f32 %v1098, %v1142
    %s1147 = sld [smem:[#allocation2 + $0xe0]]
    %v1148 = vstv %s1147
    %v1149 = vmul.f32 %v1148, %v61
    %v1150 = vmul.f32 %v1148, %v62
    %v1153 = vrot.slane %v1149, 2
    %v1154 = vrot.slane %v1150, 2
    %1155 = vrot.lane.b32.xlu0 %v1153, 126
    %v1156 = vpop.permute.xlu0 %1155
    %1157 = vrot.lane.b32.xlu0 %v1154, 126
    %v1158 = vpop.permute.xlu0 %1157
    %v1161 = vadd.f32 %v1113, %v1156
    %v1162 = vadd.f32 %v1114, %v1158
    %s1163 = sld [smem:[#allocation2 + $0x9]]
    %v1164 = vstv %s1163
    %v1165 = vmul.f32 %v1164, %v54
    %v1166 = vmul.f32 %v1164, %v55
    %v1167 = vadd.f32 %v1129, %v1165
    %v1168 = vadd.f32 %v1130, %v1166
    %s1169 = sld [smem:[#allocation2 + $0x5a]]
    %v1170 = vstv %s1169
    %v1171 = vmul.f32 %v1170, %v54
    %v1172 = vmul.f32 %v1170, %v55
    %v1173 = vadd.f32 %v1145, %v1171
    %v1174 = vadd.f32 %v1146, %v1172
    %s1175 = sld [smem:[#allocation2 + $0xab]]
    %v1176 = vstv %s1175
    %v1177 = vmul.f32 %v1176, %v54
    %v1178 = vmul.f32 %v1176, %v55
    %v1179 = vadd.f32 %v1161, %v1177
    %v1180 = vadd.f32 %v1162, %v1178
    %s1181 = sld [smem:[#allocation2 + $0x24]]
    %v1182 = vstv %s1181
    %v1183 = vmul.f32 %v1182, %v58
    %v1184 = vmul.f32 %v1182, %v59
    %v1185 = vadd.f32 %v1167, %v1183
    %v1186 = vadd.f32 %v1168, %v1184
    %s1187 = sld [smem:[#allocation2 + $0x75]]
    %v1188 = vstv %s1187
    %v1189 = vmul.f32 %v1188, %v58
    %v1190 = vmul.f32 %v1188, %v59
    %v1191 = vadd.f32 %v1173, %v1189
    %v1192 = vadd.f32 %v1174, %v1190
    %s1193 = sld [smem:[#allocation2 + $0xc6]]
    %v1194 = vstv %s1193
    %v1195 = vmul.f32 %v1194, %v58
    %v1196 = vmul.f32 %v1194, %v59
    %v1197 = vadd.f32 %v1179, %v1195
    %v1198 = vadd.f32 %v1180, %v1196
    %s1199 = sld [smem:[#allocation2 + $0x3f]]
    %v1200 = vstv %s1199
    %v1201 = vmul.f32 %v1200, %v62
    %v1202 = vmul.f32 %v1200, %v63
    %v1203 = vadd.f32 %v1185, %v1201
    %v1204 = vadd.f32 %v1186, %v1202
    %s1205 = sld [smem:[#allocation2 + $0x90]]
    %v1206 = vstv %s1205
    %v1207 = vmul.f32 %v1206, %v62
    %v1208 = vmul.f32 %v1206, %v63
    %v1209 = vadd.f32 %v1191, %v1207
    %v1210 = vadd.f32 %v1192, %v1208
    %s1211 = sld [smem:[#allocation2 + $0xe1]]
    %v1212 = vstv %s1211
    %v1213 = vmul.f32 %v1212, %v62
    %v1214 = vmul.f32 %v1212, %v63
    %v1215 = vadd.f32 %v1197, %v1213
    %v1216 = vadd.f32 %v1198, %v1214
    %s1217 = sld [smem:[#allocation2 + $0xa]]
    %v1218 = vstv %s1217
    %v1219 = vmul.f32 %v1218, %v54
    %v1220 = vmul.f32 %v1218, %v55
    %1223 = vrot.lane.b32.xlu0 %v1219, 127
    %v1224 = vpop.permute.xlu0 %1223
    %1225 = vrot.lane.b32.xlu0 %v1220, 127
    %v1226 = vpop.permute.xlu0 %1225
    %v1229 = vadd.f32 %v1203, %v1224
    %v1230 = vadd.f32 %v1204, %v1226
    %s1231 = sld [smem:[#allocation2 + $0x5b]]
    %v1232 = vstv %s1231
    %v1233 = vmul.f32 %v1232, %v54
    %v1234 = vmul.f32 %v1232, %v55
    %1237 = vrot.lane.b32.xlu0 %v1233, 127
    %v1238 = vpop.permute.xlu0 %1237
    %1239 = vrot.lane.b32.xlu0 %v1234, 127
    %v1240 = vpop.permute.xlu0 %1239
    %v1243 = vadd.f32 %v1209, %v1238
    %v1244 = vadd.f32 %v1210, %v1240
    %s1245 = sld [smem:[#allocation2 + $0xac]]
    %v1246 = vstv %s1245
    %v1247 = vmul.f32 %v1246, %v54
    %v1248 = vmul.f32 %v1246, %v55
    %1251 = vrot.lane.b32.xlu0 %v1247, 127
    %v1252 = vpop.permute.xlu0 %1251
    %1253 = vrot.lane.b32.xlu0 %v1248, 127
    %v1254 = vpop.permute.xlu0 %1253
    %v1257 = vadd.f32 %v1215, %v1252
    %v1258 = vadd.f32 %v1216, %v1254
    %s1259 = sld [smem:[#allocation2 + $0x25]]
    %v1260 = vstv %s1259
    %v1261 = vmul.f32 %v1260, %v58
    %v1262 = vmul.f32 %v1260, %v59
    %1265 = vrot.lane.b32.xlu0 %v1261, 127
    %v1266 = vpop.permute.xlu0 %1265
    %1267 = vrot.lane.b32.xlu0 %v1262, 127
    %v1268 = vpop.permute.xlu0 %1267
    %v1271 = vadd.f32 %v1229, %v1266
    %v1272 = vadd.f32 %v1230, %v1268
    %s1273 = sld [smem:[#allocation2 + $0x76]]
    %v1274 = vstv %s1273
    %v1275 = vmul.f32 %v1274, %v58
    %v1276 = vmul.f32 %v1274, %v59
    %1279 = vrot.lane.b32.xlu0 %v1275, 127
    %v1280 = vpop.permute.xlu0 %1279
    %1281 = vrot.lane.b32.xlu0 %v1276, 127
    %v1282 = vpop.permute.xlu0 %1281
    %v1285 = vadd.f32 %v1243, %v1280
    %v1286 = vadd.f32 %v1244, %v1282
    %s1287 = sld [smem:[#allocation2 + $0xc7]]
    %v1288 = vstv %s1287
    %v1289 = vmul.f32 %v1288, %v58
    %v1290 = vmul.f32 %v1288, %v59
    %1293 = vrot.lane.b32.xlu0 %v1289, 127
    %v1294 = vpop.permute.xlu0 %1293
    %1295 = vrot.lane.b32.xlu0 %v1290, 127
    %v1296 = vpop.permute.xlu0 %1295
    %v1299 = vadd.f32 %v1257, %v1294
    %v1300 = vadd.f32 %v1258, %v1296
    %s1301 = sld [smem:[#allocation2 + $0x40]]
    %v1302 = vstv %s1301
    %v1303 = vmul.f32 %v1302, %v62
    %v1304 = vmul.f32 %v1302, %v63
    %1307 = vrot.lane.b32.xlu0 %v1303, 127
    %v1308 = vpop.permute.xlu0 %1307
    %1309 = vrot.lane.b32.xlu0 %v1304, 127
    %v1310 = vpop.permute.xlu0 %1309
    %v1313 = vadd.f32 %v1271, %v1308
    %v1314 = vadd.f32 %v1272, %v1310
    %s1315 = sld [smem:[#allocation2 + $0x91]]
    %v1316 = vstv %s1315
    %v1317 = vmul.f32 %v1316, %v62
    %v1318 = vmul.f32 %v1316, %v63
    %1321 = vrot.lane.b32.xlu0 %v1317, 127
    %v1322 = vpop.permute.xlu0 %1321
    %1323 = vrot.lane.b32.xlu0 %v1318, 127
    %v1324 = vpop.permute.xlu0 %1323
    %v1327 = vadd.f32 %v1285, %v1322
    %v1328 = vadd.f32 %v1286, %v1324
    %s1329 = sld [smem:[#allocation2 + $0xe2]]
    %v1330 = vstv %s1329
    %v1331 = vmul.f32 %v1330, %v62
    %v1332 = vmul.f32 %v1330, %v63
    %1335 = vrot.lane.b32.xlu0 %v1331, 127
    %v1336 = vpop.permute.xlu0 %1335
    %1337 = vrot.lane.b32.xlu0 %v1332, 127
    %v1338 = vpop.permute.xlu0 %1337
    %v1341 = vadd.f32 %v1299, %v1336
    %v1342 = vadd.f32 %v1300, %v1338
    %s1343 = sld [smem:[#allocation2 + $0xb]]
    %v1344 = vstv %s1343
    %v1345 = vmul.f32 %v1344, %v54
    %v1346 = vmul.f32 %v1344, %v55
    %1349 = vrot.lane.b32.xlu0 %v1345, 126
    %v1350 = vpop.permute.xlu0 %1349
    %1351 = vrot.lane.b32.xlu0 %v1346, 126
    %v1352 = vpop.permute.xlu0 %1351
    %v1355 = vadd.f32 %v1313, %v1350
    %v1356 = vadd.f32 %v1314, %v1352
    %s1357 = sld [smem:[#allocation2 + $0x5c]]
    %v1358 = vstv %s1357
    %v1359 = vmul.f32 %v1358, %v54
    %v1360 = vmul.f32 %v1358, %v55
    %1363 = vrot.lane.b32.xlu0 %v1359, 126
    %v1364 = vpop.permute.xlu0 %1363
    %1365 = vrot.lane.b32.xlu0 %v1360, 126
    %v1366 = vpop.permute.xlu0 %1365
    %v1369 = vadd.f32 %v1327, %v1364
    %v1370 = vadd.f32 %v1328, %v1366
    %s1371 = sld [smem:[#allocation2 + $0xad]]
    %v1372 = vstv %s1371
    %v1373 = vmul.f32 %v1372, %v54
    %v1374 = vmul.f32 %v1372, %v55
    %1377 = vrot.lane.b32.xlu0 %v1373, 126
    %v1378 = vpop.permute.xlu0 %1377
    %1379 = vrot.lane.b32.xlu0 %v1374, 126
    %v1380 = vpop.permute.xlu0 %1379
    %v1383 = vadd.f32 %v1341, %v1378
    %v1384 = vadd.f32 %v1342, %v1380
    %s1385 = sld [smem:[#allocation2 + $0x26]]
    %v1386 = vstv %s1385
    %v1387 = vmul.f32 %v1386, %v58
    %v1388 = vmul.f32 %v1386, %v59
    %1391 = vrot.lane.b32.xlu0 %v1387, 126
    %v1392 = vpop.permute.xlu0 %1391
    %1393 = vrot.lane.b32.xlu0 %v1388, 126
    %v1394 = vpop.permute.xlu0 %1393
    %v1397 = vadd.f32 %v1355, %v1392
    %v1398 = vadd.f32 %v1356, %v1394
    %s1399 = sld [smem:[#allocation2 + $0x77]]
    %v1400 = vstv %s1399
    %v1401 = vmul.f32 %v1400, %v58
    %v1402 = vmul.f32 %v1400, %v59
    %1405 = vrot.lane.b32.xlu0 %v1401, 126
    %v1406 = vpop.permute.xlu0 %1405
    %1407 = vrot.lane.b32.xlu0 %v1402, 126
    %v1408 = vpop.permute.xlu0 %1407
    %v1411 = vadd.f32 %v1369, %v1406
    %v1412 = vadd.f32 %v1370, %v1408
    %s1413 = sld [smem:[#allocation2 + $0xc8]]
    %v1414 = vstv %s1413
    %v1415 = vmul.f32 %v1414, %v58
    %v1416 = vmul.f32 %v1414, %v59
    %1419 = vrot.lane.b32.xlu0 %v1415, 126
    %v1420 = vpop.permute.xlu0 %1419
    %1421 = vrot.lane.b32.xlu0 %v1416, 126
    %v1422 = vpop.permute.xlu0 %1421
    %v1425 = vadd.f32 %v1383, %v1420
    %v1426 = vadd.f32 %v1384, %v1422
    %s1427 = sld [smem:[#allocation2 + $0x41]]
    %v1428 = vstv %s1427
    %v1429 = vmul.f32 %v1428, %v62
    %v1430 = vmul.f32 %v1428, %v63
    %1433 = vrot.lane.b32.xlu0 %v1429, 126
    %v1434 = vpop.permute.xlu0 %1433
    %1435 = vrot.lane.b32.xlu0 %v1430, 126
    %v1436 = vpop.permute.xlu0 %1435
    %v1439 = vadd.f32 %v1397, %v1434
    %v1440 = vadd.f32 %v1398, %v1436
    %s1441 = sld [smem:[#allocation2 + $0x92]]
    %v1442 = vstv %s1441
    %v1443 = vmul.f32 %v1442, %v62
    %v1444 = vmul.f32 %v1442, %v63
    %1447 = vrot.lane.b32.xlu0 %v1443, 126
    %v1448 = vpop.permute.xlu0 %1447
    %1449 = vrot.lane.b32.xlu0 %v1444, 126
    %v1450 = vpop.permute.xlu0 %1449
    %v1453 = vadd.f32 %v1411, %v1448
    %v1454 = vadd.f32 %v1412, %v1450
    %s1455 = sld [smem:[#allocation2 + $0xe3]]
    %v1456 = vstv %s1455
    %v1457 = vmul.f32 %v1456, %v62
    %v1458 = vmul.f32 %v1456, %v63
    %1461 = vrot.lane.b32.xlu0 %v1457, 126
    %v1462 = vpop.permute.xlu0 %1461
    %1463 = vrot.lane.b32.xlu0 %v1458, 126
    %v1464 = vpop.permute.xlu0 %1463
    %v1467 = vadd.f32 %v1425, %v1462
    %v1468 = vadd.f32 %v1426, %v1464
    %s1469 = sld [smem:[#allocation2 + $0xc]]
    %v1470 = vstv %s1469
    %v1471 = vmul.f32 %v1470, %v54
    %v1472 = vmul.f32 %v1470, %v55
    %v1475 = vrot.slane %v1471, 1
    %v1476 = vrot.slane %v1472, 1
    %v1479 = vadd.f32 %v1439, %v1475
    %v1480 = vadd.f32 %v1440, %v1476
    %s1481 = sld [smem:[#allocation2 + $0x5d]]
    %v1482 = vstv %s1481
    %v1483 = vmul.f32 %v1482, %v54
    %v1484 = vmul.f32 %v1482, %v55
    %v1487 = vrot.slane %v1483, 1
    %v1488 = vrot.slane %v1484, 1
    %v1491 = vadd.f32 %v1453, %v1487
    %v1492 = vadd.f32 %v1454, %v1488
    %s1493 = sld [smem:[#allocation2 + $0xae]]
    %v1494 = vstv %s1493
    %v1495 = vmul.f32 %v1494, %v54
    %v1496 = vmul.f32 %v1494, %v55
    %v1499 = vrot.slane %v1495, 1
    %v1500 = vrot.slane %v1496, 1
    %v1503 = vadd.f32 %v1467, %v1499
    %v1504 = vadd.f32 %v1468, %v1500
    %s1505 = sld [smem:[#allocation2 + $0x27]]
    %v1506 = vstv %s1505
    %v1507 = vmul.f32 %v1506, %v58
    %v1508 = vmul.f32 %v1506, %v59
    %v1511 = vrot.slane %v1507, 1
    %v1512 = vrot.slane %v1508, 1
    %v1515 = vadd.f32 %v1479, %v1511
    %v1516 = vadd.f32 %v1480, %v1512
    %s1517 = sld [smem:[#allocation2 + $0x78]]
    %v1518 = vstv %s1517
    %v1519 = vmul.f32 %v1518, %v58
    %v1520 = vmul.f32 %v1518, %v59
    %v1523 = vrot.slane %v1519, 1
    %v1524 = vrot.slane %v1520, 1
    %v1527 = vadd.f32 %v1491, %v1523
    %v1528 = vadd.f32 %v1492, %v1524
    %s1529 = sld [smem:[#allocation2 + $0xc9]]
    %v1530 = vstv %s1529
    %v1531 = vmul.f32 %v1530, %v58
    %v1532 = vmul.f32 %v1530, %v59
    %v1535 = vrot.slane %v1531, 1
    %v1536 = vrot.slane %v1532, 1
    %v1539 = vadd.f32 %v1503, %v1535
    %v1540 = vadd.f32 %v1504, %v1536
    %s1541 = sld [smem:[#allocation2 + $0x42]]
    %v1542 = vstv %s1541
    %v1543 = vmul.f32 %v1542, %v62
    %v1544 = vmul.f32 %v1542, %v63
    %v1547 = vrot.slane %v1543, 1
    %v1548 = vrot.slane %v1544, 1
    %v1551 = vadd.f32 %v1515, %v1547
    %v1552 = vadd.f32 %v1516, %v1548
    %s1553 = sld [smem:[#allocation2 + $0x93]]
    %v1554 = vstv %s1553
    %v1555 = vmul.f32 %v1554, %v62
    %v1556 = vmul.f32 %v1554, %v63
    %v1559 = vrot.slane %v1555, 1
    %v1560 = vrot.slane %v1556, 1
    %v1563 = vadd.f32 %v1527, %v1559
    %v1564 = vadd.f32 %v1528, %v1560
    %s1565 = sld [smem:[#allocation2 + $0xe4]]
    %v1566 = vstv %s1565
    %v1567 = vmul.f32 %v1566, %v62
    %v1568 = vmul.f32 %v1566, %v63
    %v1571 = vrot.slane %v1567, 1
    %v1572 = vrot.slane %v1568, 1
    %v1575 = vadd.f32 %v1539, %v1571
    %v1576 = vadd.f32 %v1540, %v1572
    %s1577 = sld [smem:[#allocation2 + $0xd]]
    %v1578 = vstv %s1577
    %v1579 = vmul.f32 %v1578, %v54
    %v1580 = vmul.f32 %v1578, %v55
    %v1583 = vrot.slane %v1579, 1
    %v1584 = vrot.slane %v1580, 1
    %1585 = vrot.lane.b32.xlu0 %v1583, 127
    %v1586 = vpop.permute.xlu0 %1585
    %1587 = vrot.lane.b32.xlu0 %v1584, 127
    %v1588 = vpop.permute.xlu0 %1587
    %v1591 = vadd.f32 %v1551, %v1586
    %v1592 = vadd.f32 %v1552, %v1588
    %s1593 = sld [smem:[#allocation2 + $0x5e]]
    %v1594 = vstv %s1593
    %v1595 = vmul.f32 %v1594, %v54
    %v1596 = vmul.f32 %v1594, %v55
    %v1599 = vrot.slane %v1595, 1
    %v1600 = vrot.slane %v1596, 1
    %1601 = vrot.lane.b32.xlu0 %v1599, 127
    %v1602 = vpop.permute.xlu0 %1601
    %1603 = vrot.lane.b32.xlu0 %v1600, 127
    %v1604 = vpop.permute.xlu0 %1603
    %v1607 = vadd.f32 %v1563, %v1602
    %v1608 = vadd.f32 %v1564, %v1604
    %s1609 = sld [smem:[#allocation2 + $0xaf]]
    %v1610 = vstv %s1609
    %v1611 = vmul.f32 %v1610, %v54
    %v1612 = vmul.f32 %v1610, %v55
    %v1615 = vrot.slane %v1611, 1
    %v1616 = vrot.slane %v1612, 1
    %1617 = vrot.lane.b32.xlu0 %v1615, 127
    %v1618 = vpop.permute.xlu0 %1617
    %1619 = vrot.lane.b32.xlu0 %v1616, 127
    %v1620 = vpop.permute.xlu0 %1619
    %v1623 = vadd.f32 %v1575, %v1618
    %v1624 = vadd.f32 %v1576, %v1620
    %s1625 = sld [smem:[#allocation2 + $0x28]]
    %v1626 = vstv %s1625
    %v1627 = vmul.f32 %v1626, %v58
    %v1628 = vmul.f32 %v1626, %v59
    %v1631 = vrot.slane %v1627, 1
    %v1632 = vrot.slane %v1628, 1
    %1633 = vrot.lane.b32.xlu0 %v1631, 127
    %v1634 = vpop.permute.xlu0 %1633
    %1635 = vrot.lane.b32.xlu0 %v1632, 127
    %v1636 = vpop.permute.xlu0 %1635
    %v1639 = vadd.f32 %v1591, %v1634
    %v1640 = vadd.f32 %v1592, %v1636
    %s1641 = sld [smem:[#allocation2 + $0x79]]
    %v1642 = vstv %s1641
    %v1643 = vmul.f32 %v1642, %v58
    %v1644 = vmul.f32 %v1642, %v59
    %v1647 = vrot.slane %v1643, 1
    %v1648 = vrot.slane %v1644, 1
    %1649 = vrot.lane.b32.xlu0 %v1647, 127
    %v1650 = vpop.permute.xlu0 %1649
    %1651 = vrot.lane.b32.xlu0 %v1648, 127
    %v1652 = vpop.permute.xlu0 %1651
    %v1655 = vadd.f32 %v1607, %v1650
    %v1656 = vadd.f32 %v1608, %v1652
    %s1657 = sld [smem:[#allocation2 + $0xca]]
    %v1658 = vstv %s1657
    %v1659 = vmul.f32 %v1658, %v58
    %v1660 = vmul.f32 %v1658, %v59
    %v1663 = vrot.slane %v1659, 1
    %v1664 = vrot.slane %v1660, 1
    %1665 = vrot.lane.b32.xlu0 %v1663, 127
    %v1666 = vpop.permute.xlu0 %1665
    %1667 = vrot.lane.b32.xlu0 %v1664, 127
    %v1668 = vpop.permute.xlu0 %1667
    %v1671 = vadd.f32 %v1623, %v1666
    %v1672 = vadd.f32 %v1624, %v1668
    %s1673 = sld [smem:[#allocation2 + $0x43]]
    %v1674 = vstv %s1673
    %v1675 = vmul.f32 %v1674, %v62
    %v1676 = vmul.f32 %v1674, %v63
    %v1679 = vrot.slane %v1675, 1
    %v1680 = vrot.slane %v1676, 1
    %1681 = vrot.lane.b32.xlu0 %v1679, 127
    %v1682 = vpop.permute.xlu0 %1681
    %1683 = vrot.lane.b32.xlu0 %v1680, 127
    %v1684 = vpop.permute.xlu0 %1683
    %v1687 = vadd.f32 %v1639, %v1682
    %v1688 = vadd.f32 %v1640, %v1684
    %s1689 = sld [smem:[#allocation2 + $0x94]]
    %v1690 = vstv %s1689
    %v1691 = vmul.f32 %v1690, %v62
    %v1692 = vmul.f32 %v1690, %v63
    %v1695 = vrot.slane %v1691, 1
    %v1696 = vrot.slane %v1692, 1
    %1697 = vrot.lane.b32.xlu0 %v1695, 127
    %v1698 = vpop.permute.xlu0 %1697
    %1699 = vrot.lane.b32.xlu0 %v1696, 127
    %v1700 = vpop.permute.xlu0 %1699
    %v1703 = vadd.f32 %v1655, %v1698
    %v1704 = vadd.f32 %v1656, %v1700
    %s1705 = sld [smem:[#allocation2 + $0xe5]]
    %v1706 = vstv %s1705
    %v1707 = vmul.f32 %v1706, %v62
    %v1708 = vmul.f32 %v1706, %v63
    %v1711 = vrot.slane %v1707, 1
    %v1712 = vrot.slane %v1708, 1
    %1713 = vrot.lane.b32.xlu0 %v1711, 127
    %v1714 = vpop.permute.xlu0 %1713
    %1715 = vrot.lane.b32.xlu0 %v1712, 127
    %v1716 = vpop.permute.xlu0 %1715
    %v1719 = vadd.f32 %v1671, %v1714
    %v1720 = vadd.f32 %v1672, %v1716
    %s1721 = sld [smem:[#allocation2 + $0xe]]
    %v1722 = vstv %s1721
    %v1723 = vmul.f32 %v1722, %v54
    %v1724 = vmul.f32 %v1722, %v55
    %v1727 = vrot.slane %v1723, 1
    %v1728 = vrot.slane %v1724, 1
    %1729 = vrot.lane.b32.xlu0 %v1727, 126
    %v1730 = vpop.permute.xlu0 %1729
    %1731 = vrot.lane.b32.xlu0 %v1728, 126
    %v1732 = vpop.permute.xlu0 %1731
    %v1735 = vadd.f32 %v1687, %v1730
    %v1736 = vadd.f32 %v1688, %v1732
    %s1737 = sld [smem:[#allocation2 + $0x5f]]
    %v1738 = vstv %s1737
    %v1739 = vmul.f32 %v1738, %v54
    %v1740 = vmul.f32 %v1738, %v55
    %v1743 = vrot.slane %v1739, 1
    %v1744 = vrot.slane %v1740, 1
    %1745 = vrot.lane.b32.xlu0 %v1743, 126
    %v1746 = vpop.permute.xlu0 %1745
    %1747 = vrot.lane.b32.xlu0 %v1744, 126
    %v1748 = vpop.permute.xlu0 %1747
    %v1751 = vadd.f32 %v1703, %v1746
    %v1752 = vadd.f32 %v1704, %v1748
    %s1753 = sld [smem:[#allocation2 + $0xb0]]
    %v1754 = vstv %s1753
    %v1755 = vmul.f32 %v1754, %v54
    %v1756 = vmul.f32 %v1754, %v55
    %v1759 = vrot.slane %v1755, 1
    %v1760 = vrot.slane %v1756, 1
    %1761 = vrot.lane.b32.xlu0 %v1759, 126
    %v1762 = vpop.permute.xlu0 %1761
    %1763 = vrot.lane.b32.xlu0 %v1760, 126
    %v1764 = vpop.permute.xlu0 %1763
    %v1767 = vadd.f32 %v1719, %v1762
    %v1768 = vadd.f32 %v1720, %v1764
    %s1769 = sld [smem:[#allocation2 + $0x29]]
    %v1770 = vstv %s1769
    %v1771 = vmul.f32 %v1770, %v58
    %v1772 = vmul.f32 %v1770, %v59
    %v1775 = vrot.slane %v1771, 1
    %v1776 = vrot.slane %v1772, 1
    %1777 = vrot.lane.b32.xlu0 %v1775, 126
    %v1778 = vpop.permute.xlu0 %1777
    %1779 = vrot.lane.b32.xlu0 %v1776, 126
    %v1780 = vpop.permute.xlu0 %1779
    %v1783 = vadd.f32 %v1735, %v1778
    %v1784 = vadd.f32 %v1736, %v1780
    %s1785 = sld [smem:[#allocation2 + $0x7a]]
    %v1786 = vstv %s1785
    %v1787 = vmul.f32 %v1786, %v58
    %v1788 = vmul.f32 %v1786, %v59
    %v1791 = vrot.slane %v1787, 1
    %v1792 = vrot.slane %v1788, 1
    %1793 = vrot.lane.b32.xlu0 %v1791, 126
    %v1794 = vpop.permute.xlu0 %1793
    %1795 = vrot.lane.b32.xlu0 %v1792, 126
    %v1796 = vpop.permute.xlu0 %1795
    %v1799 = vadd.f32 %v1751, %v1794
    %v1800 = vadd.f32 %v1752, %v1796
    %s1801 = sld [smem:[#allocation2 + $0xcb]]
    %v1802 = vstv %s1801
    %v1803 = vmul.f32 %v1802, %v58
    %v1804 = vmul.f32 %v1802, %v59
    %v1807 = vrot.slane %v1803, 1
    %v1808 = vrot.slane %v1804, 1
    %1809 = vrot.lane.b32.xlu0 %v1807, 126
    %v1810 = vpop.permute.xlu0 %1809
    %1811 = vrot.lane.b32.xlu0 %v1808, 126
    %v1812 = vpop.permute.xlu0 %1811
    %v1815 = vadd.f32 %v1767, %v1810
    %v1816 = vadd.f32 %v1768, %v1812
    %s1817 = sld [smem:[#allocation2 + $0x44]]
    %v1818 = vstv %s1817
    %v1819 = vmul.f32 %v1818, %v62
    %v1820 = vmul.f32 %v1818, %v63
    %v1823 = vrot.slane %v1819, 1
    %v1824 = vrot.slane %v1820, 1
    %1825 = vrot.lane.b32.xlu0 %v1823, 126
    %v1826 = vpop.permute.xlu0 %1825
    %1827 = vrot.lane.b32.xlu0 %v1824, 126
    %v1828 = vpop.permute.xlu0 %1827
    %v1831 = vadd.f32 %v1783, %v1826
    %v1832 = vadd.f32 %v1784, %v1828
    %s1833 = sld [smem:[#allocation2 + $0x95]]
    %v1834 = vstv %s1833
    %v1835 = vmul.f32 %v1834, %v62
    %v1836 = vmul.f32 %v1834, %v63
    %v1839 = vrot.slane %v1835, 1
    %v1840 = vrot.slane %v1836, 1
    %1841 = vrot.lane.b32.xlu0 %v1839, 126
    %v1842 = vpop.permute.xlu0 %1841
    %1843 = vrot.lane.b32.xlu0 %v1840, 126
    %v1844 = vpop.permute.xlu0 %1843
    %v1847 = vadd.f32 %v1799, %v1842
    %v1848 = vadd.f32 %v1800, %v1844
    %s1849 = sld [smem:[#allocation2 + $0xe6]]
    %v1850 = vstv %s1849
    %v1851 = vmul.f32 %v1850, %v62
    %v1852 = vmul.f32 %v1850, %v63
    %v1855 = vrot.slane %v1851, 1
    %v1856 = vrot.slane %v1852, 1
    %1857 = vrot.lane.b32.xlu0 %v1855, 126
    %v1858 = vpop.permute.xlu0 %1857
    %1859 = vrot.lane.b32.xlu0 %v1856, 126
    %v1860 = vpop.permute.xlu0 %1859
    %v1863 = vadd.f32 %v1815, %v1858
    %v1864 = vadd.f32 %v1816, %v1860
    %s1865 = sld [smem:[#allocation2 + $0xf]]
    %v1866 = vstv %s1865
    %v1867 = vmul.f32 %v1866, %v54
    %v1868 = vmul.f32 %v1866, %v55
    %v1871 = vrot.slane %v1867, 2
    %v1872 = vrot.slane %v1868, 2
    %v1875 = vadd.f32 %v1831, %v1871
    %v1876 = vadd.f32 %v1832, %v1872
    %s1877 = sld [smem:[#allocation2 + $0x60]]
    %v1878 = vstv %s1877
    %v1879 = vmul.f32 %v1878, %v54
    %v1880 = vmul.f32 %v1878, %v55
    %v1883 = vrot.slane %v1879, 2
    %v1884 = vrot.slane %v1880, 2
    %v1887 = vadd.f32 %v1847, %v1883
    %v1888 = vadd.f32 %v1848, %v1884
    %s1889 = sld [smem:[#allocation2 + $0xb1]]
    %v1890 = vstv %s1889
    %v1891 = vmul.f32 %v1890, %v54
    %v1892 = vmul.f32 %v1890, %v55
    %v1895 = vrot.slane %v1891, 2
    %v1896 = vrot.slane %v1892, 2
    %v1899 = vadd.f32 %v1863, %v1895
    %v1900 = vadd.f32 %v1864, %v1896
    %s1901 = sld [smem:[#allocation2 + $0x2a]]
    %v1902 = vstv %s1901
    %v1903 = vmul.f32 %v1902, %v58
    %v1904 = vmul.f32 %v1902, %v59
    %v1907 = vrot.slane %v1903, 2
    %v1908 = vrot.slane %v1904, 2
    %v1911 = vadd.f32 %v1875, %v1907
    %v1912 = vadd.f32 %v1876, %v1908
    %s1913 = sld [smem:[#allocation2 + $0x7b]]
    %v1914 = vstv %s1913
    %v1915 = vmul.f32 %v1914, %v58
    %v1916 = vmul.f32 %v1914, %v59
    %v1919 = vrot.slane %v1915, 2
    %v1920 = vrot.slane %v1916, 2
    %v1923 = vadd.f32 %v1887, %v1919
    %v1924 = vadd.f32 %v1888, %v1920
    %s1925 = sld [smem:[#allocation2 + $0xcc]]
    %v1926 = vstv %s1925
    %v1927 = vmul.f32 %v1926, %v58
    %v1928 = vmul.f32 %v1926, %v59
    %v1931 = vrot.slane %v1927, 2
    %v1932 = vrot.slane %v1928, 2
    %v1935 = vadd.f32 %v1899, %v1931
    %v1936 = vadd.f32 %v1900, %v1932
    %s1937 = sld [smem:[#allocation2 + $0x45]]
    %v1938 = vstv %s1937
    %v1939 = vmul.f32 %v1938, %v62
    %v1940 = vmul.f32 %v1938, %v63
    %v1943 = vrot.slane %v1939, 2
    %v1944 = vrot.slane %v1940, 2
    %v1947 = vadd.f32 %v1911, %v1943
    %v1948 = vadd.f32 %v1912, %v1944
    %s1949 = sld [smem:[#allocation2 + $0x96]]
    %v1950 = vstv %s1949
    %v1951 = vmul.f32 %v1950, %v62
    %v1952 = vmul.f32 %v1950, %v63
    %v1955 = vrot.slane %v1951, 2
    %v1956 = vrot.slane %v1952, 2
    %v1959 = vadd.f32 %v1923, %v1955
    %v1960 = vadd.f32 %v1924, %v1956
    %s1961 = sld [smem:[#allocation2 + $0xe7]]
    %v1962 = vstv %s1961
    %v1963 = vmul.f32 %v1962, %v62
    %v1964 = vmul.f32 %v1962, %v63
    %v1967 = vrot.slane %v1963, 2
    %v1968 = vrot.slane %v1964, 2
    %v1971 = vadd.f32 %v1935, %v1967
    %v1972 = vadd.f32 %v1936, %v1968
    %s1973 = sld [smem:[#allocation2 + $0x10]]
    %v1974 = vstv %s1973
    %v1975 = vmul.f32 %v1974, %v54
    %v1976 = vmul.f32 %v1974, %v55
    %v1979 = vrot.slane %v1975, 2
    %v1980 = vrot.slane %v1976, 2
    %1981 = vrot.lane.b32.xlu0 %v1979, 127
    %v1982 = vpop.permute.xlu0 %1981
    %1983 = vrot.lane.b32.xlu0 %v1980, 127
    %v1984 = vpop.permute.xlu0 %1983
    %v1987 = vadd.f32 %v1947, %v1982
    %v1988 = vadd.f32 %v1948, %v1984
    %s1989 = sld [smem:[#allocation2 + $0x61]]
    %v1990 = vstv %s1989
    %v1991 = vmul.f32 %v1990, %v54
    %v1992 = vmul.f32 %v1990, %v55
    %v1995 = vrot.slane %v1991, 2
    %v1996 = vrot.slane %v1992, 2
    %1997 = vrot.lane.b32.xlu0 %v1995, 127
    %v1998 = vpop.permute.xlu0 %1997
    %1999 = vrot.lane.b32.xlu0 %v1996, 127
    %v2000 = vpop.permute.xlu0 %1999
    %v2003 = vadd.f32 %v1959, %v1998
    %v2004 = vadd.f32 %v1960, %v2000
    %s2005 = sld [smem:[#allocation2 + $0xb2]]
    %v2006 = vstv %s2005
    %v2007 = vmul.f32 %v2006, %v54
    %v2008 = vmul.f32 %v2006, %v55
    %v2011 = vrot.slane %v2007, 2
    %v2012 = vrot.slane %v2008, 2
    %2013 = vrot.lane.b32.xlu0 %v2011, 127
    %v2014 = vpop.permute.xlu0 %2013
    %2015 = vrot.lane.b32.xlu0 %v2012, 127
    %v2016 = vpop.permute.xlu0 %2015
    %v2019 = vadd.f32 %v1971, %v2014
    %v2020 = vadd.f32 %v1972, %v2016
    %s2021 = sld [smem:[#allocation2 + $0x2b]]
    %v2022 = vstv %s2021
    %v2023 = vmul.f32 %v2022, %v58
    %v2024 = vmul.f32 %v2022, %v59
    %v2027 = vrot.slane %v2023, 2
    %v2028 = vrot.slane %v2024, 2
    %2029 = vrot.lane.b32.xlu0 %v2027, 127
    %v2030 = vpop.permute.xlu0 %2029
    %2031 = vrot.lane.b32.xlu0 %v2028, 127
    %v2032 = vpop.permute.xlu0 %2031
    %v2035 = vadd.f32 %v1987, %v2030
    %v2036 = vadd.f32 %v1988, %v2032
    %s2037 = sld [smem:[#allocation2 + $0x7c]]
    %v2038 = vstv %s2037
    %v2039 = vmul.f32 %v2038, %v58
    %v2040 = vmul.f32 %v2038, %v59
    %v2043 = vrot.slane %v2039, 2
    %v2044 = vrot.slane %v2040, 2
    %2045 = vrot.lane.b32.xlu0 %v2043, 127
    %v2046 = vpop.permute.xlu0 %2045
    %2047 = vrot.lane.b32.xlu0 %v2044, 127
    %v2048 = vpop.permute.xlu0 %2047
    %v2051 = vadd.f32 %v2003, %v2046
    %v2052 = vadd.f32 %v2004, %v2048
    %s2053 = sld [smem:[#allocation2 + $0xcd]]
    %v2054 = vstv %s2053
    %v2055 = vmul.f32 %v2054, %v58
    %v2056 = vmul.f32 %v2054, %v59
    %v2059 = vrot.slane %v2055, 2
    %v2060 = vrot.slane %v2056, 2
    %2061 = vrot.lane.b32.xlu0 %v2059, 127
    %v2062 = vpop.permute.xlu0 %2061
    %2063 = vrot.lane.b32.xlu0 %v2060, 127
    %v2064 = vpop.permute.xlu0 %2063
    %v2067 = vadd.f32 %v2019, %v2062
    %v2068 = vadd.f32 %v2020, %v2064
    %s2069 = sld [smem:[#allocation2 + $0x46]]
    %v2070 = vstv %s2069
    %v2071 = vmul.f32 %v2070, %v62
    %v2072 = vmul.f32 %v2070, %v63
    %v2075 = vrot.slane %v2071, 2
    %v2076 = vrot.slane %v2072, 2
    %2077 = vrot.lane.b32.xlu0 %v2075, 127
    %v2078 = vpop.permute.xlu0 %2077
    %2079 = vrot.lane.b32.xlu0 %v2076, 127
    %v2080 = vpop.permute.xlu0 %2079
    %v2083 = vadd.f32 %v2035, %v2078
    %v2084 = vadd.f32 %v2036, %v2080
    %s2085 = sld [smem:[#allocation2 + $0x97]]
    %v2086 = vstv %s2085
    %v2087 = vmul.f32 %v2086, %v62
    %v2088 = vmul.f32 %v2086, %v63
    %v2091 = vrot.slane %v2087, 2
    %v2092 = vrot.slane %v2088, 2
    %2093 = vrot.lane.b32.xlu0 %v2091, 127
    %v2094 = vpop.permute.xlu0 %2093
    %2095 = vrot.lane.b32.xlu0 %v2092, 127
    %v2096 = vpop.permute.xlu0 %2095
    %v2099 = vadd.f32 %v2051, %v2094
    %v2100 = vadd.f32 %v2052, %v2096
    %s2101 = sld [smem:[#allocation2 + $0xe8]]
    %v2102 = vstv %s2101
    %v2103 = vmul.f32 %v2102, %v62
    %v2104 = vmul.f32 %v2102, %v63
    %v2107 = vrot.slane %v2103, 2
    %v2108 = vrot.slane %v2104, 2
    %2109 = vrot.lane.b32.xlu0 %v2107, 127
    %v2110 = vpop.permute.xlu0 %2109
    %2111 = vrot.lane.b32.xlu0 %v2108, 127
    %v2112 = vpop.permute.xlu0 %2111
    %v2115 = vadd.f32 %v2067, %v2110
    %v2116 = vadd.f32 %v2068, %v2112
    %s2117 = sld [smem:[#allocation2 + $0x11]]
    %v2118 = vstv %s2117
    %v2119 = vmul.f32 %v2118, %v54
    %v2120 = vmul.f32 %v2118, %v55
    %v2123 = vrot.slane %v2119, 2
    %v2124 = vrot.slane %v2120, 2
    %2125 = vrot.lane.b32.xlu0 %v2123, 126
    %v2126 = vpop.permute.xlu0 %2125
    %2127 = vrot.lane.b32.xlu0 %v2124, 126
    %v2128 = vpop.permute.xlu0 %2127
    %v2131 = vadd.f32 %v2083, %v2126
    %v2132 = vadd.f32 %v2084, %v2128
    %s2133 = sld [smem:[#allocation2 + $0x62]]
    %v2134 = vstv %s2133
    %v2135 = vmul.f32 %v2134, %v54
    %v2136 = vmul.f32 %v2134, %v55
    %v2139 = vrot.slane %v2135, 2
    %v2140 = vrot.slane %v2136, 2
    %2141 = vrot.lane.b32.xlu0 %v2139, 126
    %v2142 = vpop.permute.xlu0 %2141
    %2143 = vrot.lane.b32.xlu0 %v2140, 126
    %v2144 = vpop.permute.xlu0 %2143
    %v2147 = vadd.f32 %v2099, %v2142
    %v2148 = vadd.f32 %v2100, %v2144
    %s2149 = sld [smem:[#allocation2 + $0xb3]]
    %v2150 = vstv %s2149
    %v2151 = vmul.f32 %v2150, %v54
    %v2152 = vmul.f32 %v2150, %v55
    %v2155 = vrot.slane %v2151, 2
    %v2156 = vrot.slane %v2152, 2
    %2157 = vrot.lane.b32.xlu0 %v2155, 126
    %v2158 = vpop.permute.xlu0 %2157
    %2159 = vrot.lane.b32.xlu0 %v2156, 126
    %v2160 = vpop.permute.xlu0 %2159
    %v2163 = vadd.f32 %v2115, %v2158
    %v2164 = vadd.f32 %v2116, %v2160
    %s2165 = sld [smem:[#allocation2 + $0x2c]]
    %v2166 = vstv %s2165
    %v2167 = vmul.f32 %v2166, %v58
    %v2168 = vmul.f32 %v2166, %v59
    %v2171 = vrot.slane %v2167, 2
    %v2172 = vrot.slane %v2168, 2
    %2173 = vrot.lane.b32.xlu0 %v2171, 126
    %v2174 = vpop.permute.xlu0 %2173
    %2175 = vrot.lane.b32.xlu0 %v2172, 126
    %v2176 = vpop.permute.xlu0 %2175
    %v2179 = vadd.f32 %v2131, %v2174
    %v2180 = vadd.f32 %v2132, %v2176
    %s2181 = sld [smem:[#allocation2 + $0x7d]]
    %v2182 = vstv %s2181
    %v2183 = vmul.f32 %v2182, %v58
    %v2184 = vmul.f32 %v2182, %v59
    %v2187 = vrot.slane %v2183, 2
    %v2188 = vrot.slane %v2184, 2
    %2189 = vrot.lane.b32.xlu0 %v2187, 126
    %v2190 = vpop.permute.xlu0 %2189
    %2191 = vrot.lane.b32.xlu0 %v2188, 126
    %v2192 = vpop.permute.xlu0 %2191
    %v2195 = vadd.f32 %v2147, %v2190
    %v2196 = vadd.f32 %v2148, %v2192
    %s2197 = sld [smem:[#allocation2 + $0xce]]
    %v2198 = vstv %s2197
    %v2199 = vmul.f32 %v2198, %v58
    %v2200 = vmul.f32 %v2198, %v59
    %v2203 = vrot.slane %v2199, 2
    %v2204 = vrot.slane %v2200, 2
    %2205 = vrot.lane.b32.xlu0 %v2203, 126
    %v2206 = vpop.permute.xlu0 %2205
    %2207 = vrot.lane.b32.xlu0 %v2204, 126
    %v2208 = vpop.permute.xlu0 %2207
    %v2211 = vadd.f32 %v2163, %v2206
    %v2212 = vadd.f32 %v2164, %v2208
    %s2213 = sld [smem:[#allocation2 + $0x47]]
    %v2214 = vstv %s2213
    %v2215 = vmul.f32 %v2214, %v62
    %v2216 = vmul.f32 %v2214, %v63
    %v2219 = vrot.slane %v2215, 2
    %v2220 = vrot.slane %v2216, 2
    %2221 = vrot.lane.b32.xlu0 %v2219, 126
    %v2222 = vpop.permute.xlu0 %2221
    %2223 = vrot.lane.b32.xlu0 %v2220, 126
    %v2224 = vpop.permute.xlu0 %2223
    %v2227 = vadd.f32 %v2179, %v2222
    %v2228 = vadd.f32 %v2180, %v2224
    %s2229 = sld [smem:[#allocation2 + $0x98]]
    %v2230 = vstv %s2229
    %v2231 = vmul.f32 %v2230, %v62
    %v2232 = vmul.f32 %v2230, %v63
    %v2235 = vrot.slane %v2231, 2
    %v2236 = vrot.slane %v2232, 2
    %2237 = vrot.lane.b32.xlu0 %v2235, 126
    %v2238 = vpop.permute.xlu0 %2237
    %2239 = vrot.lane.b32.xlu0 %v2236, 126
    %v2240 = vpop.permute.xlu0 %2239
    %v2243 = vadd.f32 %v2195, %v2238
    %v2244 = vadd.f32 %v2196, %v2240
    %s2245 = sld [smem:[#allocation2 + $0xe9]]
    %v2246 = vstv %s2245
    %v2247 = vmul.f32 %v2246, %v62
    %v2248 = vmul.f32 %v2246, %v63
    %v2251 = vrot.slane %v2247, 2
    %v2252 = vrot.slane %v2248, 2
    %2253 = vrot.lane.b32.xlu0 %v2251, 126
    %v2254 = vpop.permute.xlu0 %2253
    %2255 = vrot.lane.b32.xlu0 %v2252, 126
    %v2256 = vpop.permute.xlu0 %2255
    %v2259 = vadd.f32 %v2211, %v2254
    %v2260 = vadd.f32 %v2212, %v2256
    %s2261 = sld [smem:[#allocation2 + $0x12]]
    %v2262 = vstv %s2261
    %v2263 = vmul.f32 %v2262, %v55
    %v2264 = vmul.f32 %v2262, %v56
    %v2265 = vadd.f32 %v2227, %v2263
    %v2266 = vadd.f32 %v2228, %v2264
    %s2267 = sld [smem:[#allocation2 + $0x63]]
    %v2268 = vstv %s2267
    %v2269 = vmul.f32 %v2268, %v55
    %v2270 = vmul.f32 %v2268, %v56
    %v2271 = vadd.f32 %v2243, %v2269
    %v2272 = vadd.f32 %v2244, %v2270
    %s2273 = sld [smem:[#allocation2 + $0xb4]]
    %v2274 = vstv %s2273
    %v2275 = vmul.f32 %v2274, %v55
    %v2276 = vmul.f32 %v2274, %v56
    %v2277 = vadd.f32 %v2259, %v2275
    %v2278 = vadd.f32 %v2260, %v2276
    %s2279 = sld [smem:[#allocation2 + $0x2d]]
    %v2280 = vstv %s2279
    %v2281 = vmul.f32 %v2280, %v59
    %v2282 = vmul.f32 %v2280, %v60
    %v2283 = vadd.f32 %v2265, %v2281
    %v2284 = vadd.f32 %v2266, %v2282
    %s2285 = sld [smem:[#allocation2 + $0x7e]]
    %v2286 = vstv %s2285
    %v2287 = vmul.f32 %v2286, %v59
    %v2288 = vmul.f32 %v2286, %v60
    %v2289 = vadd.f32 %v2271, %v2287
    %v2290 = vadd.f32 %v2272, %v2288
    %s2291 = sld [smem:[#allocation2 + $0xcf]]
    %v2292 = vstv %s2291
    %v2293 = vmul.f32 %v2292, %v59
    %v2294 = vmul.f32 %v2292, %v60
    %v2295 = vadd.f32 %v2277, %v2293
    %v2296 = vadd.f32 %v2278, %v2294
    %s2297 = sld [smem:[#allocation2 + $0x48]]
    %v2298 = vstv %s2297
    %v2299 = vmul.f32 %v2298, %v63
    %v2300 = vmul.f32 %v2298, %v64
    %v2301 = vadd.f32 %v2283, %v2299
    %v2302 = vadd.f32 %v2284, %v2300
    %s2303 = sld [smem:[#allocation2 + $0x99]]
    %v2304 = vstv %s2303
    %v2305 = vmul.f32 %v2304, %v63
    %v2306 = vmul.f32 %v2304, %v64
    %v2307 = vadd.f32 %v2289, %v2305
    %v2308 = vadd.f32 %v2290, %v2306
    %s2309 = sld [smem:[#allocation2 + $0xea]]
    %v2310 = vstv %s2309
    %v2311 = vmul.f32 %v2310, %v63
    %v2312 = vmul.f32 %v2310, %v64
    %v2313 = vadd.f32 %v2295, %v2311
    %v2314 = vadd.f32 %v2296, %v2312
    %s2315 = sld [smem:[#allocation2 + $0x13]]
    %v2316 = vstv %s2315
    %v2317 = vmul.f32 %v2316, %v55
    %v2318 = vmul.f32 %v2316, %v56
    %2321 = vrot.lane.b32.xlu0 %v2317, 127
    %v2322 = vpop.permute.xlu0 %2321
    %2323 = vrot.lane.b32.xlu0 %v2318, 127
    %v2324 = vpop.permute.xlu0 %2323
    %v2327 = vadd.f32 %v2301, %v2322
    %v2328 = vadd.f32 %v2302, %v2324
    %s2329 = sld [smem:[#allocation2 + $0x64]]
    %v2330 = vstv %s2329
    %v2331 = vmul.f32 %v2330, %v55
    %v2332 = vmul.f32 %v2330, %v56
    %2335 = vrot.lane.b32.xlu0 %v2331, 127
    %v2336 = vpop.permute.xlu0 %2335
    %2337 = vrot.lane.b32.xlu0 %v2332, 127
    %v2338 = vpop.permute.xlu0 %2337
    %v2341 = vadd.f32 %v2307, %v2336
    %v2342 = vadd.f32 %v2308, %v2338
    %s2343 = sld [smem:[#allocation2 + $0xb5]]
    %v2344 = vstv %s2343
    %v2345 = vmul.f32 %v2344, %v55
    %v2346 = vmul.f32 %v2344, %v56
    %2349 = vrot.lane.b32.xlu0 %v2345, 127
    %v2350 = vpop.permute.xlu0 %2349
    %2351 = vrot.lane.b32.xlu0 %v2346, 127
    %v2352 = vpop.permute.xlu0 %2351
    %v2355 = vadd.f32 %v2313, %v2350
    %v2356 = vadd.f32 %v2314, %v2352
    %s2357 = sld [smem:[#allocation2 + $0x2e]]
    %v2358 = vstv %s2357
    %v2359 = vmul.f32 %v2358, %v59
    %v2360 = vmul.f32 %v2358, %v60
    %2363 = vrot.lane.b32.xlu0 %v2359, 127
    %v2364 = vpop.permute.xlu0 %2363
    %2365 = vrot.lane.b32.xlu0 %v2360, 127
    %v2366 = vpop.permute.xlu0 %2365
    %v2369 = vadd.f32 %v2327, %v2364
    %v2370 = vadd.f32 %v2328, %v2366
    %s2371 = sld [smem:[#allocation2 + $0x7f]]
    %v2372 = vstv %s2371
    %v2373 = vmul.f32 %v2372, %v59
    %v2374 = vmul.f32 %v2372, %v60
    %2377 = vrot.lane.b32.xlu0 %v2373, 127
    %v2378 = vpop.permute.xlu0 %2377
    %2379 = vrot.lane.b32.xlu0 %v2374, 127
    %v2380 = vpop.permute.xlu0 %2379
    %v2383 = vadd.f32 %v2341, %v2378
    %v2384 = vadd.f32 %v2342, %v2380
    %s2385 = sld [smem:[#allocation2 + $0xd0]]
    %v2386 = vstv %s2385
    %v2387 = vmul.f32 %v2386, %v59
    %v2388 = vmul.f32 %v2386, %v60
    %2391 = vrot.lane.b32.xlu0 %v2387, 127
    %v2392 = vpop.permute.xlu0 %2391
    %2393 = vrot.lane.b32.xlu0 %v2388, 127
    %v2394 = vpop.permute.xlu0 %2393
    %v2397 = vadd.f32 %v2355, %v2392
    %v2398 = vadd.f32 %v2356, %v2394
    %s2399 = sld [smem:[#allocation2 + $0x49]]
    %v2400 = vstv %s2399
    %v2401 = vmul.f32 %v2400, %v63
    %v2402 = vmul.f32 %v2400, %v64
    %2405 = vrot.lane.b32.xlu0 %v2401, 127
    %v2406 = vpop.permute.xlu0 %2405
    %2407 = vrot.lane.b32.xlu0 %v2402, 127
    %v2408 = vpop.permute.xlu0 %2407
    %v2411 = vadd.f32 %v2369, %v2406
    %v2412 = vadd.f32 %v2370, %v2408
    %s2413 = sld [smem:[#allocation2 + $0x9a]]
    %v2414 = vstv %s2413
    %v2415 = vmul.f32 %v2414, %v63
    %v2416 = vmul.f32 %v2414, %v64
    %2419 = vrot.lane.b32.xlu0 %v2415, 127
    %v2420 = vpop.permute.xlu0 %2419
    %2421 = vrot.lane.b32.xlu0 %v2416, 127
    %v2422 = vpop.permute.xlu0 %2421
    %v2425 = vadd.f32 %v2383, %v2420
    %v2426 = vadd.f32 %v2384, %v2422
    %s2427 = sld [smem:[#allocation2 + $0xeb]]
    %v2428 = vstv %s2427
    %v2429 = vmul.f32 %v2428, %v63
    %v2430 = vmul.f32 %v2428, %v64
    %2433 = vrot.lane.b32.xlu0 %v2429, 127
    %v2434 = vpop.permute.xlu0 %2433
    %2435 = vrot.lane.b32.xlu0 %v2430, 127
    %v2436 = vpop.permute.xlu0 %2435
    %v2439 = vadd.f32 %v2397, %v2434
    %v2440 = vadd.f32 %v2398, %v2436
    %s2441 = sld [smem:[#allocation2 + $0x14]]
    %v2442 = vstv %s2441
    %v2443 = vmul.f32 %v2442, %v55
    %v2444 = vmul.f32 %v2442, %v56
    %2447 = vrot.lane.b32.xlu0 %v2443, 126
    %v2448 = vpop.permute.xlu0 %2447
    %2449 = vrot.lane.b32.xlu0 %v2444, 126
    %v2450 = vpop.permute.xlu0 %2449
    %v2453 = vadd.f32 %v2411, %v2448
    %v2454 = vadd.f32 %v2412, %v2450
    %s2455 = sld [smem:[#allocation2 + $0x65]]
    %v2456 = vstv %s2455
    %v2457 = vmul.f32 %v2456, %v55
    %v2458 = vmul.f32 %v2456, %v56
    %2461 = vrot.lane.b32.xlu0 %v2457, 126
    %v2462 = vpop.permute.xlu0 %2461
    %2463 = vrot.lane.b32.xlu0 %v2458, 126
    %v2464 = vpop.permute.xlu0 %2463
    %v2467 = vadd.f32 %v2425, %v2462
    %v2468 = vadd.f32 %v2426, %v2464
    %s2469 = sld [smem:[#allocation2 + $0xb6]]
    %v2470 = vstv %s2469
    %v2471 = vmul.f32 %v2470, %v55
    %v2472 = vmul.f32 %v2470, %v56
    %2475 = vrot.lane.b32.xlu0 %v2471, 126
    %v2476 = vpop.permute.xlu0 %2475
    %2477 = vrot.lane.b32.xlu0 %v2472, 126
    %v2478 = vpop.permute.xlu0 %2477
    %v2481 = vadd.f32 %v2439, %v2476
    %v2482 = vadd.f32 %v2440, %v2478
    %s2483 = sld [smem:[#allocation2 + $0x2f]]
    %v2484 = vstv %s2483
    %v2485 = vmul.f32 %v2484, %v59
    %v2486 = vmul.f32 %v2484, %v60
    %2489 = vrot.lane.b32.xlu0 %v2485, 126
    %v2490 = vpop.permute.xlu0 %2489
    %2491 = vrot.lane.b32.xlu0 %v2486, 126
    %v2492 = vpop.permute.xlu0 %2491
    %v2495 = vadd.f32 %v2453, %v2490
    %v2496 = vadd.f32 %v2454, %v2492
    %s2497 = sld [smem:[#allocation2 + $0x80]]
    %v2498 = vstv %s2497
    %v2499 = vmul.f32 %v2498, %v59
    %v2500 = vmul.f32 %v2498, %v60
    %2503 = vrot.lane.b32.xlu0 %v2499, 126
    %v2504 = vpop.permute.xlu0 %2503
    %2505 = vrot.lane.b32.xlu0 %v2500, 126
    %v2506 = vpop.permute.xlu0 %2505
    %v2509 = vadd.f32 %v2467, %v2504
    %v2510 = vadd.f32 %v2468, %v2506
    %s2511 = sld [smem:[#allocation2 + $0xd1]]
    %v2512 = vstv %s2511
    %v2513 = vmul.f32 %v2512, %v59
    %v2514 = vmul.f32 %v2512, %v60
    %2517 = vrot.lane.b32.xlu0 %v2513, 126
    %v2518 = vpop.permute.xlu0 %2517
    %2519 = vrot.lane.b32.xlu0 %v2514, 126
    %v2520 = vpop.permute.xlu0 %2519
    %v2523 = vadd.f32 %v2481, %v2518
    %v2524 = vadd.f32 %v2482, %v2520
    %s2525 = sld [smem:[#allocation2 + $0x4a]]
    %v2526 = vstv %s2525
    %v2527 = vmul.f32 %v2526, %v63
    %v2528 = vmul.f32 %v2526, %v64
    %2531 = vrot.lane.b32.xlu0 %v2527, 126
    %v2532 = vpop.permute.xlu0 %2531
    %2533 = vrot.lane.b32.xlu0 %v2528, 126
    %v2534 = vpop.permute.xlu0 %2533
    %v2537 = vadd.f32 %v2495, %v2532
    %v2538 = vadd.f32 %v2496, %v2534
    %s2539 = sld [smem:[#allocation2 + $0x9b]]
    %v2540 = vstv %s2539
    %v2541 = vmul.f32 %v2540, %v63
    %v2542 = vmul.f32 %v2540, %v64
    %2545 = vrot.lane.b32.xlu0 %v2541, 126
    %v2546 = vpop.permute.xlu0 %2545
    %2547 = vrot.lane.b32.xlu0 %v2542, 126
    %v2548 = vpop.permute.xlu0 %2547
    %v2551 = vadd.f32 %v2509, %v2546
    %v2552 = vadd.f32 %v2510, %v2548
    %s2553 = sld [smem:[#allocation2 + $0xec]]
    %v2554 = vstv %s2553
    %v2555 = vmul.f32 %v2554, %v63
    %v2556 = vmul.f32 %v2554, %v64
    %2559 = vrot.lane.b32.xlu0 %v2555, 126
    %v2560 = vpop.permute.xlu0 %2559
    %2561 = vrot.lane.b32.xlu0 %v2556, 126
    %v2562 = vpop.permute.xlu0 %2561
    %v2565 = vadd.f32 %v2523, %v2560
    %v2566 = vadd.f32 %v2524, %v2562
    %s2567 = sld [smem:[#allocation2 + $0x15]]
    %v2568 = vstv %s2567
    %v2569 = vmul.f32 %v2568, %v55
    %v2570 = vmul.f32 %v2568, %v56
    %v2573 = vrot.slane %v2569, 1
    %v2574 = vrot.slane %v2570, 1
    %v2577 = vadd.f32 %v2537, %v2573
    %v2578 = vadd.f32 %v2538, %v2574
    %s2579 = sld [smem:[#allocation2 + $0x66]]
    %v2580 = vstv %s2579
    %v2581 = vmul.f32 %v2580, %v55
    %v2582 = vmul.f32 %v2580, %v56
    %v2585 = vrot.slane %v2581, 1
    %v2586 = vrot.slane %v2582, 1
    %v2589 = vadd.f32 %v2551, %v2585
    %v2590 = vadd.f32 %v2552, %v2586
    %s2591 = sld [smem:[#allocation2 + $0xb7]]
    %v2592 = vstv %s2591
    %v2593 = vmul.f32 %v2592, %v55
    %v2594 = vmul.f32 %v2592, %v56
    %v2597 = vrot.slane %v2593, 1
    %v2598 = vrot.slane %v2594, 1
    %v2601 = vadd.f32 %v2565, %v2597
    %v2602 = vadd.f32 %v2566, %v2598
    %s2603 = sld [smem:[#allocation2 + $0x30]]
    %v2604 = vstv %s2603
    %v2605 = vmul.f32 %v2604, %v59
    %v2606 = vmul.f32 %v2604, %v60
    %v2609 = vrot.slane %v2605, 1
    %v2610 = vrot.slane %v2606, 1
    %v2613 = vadd.f32 %v2577, %v2609
    %v2614 = vadd.f32 %v2578, %v2610
    %s2615 = sld [smem:[#allocation2 + $0x81]]
    %v2616 = vstv %s2615
    %v2617 = vmul.f32 %v2616, %v59
    %v2618 = vmul.f32 %v2616, %v60
    %v2621 = vrot.slane %v2617, 1
    %v2622 = vrot.slane %v2618, 1
    %v2625 = vadd.f32 %v2589, %v2621
    %v2626 = vadd.f32 %v2590, %v2622
    %s2627 = sld [smem:[#allocation2 + $0xd2]]
    %v2628 = vstv %s2627
    %v2629 = vmul.f32 %v2628, %v59
    %v2630 = vmul.f32 %v2628, %v60
    %v2633 = vrot.slane %v2629, 1
    %v2634 = vrot.slane %v2630, 1
    %v2637 = vadd.f32 %v2601, %v2633
    %v2638 = vadd.f32 %v2602, %v2634
    %s2639 = sld [smem:[#allocation2 + $0x4b]]
    %v2640 = vstv %s2639
    %v2641 = vmul.f32 %v2640, %v63
    %v2642 = vmul.f32 %v2640, %v64
    %v2645 = vrot.slane %v2641, 1
    %v2646 = vrot.slane %v2642, 1
    %v2649 = vadd.f32 %v2613, %v2645
    %v2650 = vadd.f32 %v2614, %v2646
    %s2651 = sld [smem:[#allocation2 + $0x9c]]
    %v2652 = vstv %s2651
    %v2653 = vmul.f32 %v2652, %v63
    %v2654 = vmul.f32 %v2652, %v64
    %v2657 = vrot.slane %v2653, 1
    %v2658 = vrot.slane %v2654, 1
    %v2661 = vadd.f32 %v2625, %v2657
    %v2662 = vadd.f32 %v2626, %v2658
    %s2663 = sld [smem:[#allocation2 + $0xed]]
    %v2664 = vstv %s2663
    %v2665 = vmul.f32 %v2664, %v63
    %v2666 = vmul.f32 %v2664, %v64
    %v2669 = vrot.slane %v2665, 1
    %v2670 = vrot.slane %v2666, 1
    %v2673 = vadd.f32 %v2637, %v2669
    %v2674 = vadd.f32 %v2638, %v2670
    %s2675 = sld [smem:[#allocation2 + $0x16]]
    %v2676 = vstv %s2675
    %v2677 = vmul.f32 %v2676, %v55
    %v2678 = vmul.f32 %v2676, %v56
    %v2681 = vrot.slane %v2677, 1
    %v2682 = vrot.slane %v2678, 1
    %2683 = vrot.lane.b32.xlu0 %v2681, 127
    %v2684 = vpop.permute.xlu0 %2683
    %2685 = vrot.lane.b32.xlu0 %v2682, 127
    %v2686 = vpop.permute.xlu0 %2685
    %v2689 = vadd.f32 %v2649, %v2684
    %v2690 = vadd.f32 %v2650, %v2686
    %s2691 = sld [smem:[#allocation2 + $0x67]]
    %v2692 = vstv %s2691
    %v2693 = vmul.f32 %v2692, %v55
    %v2694 = vmul.f32 %v2692, %v56
    %v2697 = vrot.slane %v2693, 1
    %v2698 = vrot.slane %v2694, 1
    %2699 = vrot.lane.b32.xlu0 %v2697, 127
    %v2700 = vpop.permute.xlu0 %2699
    %2701 = vrot.lane.b32.xlu0 %v2698, 127
    %v2702 = vpop.permute.xlu0 %2701
    %v2705 = vadd.f32 %v2661, %v2700
    %v2706 = vadd.f32 %v2662, %v2702
    %s2707 = sld [smem:[#allocation2 + $0xb8]]
    %v2708 = vstv %s2707
    %v2709 = vmul.f32 %v2708, %v55
    %v2710 = vmul.f32 %v2708, %v56
    %v2713 = vrot.slane %v2709, 1
    %v2714 = vrot.slane %v2710, 1
    %2715 = vrot.lane.b32.xlu0 %v2713, 127
    %v2716 = vpop.permute.xlu0 %2715
    %2717 = vrot.lane.b32.xlu0 %v2714, 127
    %v2718 = vpop.permute.xlu0 %2717
    %v2721 = vadd.f32 %v2673, %v2716
    %v2722 = vadd.f32 %v2674, %v2718
    %s2723 = sld [smem:[#allocation2 + $0x31]]
    %v2724 = vstv %s2723
    %v2725 = vmul.f32 %v2724, %v59
    %v2726 = vmul.f32 %v2724, %v60
    %v2729 = vrot.slane %v2725, 1
    %v2730 = vrot.slane %v2726, 1
    %2731 = vrot.lane.b32.xlu0 %v2729, 127
    %v2732 = vpop.permute.xlu0 %2731
    %2733 = vrot.lane.b32.xlu0 %v2730, 127
    %v2734 = vpop.permute.xlu0 %2733
    %v2737 = vadd.f32 %v2689, %v2732
    %v2738 = vadd.f32 %v2690, %v2734
    %s2739 = sld [smem:[#allocation2 + $0x82]]
    %v2740 = vstv %s2739
    %v2741 = vmul.f32 %v2740, %v59
    %v2742 = vmul.f32 %v2740, %v60
    %v2745 = vrot.slane %v2741, 1
    %v2746 = vrot.slane %v2742, 1
    %2747 = vrot.lane.b32.xlu0 %v2745, 127
    %v2748 = vpop.permute.xlu0 %2747
    %2749 = vrot.lane.b32.xlu0 %v2746, 127
    %v2750 = vpop.permute.xlu0 %2749
    %v2753 = vadd.f32 %v2705, %v2748
    %v2754 = vadd.f32 %v2706, %v2750
    %s2755 = sld [smem:[#allocation2 + $0xd3]]
    %v2756 = vstv %s2755
    %v2757 = vmul.f32 %v2756, %v59
    %v2758 = vmul.f32 %v2756, %v60
    %v2761 = vrot.slane %v2757, 1
    %v2762 = vrot.slane %v2758, 1
    %2763 = vrot.lane.b32.xlu0 %v2761, 127
    %v2764 = vpop.permute.xlu0 %2763
    %2765 = vrot.lane.b32.xlu0 %v2762, 127
    %v2766 = vpop.permute.xlu0 %2765
    %v2769 = vadd.f32 %v2721, %v2764
    %v2770 = vadd.f32 %v2722, %v2766
    %s2771 = sld [smem:[#allocation2 + $0x4c]]
    %v2772 = vstv %s2771
    %v2773 = vmul.f32 %v2772, %v63
    %v2774 = vmul.f32 %v2772, %v64
    %v2777 = vrot.slane %v2773, 1
    %v2778 = vrot.slane %v2774, 1
    %2779 = vrot.lane.b32.xlu0 %v2777, 127
    %v2780 = vpop.permute.xlu0 %2779
    %2781 = vrot.lane.b32.xlu0 %v2778, 127
    %v2782 = vpop.permute.xlu0 %2781
    %v2785 = vadd.f32 %v2737, %v2780
    %v2786 = vadd.f32 %v2738, %v2782
    %s2787 = sld [smem:[#allocation2 + $0x9d]]
    %v2788 = vstv %s2787
    %v2789 = vmul.f32 %v2788, %v63
    %v2790 = vmul.f32 %v2788, %v64
    %v2793 = vrot.slane %v2789, 1
    %v2794 = vrot.slane %v2790, 1
    %2795 = vrot.lane.b32.xlu0 %v2793, 127
    %v2796 = vpop.permute.xlu0 %2795
    %2797 = vrot.lane.b32.xlu0 %v2794, 127
    %v2798 = vpop.permute.xlu0 %2797
    %v2801 = vadd.f32 %v2753, %v2796
    %v2802 = vadd.f32 %v2754, %v2798
    %s2803 = sld [smem:[#allocation2 + $0xee]]
    %v2804 = vstv %s2803
    %v2805 = vmul.f32 %v2804, %v63
    %v2806 = vmul.f32 %v2804, %v64
    %v2809 = vrot.slane %v2805, 1
    %v2810 = vrot.slane %v2806, 1
    %2811 = vrot.lane.b32.xlu0 %v2809, 127
    %v2812 = vpop.permute.xlu0 %2811
    %2813 = vrot.lane.b32.xlu0 %v2810, 127
    %v2814 = vpop.permute.xlu0 %2813
    %v2817 = vadd.f32 %v2769, %v2812
    %v2818 = vadd.f32 %v2770, %v2814
    %s2819 = sld [smem:[#allocation2 + $0x17]]
    %v2820 = vstv %s2819
    %v2821 = vmul.f32 %v2820, %v55
    %v2822 = vmul.f32 %v2820, %v56
    %v2825 = vrot.slane %v2821, 1
    %v2826 = vrot.slane %v2822, 1
    %2827 = vrot.lane.b32.xlu0 %v2825, 126
    %v2828 = vpop.permute.xlu0 %2827
    %2829 = vrot.lane.b32.xlu0 %v2826, 126
    %v2830 = vpop.permute.xlu0 %2829
    %v2833 = vadd.f32 %v2785, %v2828
    %v2834 = vadd.f32 %v2786, %v2830
    %s2835 = sld [smem:[#allocation2 + $0x68]]
    %v2836 = vstv %s2835
    %v2837 = vmul.f32 %v2836, %v55
    %v2838 = vmul.f32 %v2836, %v56
    %v2841 = vrot.slane %v2837, 1
    %v2842 = vrot.slane %v2838, 1
    %2843 = vrot.lane.b32.xlu0 %v2841, 126
    %v2844 = vpop.permute.xlu0 %2843
    %2845 = vrot.lane.b32.xlu0 %v2842, 126
    %v2846 = vpop.permute.xlu0 %2845
    %v2849 = vadd.f32 %v2801, %v2844
    %v2850 = vadd.f32 %v2802, %v2846
    %s2851 = sld [smem:[#allocation2 + $0xb9]]
    %v2852 = vstv %s2851
    %v2853 = vmul.f32 %v2852, %v55
    %v2854 = vmul.f32 %v2852, %v56
    %v2857 = vrot.slane %v2853, 1
    %v2858 = vrot.slane %v2854, 1
    %2859 = vrot.lane.b32.xlu0 %v2857, 126
    %v2860 = vpop.permute.xlu0 %2859
    %2861 = vrot.lane.b32.xlu0 %v2858, 126
    %v2862 = vpop.permute.xlu0 %2861
    %v2865 = vadd.f32 %v2817, %v2860
    %v2866 = vadd.f32 %v2818, %v2862
    %s2867 = sld [smem:[#allocation2 + $0x32]]
    %v2868 = vstv %s2867
    %v2869 = vmul.f32 %v2868, %v59
    %v2870 = vmul.f32 %v2868, %v60
    %v2873 = vrot.slane %v2869, 1
    %v2874 = vrot.slane %v2870, 1
    %2875 = vrot.lane.b32.xlu0 %v2873, 126
    %v2876 = vpop.permute.xlu0 %2875
    %2877 = vrot.lane.b32.xlu0 %v2874, 126
    %v2878 = vpop.permute.xlu0 %2877
    %v2881 = vadd.f32 %v2833, %v2876
    %v2882 = vadd.f32 %v2834, %v2878
    %s2883 = sld [smem:[#allocation2 + $0x83]]
    %v2884 = vstv %s2883
    %v2885 = vmul.f32 %v2884, %v59
    %v2886 = vmul.f32 %v2884, %v60
    %v2889 = vrot.slane %v2885, 1
    %v2890 = vrot.slane %v2886, 1
    %2891 = vrot.lane.b32.xlu0 %v2889, 126
    %v2892 = vpop.permute.xlu0 %2891
    %2893 = vrot.lane.b32.xlu0 %v2890, 126
    %v2894 = vpop.permute.xlu0 %2893
    %v2897 = vadd.f32 %v2849, %v2892
    %v2898 = vadd.f32 %v2850, %v2894
    %s2899 = sld [smem:[#allocation2 + $0xd4]]
    %v2900 = vstv %s2899
    %v2901 = vmul.f32 %v2900, %v59
    %v2902 = vmul.f32 %v2900, %v60
    %v2905 = vrot.slane %v2901, 1
    %v2906 = vrot.slane %v2902, 1
    %2907 = vrot.lane.b32.xlu0 %v2905, 126
    %v2908 = vpop.permute.xlu0 %2907
    %2909 = vrot.lane.b32.xlu0 %v2906, 126
    %v2910 = vpop.permute.xlu0 %2909
    %v2913 = vadd.f32 %v2865, %v2908
    %v2914 = vadd.f32 %v2866, %v2910
    %s2915 = sld [smem:[#allocation2 + $0x4d]]
    %v2916 = vstv %s2915
    %v2917 = vmul.f32 %v2916, %v63
    %v2918 = vmul.f32 %v2916, %v64
    %v2921 = vrot.slane %v2917, 1
    %v2922 = vrot.slane %v2918, 1
    %2923 = vrot.lane.b32.xlu0 %v2921, 126
    %v2924 = vpop.permute.xlu0 %2923
    %2925 = vrot.lane.b32.xlu0 %v2922, 126
    %v2926 = vpop.permute.xlu0 %2925
    %v2929 = vadd.f32 %v2881, %v2924
    %v2930 = vadd.f32 %v2882, %v2926
    %s2931 = sld [smem:[#allocation2 + $0x9e]]
    %v2932 = vstv %s2931
    %v2933 = vmul.f32 %v2932, %v63
    %v2934 = vmul.f32 %v2932, %v64
    %v2937 = vrot.slane %v2933, 1
    %v2938 = vrot.slane %v2934, 1
    %2939 = vrot.lane.b32.xlu0 %v2937, 126
    %v2940 = vpop.permute.xlu0 %2939
    %2941 = vrot.lane.b32.xlu0 %v2938, 126
    %v2942 = vpop.permute.xlu0 %2941
    %v2945 = vadd.f32 %v2897, %v2940
    %v2946 = vadd.f32 %v2898, %v2942
    %s2947 = sld [smem:[#allocation2 + $0xef]]
    %v2948 = vstv %s2947
    %v2949 = vmul.f32 %v2948, %v63
    %v2950 = vmul.f32 %v2948, %v64
    %v2953 = vrot.slane %v2949, 1
    %v2954 = vrot.slane %v2950, 1
    %2955 = vrot.lane.b32.xlu0 %v2953, 126
    %v2956 = vpop.permute.xlu0 %2955
    %2957 = vrot.lane.b32.xlu0 %v2954, 126
    %v2958 = vpop.permute.xlu0 %2957
    %v2961 = vadd.f32 %v2913, %v2956
    %v2962 = vadd.f32 %v2914, %v2958
    %s2963 = sld [smem:[#allocation2 + $0x18]]
    %v2964 = vstv %s2963
    %v2965 = vmul.f32 %v2964, %v55
    %v2966 = vmul.f32 %v2964, %v56
    %v2969 = vrot.slane %v2965, 2
    %v2970 = vrot.slane %v2966, 2
    %v2973 = vadd.f32 %v2929, %v2969
    %v2974 = vadd.f32 %v2930, %v2970
    %s2975 = sld [smem:[#allocation2 + $0x69]]
    %v2976 = vstv %s2975
    %v2977 = vmul.f32 %v2976, %v55
    %v2978 = vmul.f32 %v2976, %v56
    %v2981 = vrot.slane %v2977, 2
    %v2982 = vrot.slane %v2978, 2
    %v2985 = vadd.f32 %v2945, %v2981
    %v2986 = vadd.f32 %v2946, %v2982
    %s2987 = sld [smem:[#allocation2 + $0xba]]
    %v2988 = vstv %s2987
    %v2989 = vmul.f32 %v2988, %v55
    %v2990 = vmul.f32 %v2988, %v56
    %v2993 = vrot.slane %v2989, 2
    %v2994 = vrot.slane %v2990, 2
    %v2997 = vadd.f32 %v2961, %v2993
    %v2998 = vadd.f32 %v2962, %v2994
    %s2999 = sld [smem:[#allocation2 + $0x33]]
    %v3000 = vstv %s2999
    %v3001 = vmul.f32 %v3000, %v59
    %v3002 = vmul.f32 %v3000, %v60
    %v3005 = vrot.slane %v3001, 2
    %v3006 = vrot.slane %v3002, 2
    %v3009 = vadd.f32 %v2973, %v3005
    %v3010 = vadd.f32 %v2974, %v3006
    %s3011 = sld [smem:[#allocation2 + $0x84]]
    %v3012 = vstv %s3011
    %v3013 = vmul.f32 %v3012, %v59
    %v3014 = vmul.f32 %v3012, %v60
    %v3017 = vrot.slane %v3013, 2
    %v3018 = vrot.slane %v3014, 2
    %v3021 = vadd.f32 %v2985, %v3017
    %v3022 = vadd.f32 %v2986, %v3018
    %s3023 = sld [smem:[#allocation2 + $0xd5]]
    %v3024 = vstv %s3023
    %v3025 = vmul.f32 %v3024, %v59
    %v3026 = vmul.f32 %v3024, %v60
    %v3029 = vrot.slane %v3025, 2
    %v3030 = vrot.slane %v3026, 2
    %v3033 = vadd.f32 %v2997, %v3029
    %v3034 = vadd.f32 %v2998, %v3030
    %s3035 = sld [smem:[#allocation2 + $0x4e]]
    %v3036 = vstv %s3035
    %v3037 = vmul.f32 %v3036, %v63
    %v3038 = vmul.f32 %v3036, %v64
    %v3041 = vrot.slane %v3037, 2
    %v3042 = vrot.slane %v3038, 2
    %v3045 = vadd.f32 %v3009, %v3041
    %v3046 = vadd.f32 %v3010, %v3042
    %s3047 = sld [smem:[#allocation2 + $0x9f]]
    %v3048 = vstv %s3047
    %v3049 = vmul.f32 %v3048, %v63
    %v3050 = vmul.f32 %v3048, %v64
    %v3053 = vrot.slane %v3049, 2
    %v3054 = vrot.slane %v3050, 2
    %v3057 = vadd.f32 %v3021, %v3053
    %v3058 = vadd.f32 %v3022, %v3054
    %s3059 = sld [smem:[#allocation2 + $0xf0]]
    %v3060 = vstv %s3059
    %v3061 = vmul.f32 %v3060, %v63
    %v3062 = vmul.f32 %v3060, %v64
    %v3065 = vrot.slane %v3061, 2
    %v3066 = vrot.slane %v3062, 2
    %v3069 = vadd.f32 %v3033, %v3065
    %v3070 = vadd.f32 %v3034, %v3066
    %s3071 = sld [smem:[#allocation2 + $0x19]]
    %v3072 = vstv %s3071
    %v3073 = vmul.f32 %v3072, %v55
    %v3074 = vmul.f32 %v3072, %v56
    %v3077 = vrot.slane %v3073, 2
    %v3078 = vrot.slane %v3074, 2
    %3079 = vrot.lane.b32.xlu0 %v3077, 127
    %v3080 = vpop.permute.xlu0 %3079
    %3081 = vrot.lane.b32.xlu0 %v3078, 127
    %v3082 = vpop.permute.xlu0 %3081
    %v3085 = vadd.f32 %v3045, %v3080
    %v3086 = vadd.f32 %v3046, %v3082
    %s3087 = sld [smem:[#allocation2 + $0x6a]]
    %v3088 = vstv %s3087
    %v3089 = vmul.f32 %v3088, %v55
    %v3090 = vmul.f32 %v3088, %v56
    %v3093 = vrot.slane %v3089, 2
    %v3094 = vrot.slane %v3090, 2
    %3095 = vrot.lane.b32.xlu0 %v3093, 127
    %v3096 = vpop.permute.xlu0 %3095
    %3097 = vrot.lane.b32.xlu0 %v3094, 127
    %v3098 = vpop.permute.xlu0 %3097
    %v3101 = vadd.f32 %v3057, %v3096
    %v3102 = vadd.f32 %v3058, %v3098
    %s3103 = sld [smem:[#allocation2 + $0xbb]]
    %v3104 = vstv %s3103
    %v3105 = vmul.f32 %v3104, %v55
    %v3106 = vmul.f32 %v3104, %v56
    %v3109 = vrot.slane %v3105, 2
    %v3110 = vrot.slane %v3106, 2
    %3111 = vrot.lane.b32.xlu0 %v3109, 127
    %v3112 = vpop.permute.xlu0 %3111
    %3113 = vrot.lane.b32.xlu0 %v3110, 127
    %v3114 = vpop.permute.xlu0 %3113
    %v3117 = vadd.f32 %v3069, %v3112
    %v3118 = vadd.f32 %v3070, %v3114
    %s3119 = sld [smem:[#allocation2 + $0x34]]
    %v3120 = vstv %s3119
    %v3121 = vmul.f32 %v3120, %v59
    %v3122 = vmul.f32 %v3120, %v60
    %v3125 = vrot.slane %v3121, 2
    %v3126 = vrot.slane %v3122, 2
    %3127 = vrot.lane.b32.xlu0 %v3125, 127
    %v3128 = vpop.permute.xlu0 %3127
    %3129 = vrot.lane.b32.xlu0 %v3126, 127
    %v3130 = vpop.permute.xlu0 %3129
    %v3133 = vadd.f32 %v3085, %v3128
    %v3134 = vadd.f32 %v3086, %v3130
    %s3135 = sld [smem:[#allocation2 + $0x85]]
    %v3136 = vstv %s3135
    %v3137 = vmul.f32 %v3136, %v59
    %v3138 = vmul.f32 %v3136, %v60
    %v3141 = vrot.slane %v3137, 2
    %v3142 = vrot.slane %v3138, 2
    %3143 = vrot.lane.b32.xlu0 %v3141, 127
    %v3144 = vpop.permute.xlu0 %3143
    %3145 = vrot.lane.b32.xlu0 %v3142, 127
    %v3146 = vpop.permute.xlu0 %3145
    %v3149 = vadd.f32 %v3101, %v3144
    %v3150 = vadd.f32 %v3102, %v3146
    %s3151 = sld [smem:[#allocation2 + $0xd6]]
    %v3152 = vstv %s3151
    %v3153 = vmul.f32 %v3152, %v59
    %v3154 = vmul.f32 %v3152, %v60
    %v3157 = vrot.slane %v3153, 2
    %v3158 = vrot.slane %v3154, 2
    %3159 = vrot.lane.b32.xlu0 %v3157, 127
    %v3160 = vpop.permute.xlu0 %3159
    %3161 = vrot.lane.b32.xlu0 %v3158, 127
    %v3162 = vpop.permute.xlu0 %3161
    %v3165 = vadd.f32 %v3117, %v3160
    %v3166 = vadd.f32 %v3118, %v3162
    %s3167 = sld [smem:[#allocation2 + $0x4f]]
    %v3168 = vstv %s3167
    %v3169 = vmul.f32 %v3168, %v63
    %v3170 = vmul.f32 %v3168, %v64
    %v3173 = vrot.slane %v3169, 2
    %v3174 = vrot.slane %v3170, 2
    %3175 = vrot.lane.b32.xlu0 %v3173, 127
    %v3176 = vpop.permute.xlu0 %3175
    %3177 = vrot.lane.b32.xlu0 %v3174, 127
    %v3178 = vpop.permute.xlu0 %3177
    %v3181 = vadd.f32 %v3133, %v3176
    %v3182 = vadd.f32 %v3134, %v3178
    %s3183 = sld [smem:[#allocation2 + $0xa0]]
    %v3184 = vstv %s3183
    %v3185 = vmul.f32 %v3184, %v63
    %v3186 = vmul.f32 %v3184, %v64
    %v3189 = vrot.slane %v3185, 2
    %v3190 = vrot.slane %v3186, 2
    %3191 = vrot.lane.b32.xlu0 %v3189, 127
    %v3192 = vpop.permute.xlu0 %3191
    %3193 = vrot.lane.b32.xlu0 %v3190, 127
    %v3194 = vpop.permute.xlu0 %3193
    %v3197 = vadd.f32 %v3149, %v3192
    %v3198 = vadd.f32 %v3150, %v3194
    %s3199 = sld [smem:[#allocation2 + $0xf1]]
    %v3200 = vstv %s3199
    %v3201 = vmul.f32 %v3200, %v63
    %v3202 = vmul.f32 %v3200, %v64
    %v3205 = vrot.slane %v3201, 2
    %v3206 = vrot.slane %v3202, 2
    %3207 = vrot.lane.b32.xlu0 %v3205, 127
    %v3208 = vpop.permute.xlu0 %3207
    %3209 = vrot.lane.b32.xlu0 %v3206, 127
    %v3210 = vpop.permute.xlu0 %3209
    %v3213 = vadd.f32 %v3165, %v3208
    %v3214 = vadd.f32 %v3166, %v3210
    %s3215 = sld [smem:[#allocation2 + $0x1a]]
    %v3216 = vstv %s3215
    %v3217 = vmul.f32 %v3216, %v55
    %v3218 = vmul.f32 %v3216, %v56
    %v3221 = vrot.slane %v3217, 2
    %v3222 = vrot.slane %v3218, 2
    %3223 = vrot.lane.b32.xlu0 %v3221, 126
    %v3224 = vpop.permute.xlu0 %3223
    %3225 = vrot.lane.b32.xlu0 %v3222, 126
    %v3226 = vpop.permute.xlu0 %3225
    %v3229 = vadd.f32 %v3181, %v3224
    %v3230 = vadd.f32 %v3182, %v3226
    %s3231 = sld [smem:[#allocation2 + $0x6b]]
    %v3232 = vstv %s3231
    %v3233 = vmul.f32 %v3232, %v55
    %v3234 = vmul.f32 %v3232, %v56
    %v3237 = vrot.slane %v3233, 2
    %v3238 = vrot.slane %v3234, 2
    %3239 = vrot.lane.b32.xlu0 %v3237, 126
    %v3240 = vpop.permute.xlu0 %3239
    %3241 = vrot.lane.b32.xlu0 %v3238, 126
    %v3242 = vpop.permute.xlu0 %3241
    %v3245 = vadd.f32 %v3197, %v3240
    %v3246 = vadd.f32 %v3198, %v3242
    %s3247 = sld [smem:[#allocation2 + $0xbc]]
    %v3248 = vstv %s3247
    %v3249 = vmul.f32 %v3248, %v55
    %v3250 = vmul.f32 %v3248, %v56
    %v3253 = vrot.slane %v3249, 2
    %v3254 = vrot.slane %v3250, 2
    %3255 = vrot.lane.b32.xlu0 %v3253, 126
    %v3256 = vpop.permute.xlu0 %3255
    %3257 = vrot.lane.b32.xlu0 %v3254, 126
    %v3258 = vpop.permute.xlu0 %3257
    %v3261 = vadd.f32 %v3213, %v3256
    %v3262 = vadd.f32 %v3214, %v3258
    %s3263 = sld [smem:[#allocation2 + $0x35]]
    %v3264 = vstv %s3263
    %v3265 = vmul.f32 %v3264, %v59
    %v3266 = vmul.f32 %v3264, %v60
    %v3269 = vrot.slane %v3265, 2
    %v3270 = vrot.slane %v3266, 2
    %3271 = vrot.lane.b32.xlu0 %v3269, 126
    %v3272 = vpop.permute.xlu0 %3271
    %3273 = vrot.lane.b32.xlu0 %v3270, 126
    %v3274 = vpop.permute.xlu0 %3273
    %v3277 = vadd.f32 %v3229, %v3272
    %v3278 = vadd.f32 %v3230, %v3274
    %s3279 = sld [smem:[#allocation2 + $0x86]]
    %v3280 = vstv %s3279
    %v3281 = vmul.f32 %v3280, %v59
    %v3282 = vmul.f32 %v3280, %v60
    %v3285 = vrot.slane %v3281, 2
    %v3286 = vrot.slane %v3282, 2
    %3287 = vrot.lane.b32.xlu0 %v3285, 126
    %v3288 = vpop.permute.xlu0 %3287
    %3289 = vrot.lane.b32.xlu0 %v3286, 126
    %v3290 = vpop.permute.xlu0 %3289
    %v3293 = vadd.f32 %v3245, %v3288
    %v3294 = vadd.f32 %v3246, %v3290
    %s3295 = sld [smem:[#allocation2 + $0xd7]]
    %v3296 = vstv %s3295
    %v3297 = vmul.f32 %v3296, %v59
    %v3298 = vmul.f32 %v3296, %v60
    %v3301 = vrot.slane %v3297, 2
    %v3302 = vrot.slane %v3298, 2
    %3303 = vrot.lane.b32.xlu0 %v3301, 126
    %v3304 = vpop.permute.xlu0 %3303
    %3305 = vrot.lane.b32.xlu0 %v3302, 126
    %v3306 = vpop.permute.xlu0 %3305
    %v3309 = vadd.f32 %v3261, %v3304
    %v3310 = vadd.f32 %v3262, %v3306
    %s3311 = sld [smem:[#allocation2 + $0x50]]
    %v3312 = vstv %s3311
    %v3313 = vmul.f32 %v3312, %v63
    %v3314 = vmul.f32 %v3312, %v64
    %v3317 = vrot.slane %v3313, 2
    %v3318 = vrot.slane %v3314, 2
    %3319 = vrot.lane.b32.xlu0 %v3317, 126
    %v3320 = vpop.permute.xlu0 %3319
    %3321 = vrot.lane.b32.xlu0 %v3318, 126
    %v3322 = vpop.permute.xlu0 %3321
    %v3325 = vadd.f32 %v3277, %v3320
    %v3326 = vadd.f32 %v3278, %v3322
    %s3327 = sld [smem:[#allocation2 + $0xa1]]
    %v3328 = vstv %s3327
    %v3329 = vmul.f32 %v3328, %v63
    %v3330 = vmul.f32 %v3328, %v64
    %v3333 = vrot.slane %v3329, 2
    %v3334 = vrot.slane %v3330, 2
    %3335 = vrot.lane.b32.xlu0 %v3333, 126
    %v3336 = vpop.permute.xlu0 %3335
    %3337 = vrot.lane.b32.xlu0 %v3334, 126
    %v3338 = vpop.permute.xlu0 %3337
    %v3341 = vadd.f32 %v3293, %v3336
    %v3342 = vadd.f32 %v3294, %v3338
    %s3343 = sld [smem:[#allocation2 + $0xf2]]
    %v3344 = vstv %s3343
    %v3345 = vmul.f32 %v3344, %v63
    %v3346 = vmul.f32 %v3344, %v64
    %v3349 = vrot.slane %v3345, 2
    %v3350 = vrot.slane %v3346, 2
    %3351 = vrot.lane.b32.xlu0 %v3349, 126
    %v3352 = vpop.permute.xlu0 %3351
    %3353 = vrot.lane.b32.xlu0 %v3350, 126
    %v3354 = vpop.permute.xlu0 %3353
    %v3357 = vadd.f32 %v3309, %v3352
    %v3358 = vadd.f32 %v3310, %v3354
    %vm3359 = vcmask 9216
    %v3360 = vsel %vm3359, %v3325, 0.0
    %v3361 = vsel %vm3359, %v3326, 0.0
    %v3362 = vadd.f32 %v3360, %v3361
    %3363 = vadd.xlane.f32.xlu0 %v3362
    %v3364 = vpop.xlane.xlu0 %3363
    %v3365 = vrot.slane %v3364, 4
    %v3366 = vadd.f32 %v3364, %v3365
    %v3367 = vrot.slane %v3366, 2
    %v3368 = vadd.f32 %v3366, %v3367
    %v3369 = vrot.slane %v3368, 1
    %v3370 = vadd.f32 %v3368, %v3369
    %s3371 = vtos %v3370
    %v3372 = vmul.f32 %v3325, %v3325
    %v3373 = vmul.f32 %v3326, %v3326
    %v3374 = vsel %vm3359, %v3372, 0.0
    %v3375 = vsel %vm3359, %v3373, 0.0
    %v3376 = vadd.f32 %v3374, %v3375
    %3377 = vadd.xlane.f32.xlu0 %v3376
    %v3378 = vpop.xlane.xlu0 %3377
    %v3379 = vrot.slane %v3378, 4
    %v3380 = vadd.f32 %v3378, %v3379
    %v3381 = vrot.slane %v3380, 2
    %v3382 = vadd.f32 %v3380, %v3381
    %v3383 = vrot.slane %v3382, 1
    %v3384 = vadd.f32 %v3382, %v3383
    %s3385 = vtos %v3384
    %s3386 = smul.f32 %s3371, 0.125
    %s3387 = smul.f32 %s3385, 0.125
    %s3388 = smul.f32 %s3386, %s3386
    %s3389 = ssub.f32 %s3387, %s3388
    %s3390 = smax.f32 %s3389, 0.0
    %s3391 = sadd.f32 %s3390, 1e-05
    %v3392 = vstv %s3391
    %v3393 = vrsqrt.pop %v3392
    %v3394 = vmul.f32 %v3393, %v3392
    %v3395 = vmul.f32 %v3394, %v3393
    %v3396 = vmul.f32 0.5, %v3395
    %v3397 = vsub.f32 1.5, %v3396
    %v3398 = vmul.f32 %v3393, %v3397
    %vm3399 = vweird.f32 %v3392
    %vm3400 = vweird.f32 %v3393
    %vm3401 = vmor %vm3399, %vm3400
    %v3402 = vsel %vm3401, %v3393, %v3398
    %s3403 = vtos %v3402
    %v3404 = vstv %s3386
    %v3405 = vsub.f32 %v3325, %v3404
    %v3406 = vsub.f32 %v3326, %v3404
    %s3407 = sld [smem:[#allocation4]]
    %s3408 = smul.f32 %s3403, %s3407
    %v3409 = vstv %s3408
    %v3410 = vmul.f32 %v3405, %v3409
    %v3411 = vmul.f32 %v3406, %v3409
    %s3412 = sld [smem:[#allocation6]]
    %v3413 = vstv %s3412
    %v3414 = vadd.f32 %v3410, %v3413
    %v3415 = vadd.f32 %v3411, %v3413
    %3416 = vst.msk [vmem:[%s4] sm:$0x3] %vm3359, %v3414
    %3417 = vst.msk [vmem:[%s4 + $0x2] sm:$0x3] %vm3359, %v3415
    %v3418 = vsel %vm3359, %v3341, 0.0
    %v3419 = vsel %vm3359, %v3342, 0.0
    %v3420 = vadd.f32 %v3418, %v3419
    %3421 = vadd.xlane.f32.xlu0 %v3420
    %v3422 = vpop.xlane.xlu0 %3421
    %v3423 = vrot.slane %v3422, 4
    %v3424 = vadd.f32 %v3422, %v3423
    %v3425 = vrot.slane %v3424, 2
    %v3426 = vadd.f32 %v3424, %v3425
    %v3427 = vrot.slane %v3426, 1
    %v3428 = vadd.f32 %v3426, %v3427
    %s3429 = vtos %v3428
    %v3430 = vmul.f32 %v3341, %v3341
    %v3431 = vmul.f32 %v3342, %v3342
    %v3432 = vsel %vm3359, %v3430, 0.0
    %v3433 = vsel %vm3359, %v3431, 0.0
    %v3434 = vadd.f32 %v3432, %v3433
    %3435 = vadd.xlane.f32.xlu0 %v3434
    %v3436 = vpop.xlane.xlu0 %3435
    %v3437 = vrot.slane %v3436, 4
    %v3438 = vadd.f32 %v3436, %v3437
    %v3439 = vrot.slane %v3438, 2
    %v3440 = vadd.f32 %v3438, %v3439
    %v3441 = vrot.slane %v3440, 1
    %v3442 = vadd.f32 %v3440, %v3441
    %s3443 = vtos %v3442
    %s3444 = smul.f32 %s3429, 0.125
    %s3445 = smul.f32 %s3443, 0.125
    %s3446 = smul.f32 %s3444, %s3444
    %s3447 = ssub.f32 %s3445, %s3446
    %s3448 = smax.f32 %s3447, 0.0
    %s3449 = sadd.f32 %s3448, 1e-05
    %v3450 = vstv %s3449
    %v3451 = vrsqrt.pop %v3450
    %v3452 = vmul.f32 %v3451, %v3450
    %v3453 = vmul.f32 %v3452, %v3451
    %v3454 = vmul.f32 0.5, %v3453
    %v3455 = vsub.f32 1.5, %v3454
    %v3456 = vmul.f32 %v3451, %v3455
    %vm3457 = vweird.f32 %v3450
    %vm3458 = vweird.f32 %v3451
    %vm3459 = vmor %vm3457, %vm3458
    %v3460 = vsel %vm3459, %v3451, %v3456
    %s3461 = vtos %v3460
    %v3462 = vstv %s3444
    %v3463 = vsub.f32 %v3341, %v3462
    %v3464 = vsub.f32 %v3342, %v3462
    %s3465 = sld [smem:[#allocation4 + $0x1]]
    %s3466 = smul.f32 %s3461, %s3465
    %v3467 = vstv %s3466
    %v3468 = vmul.f32 %v3463, %v3467
    %v3469 = vmul.f32 %v3464, %v3467
    %s3470 = sld [smem:[#allocation6 + $0x1]]
    %v3471 = vstv %s3470
    %v3472 = vadd.f32 %v3468, %v3471
    %v3473 = vadd.f32 %v3469, %v3471
    %s3474 = scalar_lea.vmem %s4, 4
    %3475 = vst.msk [vmem:[%s3474] sm:$0x3] %vm3359, %v3472
    %3476 = vst.msk [vmem:[%s3474 + $0x2] sm:$0x3] %vm3359, %v3473
    %v3477 = vsel %vm3359, %v3357, 0.0
    %v3478 = vsel %vm3359, %v3358, 0.0
    %v3479 = vadd.f32 %v3477, %v3478
    %3480 = vadd.xlane.f32.xlu0 %v3479
    %v3481 = vpop.xlane.xlu0 %3480
    %v3482 = vrot.slane %v3481, 4
    %v3483 = vadd.f32 %v3481, %v3482
    %v3484 = vrot.slane %v3483, 2
    %v3485 = vadd.f32 %v3483, %v3484
    %v3486 = vrot.slane %v3485, 1
    %v3487 = vadd.f32 %v3485, %v3486
    %s3488 = vtos %v3487
    %v3489 = vmul.f32 %v3357, %v3357
    %v3490 = vmul.f32 %v3358, %v3358
    %v3491 = vsel %vm3359, %v3489, 0.0
    %v3492 = vsel %vm3359, %v3490, 0.0
    %v3493 = vadd.f32 %v3491, %v3492
    %3494 = vadd.xlane.f32.xlu0 %v3493
    %v3495 = vpop.xlane.xlu0 %3494
    %v3496 = vrot.slane %v3495, 4
    %v3497 = vadd.f32 %v3495, %v3496
    %v3498 = vrot.slane %v3497, 2
    %v3499 = vadd.f32 %v3497, %v3498
    %v3500 = vrot.slane %v3499, 1
    %v3501 = vadd.f32 %v3499, %v3500
    %s3502 = vtos %v3501
    %s3503 = smul.f32 %s3488, 0.125
    %s3504 = smul.f32 %s3502, 0.125
    %s3505 = smul.f32 %s3503, %s3503
    %s3506 = ssub.f32 %s3504, %s3505
    %s3507 = smax.f32 %s3506, 0.0
    %s3508 = sadd.f32 %s3507, 1e-05
    %v3509 = vstv %s3508
    %v3510 = vrsqrt.pop %v3509
    %v3511 = vmul.f32 %v3510, %v3509
    %v3512 = vmul.f32 %v3511, %v3510
    %v3513 = vmul.f32 0.5, %v3512
    %v3514 = vsub.f32 1.5, %v3513
    %v3515 = vmul.f32 %v3510, %v3514
    %vm3516 = vweird.f32 %v3509
    %vm3517 = vweird.f32 %v3510
    %vm3518 = vmor %vm3516, %vm3517
    %v3519 = vsel %vm3518, %v3510, %v3515
    %s3520 = vtos %v3519
    %v3521 = vstv %s3503
    %v3522 = vsub.f32 %v3357, %v3521
    %v3523 = vsub.f32 %v3358, %v3521
    %s3524 = sld [smem:[#allocation4 + $0x2]]
    %s3525 = smul.f32 %s3520, %s3524
    %v3526 = vstv %s3525
    %v3527 = vmul.f32 %v3522, %v3526
    %v3528 = vmul.f32 %v3523, %v3526
    %s3529 = sld [smem:[#allocation6 + $0x2]]
    %v3530 = vstv %s3529
    %v3531 = vadd.f32 %v3527, %v3530
    %v3532 = vadd.f32 %v3528, %v3530
    %s3533 = scalar_lea.vmem %s4, 8
    %3534 = vst.msk [vmem:[%s3533] sm:$0x3] %vm3359, %v3531
    %3535 = vst.msk [vmem:[%s3533 + $0x2] sm:$0x3] %vm3359, %v3532
    // Predicated region
    $region30: #{conv_bn_forward.1} parent=1 // pred_check
      _
    $region31: #{conv_bn_forward.1} parent=1 // pred_check_branch
      %3537 = sbr.rel (0) target = $region33
    $region32: #{conv_bn_forward.1} parent=1 // pred_region
      _
    $region33: #{conv_bn_forward.1} parent=1 // pred_fallthru
      _
    // Predicated region
    $region34: #{conv_bn_forward.1} parent=1 // pred_check
      _
    $region35: #{conv_bn_forward.1} parent=1 // pred_check_branch
      %3539 = sbr.rel (0) target = $region37
    $region36: #{conv_bn_forward.1} parent=1 // pred_region
      _
    $region37: #{conv_bn_forward.1} parent=1 // pred_fallthru
      _
    %3540 = vsyncpa [#allocation3], 1
    %3541 = vsyncpa [#allocation5], 1

</llo_original>
